<compile_context>
chip_gen: v7x
topology: tpu7x:2x2x1
jax: 0.10.0
libtpu: 0.0.40
codegen_flags: <defaults>
</compile_context>

<pallas_src>
import functools

import jax
import jax.numpy as jnp
from jax.experimental import pallas as pl
from jax.experimental.pallas import tpu as pltpu


def _round_up(x, m):
    return (x + m - 1) // m * m


def _pick_chunk(T, max_chunk):
    """Timesteps per grid step: prefer a divisor of T (no dead padded steps in
    the last chunk) unless that would shrink the chunk below half the cap."""
    c = max(1, min(max_chunk, T))
    for d in range(c, 0, -1):
        if T % d == 0:
            return d if d >= (c + 1) // 2 else c
    return c


# ----------------------------- Pallas GRU kernel -----------------------------
def gru_chunk_kernel(x_ref, wih_ref, whh_ref, gb_ref, bhn_ref, out_ref,
                     h_scratch, gi_scratch, *, chunk, hp, unroll):
    """One grid step == `chunk` GRU timesteps for one batch block.

    x_ref   : (chunk, Bb, Ep)  raw embedded inputs (f32, zero padded).
    wih_ref : (Ep, 3*Hp)       W_ih^T, gate-padded, resident (single buffer).
    whh_ref : (Hp, 3*Hp)       W_hh^T, gate-padded, resident (single buffer).
    gb_ref  : (1, 3*Hp)        b_ih (all gates) + b_hh (r, z gates), resident.
    bhn_ref : (1, Hp)          b_hn (stays inside the r-gated term), resident.
    out_ref : (chunk, Bb, Hp)  per-step hidden states (== GRU output).
    h_scratch : (Bb, Hp)       carried hidden state, persists across grid steps.
    gi_scratch: (chunk, Bb, 3*Hp) per-chunk input projection (VMEM only).

    PyTorch GRU equations (gate order r, z, n):
        r  = sigmoid(gi_r + W_hr h)              # b_ir + b_hr folded into gi_r
        z  = sigmoid(gi_z + W_hz h)              # b_iz + b_hz folded into gi_z
        n  = tanh  (gi_n + r * (W_hn h + b_hn))  # b_in folded into gi_n
        h' = n + z * (h - n)                     # == (1 - z) * n + z * h
    """
    c = pl.program_id(1)

    @pl.when(c == 0)
    def _():
        h_scratch[...] = jnp.zeros_like(h_scratch)

    bb = h_scratch.shape[0]
    ep = x_ref.shape[2]

    # ---- Fused input projection for the whole chunk: one MXU matmul that is
    # independent of h (off the recurrent critical path).  f32 accumulation.
    x2d = x_ref[...].reshape(chunk * bb, ep).astype(wih_ref.dtype)
    gi = jnp.dot(x2d, wih_ref[...], preferred_element_type=jnp.float32)
    gi = gi + gb_ref[...]                                # gate biases folded in
    gi_scratch[...] = gi.reshape(chunk, bb, 3 * hp)

    # Hoist the bias broadcast out of the step loop (JAX does not CSE it).
    b_hn = jnp.broadcast_to(bhn_ref[...], (bb, hp))

    def step(t, h):
        gi_t = gi_scratch[t]                             # (Bb, 3Hp) lane-aligned
        gh = jnp.dot(h.astype(whh_ref.dtype), whh_ref[...],
                     preferred_element_type=jnp.float32)
        # Gate slices at 128-lane boundaries -> no cross-lane relayout.
        r = jax.nn.sigmoid(gi_t[:, 0:hp] + gh[:, 0:hp])
        z = jax.nn.sigmoid(gi_t[:, hp:2 * hp] + gh[:, hp:2 * hp])
        n = jnp.tanh(gi_t[:, 2 * hp:3 * hp] + r * (gh[:, 2 * hp:3 * hp] + b_hn))
        h_new = n + z * (h - n)
        out_ref[t] = h_new
        return h_new

    h_scratch[...] = jax.lax.fori_loop(0, chunk, step, h_scratch[...],
                                       unroll=unroll)


def gru_forward(x_emb, w_ih, w_hh, b_ih, b_hh, *, chunk_size=32,
                mxu_dtype=jnp.bfloat16, batch_blocks=1,
                vmem_budget_bytes=48 * 2**20):
    """x_emb: (T, B, E) f32.  w_ih: (3H, E), w_hh: (3H, H), biases: (3H,).
    Returns (output (T, B, H), hidden (1, B, H)) — same as PyTorch nn.GRU.

    mxu_dtype: matmul-operand dtype for the resident weights (bf16 recommended
    on v5e/v6e/v7x; accumulation / gate math stays f32 -> pass jnp.float32 for
    bit-tight checks).  batch_blocks: set 2 on v7x (2 TensorCores) for B>=16;
    it adds a leading 'parallel' grid axis over the batch.
    """
    T, B, E = x_emb.shape
    H = w_hh.shape[1]

    Hp = _round_up(H, 128)                 # lane-align each gate block
    Ep = _round_up(E, 128)                 # lane-align the embedding dim
    Bp = _round_up(max(B, 8), 8)           # sublane-align the batch
    if Bp % (8 * batch_blocks) != 0:
        Bp = _round_up(Bp, 8 * batch_blocks)
    Bb = Bp // batch_blocks                # batch rows per grid block

    f32 = jnp.float32
    w_bytes = jnp.dtype(mxu_dtype).itemsize

    # --- VMEM accounting (weights counted twice to also cover the
    # double-buffered fallback path) -> VMEM-aware chunk + vmem_limit_bytes.
    resident = (2 * (Ep + Hp) * 3 * Hp * w_bytes         # W_ih^T + W_hh^T
                + 2 * (8 * 3 * Hp + 8 * Hp) * 4          # biases (sublane pad)
                + Bb * Hp * 4)                           # carried hidden
    per_step = (2 * Bb * Ep * 4                          # x double buffer
                + 2 * Bb * Hp * 4                        # out double buffer
                + Bb * 3 * Hp * 4)                       # gi chunk scratch
    max_chunk = (max(1, (vmem_budget_bytes - resident) // per_step)
                 if vmem_budget_bytes > resident else 1)
    chunk = _pick_chunk(T, min(chunk_size, max_chunk))
    Tp = _round_up(T, chunk)
    nc = Tp // chunk

    # Temper the full unroll at large Hp (live-vreg pressure -> spills).
    unroll = True if Hp < 512 else 8

    vmem_limit = int(min(128 * 2**20,
                         max(32 * 2**20,
                             1.25 * (resident + chunk * per_step) + (2 << 20))))

    w_ih = jnp.asarray(w_ih, f32)
    w_hh = jnp.asarray(w_hh, f32)
    b_ih = jnp.asarray(b_ih, f32)
    b_hh = jnp.asarray(b_hh, f32)

    def pad_gate_cols(w):                  # (rows, 3H) -> (rows, 3Hp)
        rows = w.shape[0]
        out = jnp.zeros((rows, 3 * Hp), f32)
        for g in range(3):
            out = out.at[:, g * Hp:g * Hp + H].set(w[:, g * H:(g + 1) * H])
        return out

    wih_t = jnp.zeros((Ep, 3 * Hp), f32).at[:E].set(pad_gate_cols(w_ih.T))
    whh_t = jnp.zeros((Hp, 3 * Hp), f32).at[:H].set(pad_gate_cols(w_hh.T))

    # Fold b_ih (all gates) + b_hh (r, z gates) into one gate bias vector;
    # b_hn stays separate (it sits inside the r-gated term of the n gate).
    gate_bias = jnp.zeros((1, 3 * Hp), f32)
    gate_bias = gate_bias.at[0, 0 * Hp:0 * Hp + H].set(b_ih[0:H] + b_hh[0:H])
    gate_bias = gate_bias.at[0, 1 * Hp:1 * Hp + H].set(b_ih[H:2 * H] + b_hh[H:2 * H])
    gate_bias = gate_bias.at[0, 2 * Hp:2 * Hp + H].set(b_ih[2 * H:3 * H])
    b_hn = jnp.zeros((1, Hp), f32).at[0, :H].set(b_hh[2 * H:3 * H])

    # x stays f32 in HBM (its stream is E bytes/elem, far below the old
    # 3*Hp-wide gi round trip); resident weights go to mxu_dtype.
    x_pad = jnp.zeros((Tp, Bp, Ep), f32).at[:T, :B, :E].set(x_emb.astype(f32))
    wih_in = wih_t.astype(mxu_dtype)
    whh_in = whh_t.astype(mxu_dtype)

    kernel = functools.partial(gru_chunk_kernel, chunk=chunk, hp=Hp,
                               unroll=unroll)

    def build(weight_pipeline_mode):
        wkw = ({} if weight_pipeline_mode is None
               else {"pipeline_mode": weight_pipeline_mode})
        return pl.pallas_call(
            kernel,
            out_shape=jax.ShapeDtypeStruct((Tp, Bp, Hp), jnp.float32),
            grid_spec=pltpu.PrefetchScalarGridSpec(
                num_scalar_prefetch=0,
                grid=(batch_blocks, nc),
                in_specs=[
                    pl.BlockSpec((chunk, Bb, Ep), lambda b, c: (c, b, 0)),
                    pl.BlockSpec((Ep, 3 * Hp), lambda b, c: (0, 0), **wkw),
                    pl.BlockSpec((Hp, 3 * Hp), lambda b, c: (0, 0), **wkw),
                    pl.BlockSpec((1, 3 * Hp), lambda b, c: (0, 0), **wkw),
                    pl.BlockSpec((1, Hp), lambda b, c: (0, 0), **wkw),
                ],
                out_specs=pl.BlockSpec((chunk, Bb, Hp), lambda b, c: (c, b, 0)),
                scratch_shapes=[
                    pltpu.VMEM((Bb, Hp), jnp.float32),             # hidden
                    pltpu.VMEM((chunk, Bb, 3 * Hp), jnp.float32),  # gi chunk
                ],
            ),
            compiler_params=pltpu.CompilerParams(
                dimension_semantics=("parallel", "arbitrary"),
                vmem_limit_bytes=vmem_limit),
        )

    try:
        # Constant-index resident weights/biases -> single buffer (halves their
        # VMEM footprint; matters on v7x 64 MiB and v5e's small scoped VMEM).
        out = build(pl.Buffered(1))(x_pad, wih_in, whh_in, gate_bias, b_hn)
    except Exception:
        # TODO(synk): fallback if this JAX build rejects single-buffered
        # BlockSpecs (pipeline_mode=pl.Buffered(1)); semantics are identical.
        out = build(None)(x_pad, wih_in, whh_in, gate_bias, b_hn)

    out = out[:T, :B, :H]
    # Final hidden read from the output slab; valid because padded timesteps
    # only exist past T (see invariant note in the header).
    return out, out[T - 1:T]                        # (T, B, H), (1, B, H)


# --------------------------- Encoder / Seq2Seq glue ---------------------------
def init_params(key, vocab_size, embed_dim, hidden_dim):
    """Deterministic init mirroring PyTorch shapes:
       Embedding(vocab, E); GRU weights U(-1/sqrt(H), 1/sqrt(H))."""
    k_emb, k_wih, k_whh, k_bih, k_bhh = jax.random.split(key, 5)
    bound = 1.0 / jnp.sqrt(jnp.float32(hidden_dim))
    return {
        "embedding": jax.random.normal(k_emb, (vocab_size, embed_dim), jnp.float32),
        "w_ih": jax.random.uniform(k_wih, (3 * hidden_dim, embed_dim),
                                   jnp.float32, -bound, bound),
        "w_hh": jax.random.uniform(k_whh, (3 * hidden_dim, hidden_dim),
                                   jnp.float32, -bound, bound),
        "b_ih": jax.random.uniform(k_bih, (3 * hidden_dim,),
                                   jnp.float32, -bound, bound),
        "b_hh": jax.random.uniform(k_bhh, (3 * hidden_dim,),
                                   jnp.float32, -bound, bound),
    }


def encoder_forward(params, src_inputs, **gru_kwargs):
    """src_inputs: (T, B) int32 token ids (time-major, like PyTorch default)."""
    x_emb = jnp.take(params["embedding"], src_inputs, axis=0)   # (T, B, E) glue
    output, hidden = gru_forward(x_emb, params["w_ih"], params["w_hh"],
                                 params["b_ih"], params["b_hh"], **gru_kwargs)
    return output, hidden


def seq2seq_forward(params, src_inputs, tgt_input=None, **gru_kwargs):
    # Seq2Seq.forward is abstract in the reference; the concrete compute is the
    # encoder pass, which we run here and return.
    return encoder_forward(params, src_inputs, **gru_kwargs)


# ------------------------------ JAX reference GRU -----------------------------
def gru_reference(x_emb, w_ih, w_hh, b_ih, b_hh):
    H = w_hh.shape[1]

    def step(h, x):
        gi = x @ w_ih.T + b_ih
        gh = h @ w_hh.T + b_hh
        r = jax.nn.sigmoid(gi[:, :H] + gh[:, :H])
        z = jax.nn.sigmoid(gi[:, H:2 * H] + gh[:, H:2 * H])
        n = jnp.tanh(gi[:, 2 * H:] + r * gh[:, 2 * H:])
        h_new = (1.0 - z) * n + z * h
        return h_new, h_new

    B = x_emb.shape[1]
    h0 = jnp.zeros((B, H), jnp.float32)
    h_n, out = jax.lax.scan(step, h0, x_emb)
    return out, h_n[None]


# ------------------------------------ main ------------------------------------
if __name__ == "__main__":
    # Small shapes consistent with the module's Config (scaled down):
    T, B = 8, 2                 # src_sequence_length, batch_size
    VOCAB = 50                  # src_vocab_size
    E = 32                      # src_embedding_dim
    H = 32                      # encoder_hidden_dim

    key = jax.random.PRNGKey(0)
    k_tok, k_par = jax.random.split(key)
    src_inputs = jax.random.randint(k_tok, (T, B), 0, VOCAB, jnp.int32)
    params = init_params(k_par, VOCAB, E, H)

    # Pure-JAX reference.
    x_emb = jnp.take(params["embedding"], src_inputs, axis=0)
    ref_out, ref_h = gru_reference(x_emb, params["w_ih"], params["w_hh"],
                                   params["b_ih"], params["b_hh"])

    # 1) Default path (bf16 MXU operands, f32 accumulation) — loose tolerance.
    output, hidden = seq2seq_forward(params, src_inputs)
    output = jax.block_until_ready(output)
    hidden = jax.block_until_ready(hidden)
    assert output.shape == (T, B, H) and hidden.shape == (1, B, H)
    assert jnp.allclose(output, ref_out, atol=5e-2, rtol=5e-2)
    assert jnp.allclose(hidden, ref_h, atol=5e-2, rtol=5e-2)

    # 2) f32 MXU path — tight tolerance against the reference.
    out32, hid32 = gru_forward(x_emb, params["w_ih"], params["w_hh"],
                               params["b_ih"], params["b_hh"],
                               mxu_dtype=jnp.float32)
    out32 = jax.block_until_ready(out32)
    hid32 = jax.block_until_ready(hid32)
    assert jnp.allclose(out32, ref_out, atol=1e-5, rtol=1e-5)
    assert jnp.allclose(hid32, ref_h, atol=1e-5, rtol=1e-5)

    print("KERNEL_OK")
</pallas_src>

<mosaic_0001>
module attributes {stable_mosaic.version = 11 : i64} {
  func.func @gru_chunk_kernel(%arg0: i32, %arg1: i32, %arg2: memref<8x8x128xf32, #tpu.memory_space<vmem>>, %arg3: memref<128x384xbf16, #tpu.memory_space<vmem>>, %arg4: memref<128x384xbf16, #tpu.memory_space<vmem>>, %arg5: memref<1x384xf32, #tpu.memory_space<vmem>>, %arg6: memref<1x128xf32, #tpu.memory_space<vmem>>, %arg7: memref<8x8x128xf32, #tpu.memory_space<vmem>>, %arg8: memref<8x128xf32, #tpu.memory_space<vmem>>, %arg9: memref<8x8x384xf32, #tpu.memory_space<vmem>>) attributes {dimension_semantics = [#tpu.dimension_semantics<parallel>, #tpu.dimension_semantics<arbitrary>], iteration_bounds = array<i64: 1, 1>, scalar_prefetch = 0 : i64, scratch_operands = 2 : i64, tpu.core_type = #tpu.core_type<tc>, window_params = [{transform_indices = @transform_0, window_bounds = array<i64: 8, 8, 128>}, {pipeline_mode = #tpu.pipeline_mode<synchronous>, transform_indices = @transform_1, window_bounds = array<i64: 128, 384>}, {pipeline_mode = #tpu.pipeline_mode<synchronous>, transform_indices = @transform_2, window_bounds = array<i64: 128, 384>}, {pipeline_mode = #tpu.pipeline_mode<synchronous>, transform_indices = @transform_3, window_bounds = array<i64: 1, 384>}, {pipeline_mode = #tpu.pipeline_mode<synchronous>, transform_indices = @transform_4, window_bounds = array<i64: 1, 128>}, {transform_indices = @transform_5, window_bounds = array<i64: 8, 8, 128>}]} {
    %c0_i32 = arith.constant 0 : i32
    %0 = arith.cmpi eq, %arg1, %c0_i32 : i32
    %1 = arith.extui %0 : i1 to i32
    %c0_i32_0 = arith.constant 0 : i32
    %2 = arith.cmpi ne, %1, %c0_i32_0 : i32
    scf.if %2 {
      %cst_89 = arith.constant 0.000000e+00 : f32
      %298 = vector.broadcast %cst_89 : f32 to vector<8x128xf32>
      %c0_90 = arith.constant 0 : index
      %c0_91 = arith.constant 0 : index
      %299 = vector.load %arg8[%c0_90, %c0_91] : memref<8x128xf32, #tpu.memory_space<vmem>>, vector<8x128xf32>
      tpu.vector_store %arg8[%c0_90, %c0_91], %298 {strides = array<i32>} : memref<8x128xf32, #tpu.memory_space<vmem>>, vector<8x128xf32>,
    } else {
    }
    %c0 = arith.constant 0 : index
    %c0_1 = arith.constant 0 : index
    %c0_2 = arith.constant 0 : index
    %3 = vector.load %arg2[%c0, %c0_1, %c0_2] : memref<8x8x128xf32, #tpu.memory_space<vmem>>, vector<8x8x128xf32>
    %4 = vector.shape_cast %3 : vector<8x8x128xf32> to vector<64x128xf32>
    %5 = arith.truncf %4 : vector<64x128xf32> to vector<64x128xbf16>
    %c0_3 = arith.constant 0 : index
    %c0_4 = arith.constant 0 : index
    %6 = vector.load %arg3[%c0_3, %c0_4] : memref<128x384xbf16, #tpu.memory_space<vmem>>, vector<128x384xbf16>
    %cst = arith.constant dense<0.000000e+00> : vector<64x384xf32>
    %7 = tpu.matmul %5, %6, %cst {dimension_numbers = #tpu.dot_dimension_numbers<[1], [0], [0], [1], [0, 0, 1, 1], [], []>} : vector<64x128xbf16>, vector<128x384xbf16>, vector<64x384xf32> -> vector<64x384xf32>
    %c0_5 = arith.constant 0 : index
    %c0_6 = arith.constant 0 : index
    %8 = vector.load %arg5[%c0_5, %c0_6] : memref<1x384xf32, #tpu.memory_space<vmem>>, vector<1x384xf32>
    %9 = vector.broadcast %8 : vector<1x384xf32> to vector<64x384xf32>
    %10 = arith.addf %7, %9 : vector<64x384xf32>
    %11 = vector.shape_cast %10 : vector<64x384xf32> to vector<8x8x384xf32>
    %c0_7 = arith.constant 0 : index
    %c0_8 = arith.constant 0 : index
    %c0_9 = arith.constant 0 : index
    %12 = vector.load %arg9[%c0_7, %c0_8, %c0_9] : memref<8x8x384xf32, #tpu.memory_space<vmem>>, vector<8x8x384xf32>
    tpu.vector_store %arg9[%c0_7, %c0_8, %c0_9], %11 {strides = array<i32>} : memref<8x8x384xf32, #tpu.memory_space<vmem>>, vector<8x8x384xf32>,
    %c0_10 = arith.constant 0 : index
    %c0_11 = arith.constant 0 : index
    %13 = vector.load %arg6[%c0_10, %c0_11] : memref<1x128xf32, #tpu.memory_space<vmem>>, vector<1x128xf32>
    %14 = vector.shape_cast %13 : vector<1x128xf32> to vector<1x128xf32>
    %15 = vector.broadcast %14 : vector<1x128xf32> to vector<8x128xf32>
    %c0_12 = arith.constant 0 : index
    %c0_13 = arith.constant 0 : index
    %16 = vector.load %arg8[%c0_12, %c0_13] : memref<8x128xf32, #tpu.memory_space<vmem>>, vector<8x128xf32>
    %c0_i32_14 = arith.constant 0 : i32
    %17 = arith.index_cast %c0_i32_14 : i32 to index
    %c0_15 = arith.constant 0 : index
    %c0_16 = arith.constant 0 : index
    %18 = vector.load %arg9[%17, %c0_15, %c0_16] : memref<8x8x384xf32, #tpu.memory_space<vmem>>, vector<1x8x384xf32>
    %19 = vector.shape_cast %18 : vector<1x8x384xf32> to vector<8x384xf32>
    %20 = arith.truncf %16 : vector<8x128xf32> to vector<8x128xbf16>
    %c0_17 = arith.constant 0 : index
    %c0_18 = arith.constant 0 : index
    %21 = vector.load %arg4[%c0_17, %c0_18] : memref<128x384xbf16, #tpu.memory_space<vmem>>, vector<128x384xbf16>
    %cst_19 = arith.constant dense<0.000000e+00> : vector<8x384xf32>
    %22 = tpu.matmul %20, %21, %cst_19 {dimension_numbers = #tpu.dot_dimension_numbers<[1], [0], [0], [1], [0, 0, 1, 1], [], []>} : vector<8x128xbf16>, vector<128x384xbf16>, vector<8x384xf32> -> vector<8x384xf32>
    %23 = vector.extract_strided_slice %19 {offsets = [0, 0], sizes = [8, 128], strides = [1, 1]} : vector<8x384xf32> to vector<8x128xf32>
    %24 = vector.extract_strided_slice %22 {offsets = [0, 0], sizes = [8, 128], strides = [1, 1]} : vector<8x384xf32> to vector<8x128xf32>
    %25 = arith.addf %23, %24 : vector<8x128xf32>
    %26 = arith.negf %25 : vector<8x128xf32>
    %27 = math.exp %26 : vector<8x128xf32>
    %cst_20 = arith.constant 1.000000e+00 : f32
    %28 = vector.broadcast %cst_20 : f32 to vector<8x128xf32>
    %29 = arith.addf %28, %27 : vector<8x128xf32>
    %30 = arith.divf %28, %29 : vector<8x128xf32>
    %31 = vector.extract_strided_slice %19 {offsets = [0, 128], sizes = [8, 128], strides = [1, 1]} : vector<8x384xf32> to vector<8x128xf32>
    %32 = vector.extract_strided_slice %22 {offsets = [0, 128], sizes = [8, 128], strides = [1, 1]} : vector<8x384xf32> to vector<8x128xf32>
    %33 = arith.addf %31, %32 : vector<8x128xf32>
    %34 = arith.negf %33 : vector<8x128xf32>
    %35 = math.exp %34 : vector<8x128xf32>
    %cst_21 = arith.constant 1.000000e+00 : f32
    %36 = vector.broadcast %cst_21 : f32 to vector<8x128xf32>
    %37 = arith.addf %36, %35 : vector<8x128xf32>
    %38 = arith.divf %36, %37 : vector<8x128xf32>
    %39 = vector.extract_strided_slice %19 {offsets = [0, 256], sizes = [8, 128], strides = [1, 1]} : vector<8x384xf32> to vector<8x128xf32>
    %40 = vector.extract_strided_slice %22 {offsets = [0, 256], sizes = [8, 128], strides = [1, 1]} : vector<8x384xf32> to vector<8x128xf32>
    %41 = arith.addf %40, %15 : vector<8x128xf32>
    %42 = arith.mulf %30, %41 : vector<8x128xf32>
    %43 = arith.addf %39, %42 : vector<8x128xf32>
    %44 = math.tanh %43 : vector<8x128xf32>
    %45 = arith.subf %16, %44 : vector<8x128xf32>
    %46 = arith.mulf %38, %45 : vector<8x128xf32>
    %47 = arith.addf %44, %46 : vector<8x128xf32>
    %48 = arith.index_cast %c0_i32_14 : i32 to index
    %c0_22 = arith.constant 0 : index
    %c0_23 = arith.constant 0 : index
    %49 = vector.load %arg7[%48, %c0_22, %c0_23] : memref<8x8x128xf32, #tpu.memory_space<vmem>>, vector<1x8x128xf32>
    %50 = vector.shape_cast %49 : vector<1x8x128xf32> to vector<8x128xf32>
    %51 = vector.shape_cast %47 : vector<8x128xf32> to vector<1x8x128xf32>
    tpu.vector_store %arg7[%48, %c0_22, %c0_23], %51 {strides = array<i32>} : memref<8x8x128xf32, #tpu.memory_space<vmem>>, vector<1x8x128xf32>,
    %c1_i32 = arith.constant 1 : i32
    %52 = arith.index_cast %c1_i32 : i32 to index
    %c0_24 = arith.constant 0 : index
    %c0_25 = arith.constant 0 : index
    %53 = vector.load %arg9[%52, %c0_24, %c0_25] : memref<8x8x384xf32, #tpu.memory_space<vmem>>, vector<1x8x384xf32>
    %54 = vector.shape_cast %53 : vector<1x8x384xf32> to vector<8x384xf32>
    %55 = arith.truncf %47 : vector<8x128xf32> to vector<8x128xbf16>
    %c0_26 = arith.constant 0 : index
    %c0_27 = arith.constant 0 : index
    %56 = vector.load %arg4[%c0_26, %c0_27] : memref<128x384xbf16, #tpu.memory_space<vmem>>, vector<128x384xbf16>
    %cst_28 = arith.constant dense<0.000000e+00> : vector<8x384xf32>
    %57 = tpu.matmul %55, %56, %cst_28 {dimension_numbers = #tpu.dot_dimension_numbers<[1], [0], [0], [1], [0, 0, 1, 1], [], []>} : vector<8x128xbf16>, vector<128x384xbf16>, vector<8x384xf32> -> vector<8x384xf32>
    %58 = vector.extract_strided_slice %54 {offsets = [0, 0], sizes = [8, 128], strides = [1, 1]} : vector<8x384xf32> to vector<8x128xf32>
    %59 = vector.extract_strided_slice %57 {offsets = [0, 0], sizes = [8, 128], strides = [1, 1]} : vector<8x384xf32> to vector<8x128xf32>
    %60 = arith.addf %58, %59 : vector<8x128xf32>
    %61 = arith.negf %60 : vector<8x128xf32>
    %62 = math.exp %61 : vector<8x128xf32>
    %cst_29 = arith.constant 1.000000e+00 : f32
    %63 = vector.broadcast %cst_29 : f32 to vector<8x128xf32>
    %64 = arith.addf %63, %62 : vector<8x128xf32>
    %65 = arith.divf %63, %64 : vector<8x128xf32>
    %66 = vector.extract_strided_slice %54 {offsets = [0, 128], sizes = [8, 128], strides = [1, 1]} : vector<8x384xf32> to vector<8x128xf32>
    %67 = vector.extract_strided_slice %57 {offsets = [0, 128], sizes = [8, 128], strides = [1, 1]} : vector<8x384xf32> to vector<8x128xf32>
    %68 = arith.addf %66, %67 : vector<8x128xf32>
    %69 = arith.negf %68 : vector<8x128xf32>
    %70 = math.exp %69 : vector<8x128xf32>
    %cst_30 = arith.constant 1.000000e+00 : f32
    %71 = vector.broadcast %cst_30 : f32 to vector<8x128xf32>
    %72 = arith.addf %71, %70 : vector<8x128xf32>
    %73 = arith.divf %71, %72 : vector<8x128xf32>
    %74 = vector.extract_strided_slice %54 {offsets = [0, 256], sizes = [8, 128], strides = [1, 1]} : vector<8x384xf32> to vector<8x128xf32>
    %75 = vector.extract_strided_slice %57 {offsets = [0, 256], sizes = [8, 128], strides = [1, 1]} : vector<8x384xf32> to vector<8x128xf32>
    %76 = arith.addf %75, %15 : vector<8x128xf32>
    %77 = arith.mulf %65, %76 : vector<8x128xf32>
    %78 = arith.addf %74, %77 : vector<8x128xf32>
    %79 = math.tanh %78 : vector<8x128xf32>
    %80 = arith.subf %47, %79 : vector<8x128xf32>
    %81 = arith.mulf %73, %80 : vector<8x128xf32>
    %82 = arith.addf %79, %81 : vector<8x128xf32>
    %83 = arith.index_cast %c1_i32 : i32 to index
    %c0_31 = arith.constant 0 : index
    %c0_32 = arith.constant 0 : index
    %84 = vector.load %arg7[%83, %c0_31, %c0_32] : memref<8x8x128xf32, #tpu.memory_space<vmem>>, vector<1x8x128xf32>
    %85 = vector.shape_cast %84 : vector<1x8x128xf32> to vector<8x128xf32>
    %86 = vector.shape_cast %82 : vector<8x128xf32> to vector<1x8x128xf32>
    tpu.vector_store %arg7[%83, %c0_31, %c0_32], %86 {strides = array<i32>} : memref<8x8x128xf32, #tpu.memory_space<vmem>>, vector<1x8x128xf32>,
    %c2_i32 = arith.constant 2 : i32
    %87 = arith.index_cast %c2_i32 : i32 to index
    %c0_33 = arith.constant 0 : index
    %c0_34 = arith.constant 0 : index
    %88 = vector.load %arg9[%87, %c0_33, %c0_34] : memref<8x8x384xf32, #tpu.memory_space<vmem>>, vector<1x8x384xf32>
    %89 = vector.shape_cast %88 : vector<1x8x384xf32> to vector<8x384xf32>
    %90 = arith.truncf %82 : vector<8x128xf32> to vector<8x128xbf16>
    %c0_35 = arith.constant 0 : index
    %c0_36 = arith.constant 0 : index
    %91 = vector.load %arg4[%c0_35, %c0_36] : memref<128x384xbf16, #tpu.memory_space<vmem>>, vector<128x384xbf16>
    %cst_37 = arith.constant dense<0.000000e+00> : vector<8x384xf32>
    %92 = tpu.matmul %90, %91, %cst_37 {dimension_numbers = #tpu.dot_dimension_numbers<[1], [0], [0], [1], [0, 0, 1, 1], [], []>} : vector<8x128xbf16>, vector<128x384xbf16>, vector<8x384xf32> -> vector<8x384xf32>
    %93 = vector.extract_strided_slice %89 {offsets = [0, 0], sizes = [8, 128], strides = [1, 1]} : vector<8x384xf32> to vector<8x128xf32>
    %94 = vector.extract_strided_slice %92 {offsets = [0, 0], sizes = [8, 128], strides = [1, 1]} : vector<8x384xf32> to vector<8x128xf32>
    %95 = arith.addf %93, %94 : vector<8x128xf32>
    %96 = arith.negf %95 : vector<8x128xf32>
    %97 = math.exp %96 : vector<8x128xf32>
    %cst_38 = arith.constant 1.000000e+00 : f32
    %98 = vector.broadcast %cst_38 : f32 to vector<8x128xf32>
    %99 = arith.addf %98, %97 : vector<8x128xf32>
    %100 = arith.divf %98, %99 : vector<8x128xf32>
    %101 = vector.extract_strided_slice %89 {offsets = [0, 128], sizes = [8, 128], strides = [1, 1]} : vector<8x384xf32> to vector<8x128xf32>
    %102 = vector.extract_strided_slice %92 {offsets = [0, 128], sizes = [8, 128], strides = [1, 1]} : vector<8x384xf32> to vector<8x128xf32>
    %103 = arith.addf %101, %102 : vector<8x128xf32>
    %104 = arith.negf %103 : vector<8x128xf32>
    %105 = math.exp %104 : vector<8x128xf32>
    %cst_39 = arith.constant 1.000000e+00 : f32
    %106 = vector.broadcast %cst_39 : f32 to vector<8x128xf32>
    %107 = arith.addf %106, %105 : vector<8x128xf32>
    %108 = arith.divf %106, %107 : vector<8x128xf32>
    %109 = vector.extract_strided_slice %89 {offsets = [0, 256], sizes = [8, 128], strides = [1, 1]} : vector<8x384xf32> to vector<8x128xf32>
    %110 = vector.extract_strided_slice %92 {offsets = [0, 256], sizes = [8, 128], strides = [1, 1]} : vector<8x384xf32> to vector<8x128xf32>
    %111 = arith.addf %110, %15 : vector<8x128xf32>
    %112 = arith.mulf %100, %111 : vector<8x128xf32>
    %113 = arith.addf %109, %112 : vector<8x128xf32>
    %114 = math.tanh %113 : vector<8x128xf32>
    %115 = arith.subf %82, %114 : vector<8x128xf32>
    %116 = arith.mulf %108, %115 : vector<8x128xf32>
    %117 = arith.addf %114, %116 : vector<8x128xf32>
    %118 = arith.index_cast %c2_i32 : i32 to index
    %c0_40 = arith.constant 0 : index
    %c0_41 = arith.constant 0 : index
    %119 = vector.load %arg7[%118, %c0_40, %c0_41] : memref<8x8x128xf32, #tpu.memory_space<vmem>>, vector<1x8x128xf32>
    %120 = vector.shape_cast %119 : vector<1x8x128xf32> to vector<8x128xf32>
    %121 = vector.shape_cast %117 : vector<8x128xf32> to vector<1x8x128xf32>
    tpu.vector_store %arg7[%118, %c0_40, %c0_41], %121 {strides = array<i32>} : memref<8x8x128xf32, #tpu.memory_space<vmem>>, vector<1x8x128xf32>,
    %c3_i32 = arith.constant 3 : i32
    %122 = arith.index_cast %c3_i32 : i32 to index
    %c0_42 = arith.constant 0 : index
    %c0_43 = arith.constant 0 : index
    %123 = vector.load %arg9[%122, %c0_42, %c0_43] : memref<8x8x384xf32, #tpu.memory_space<vmem>>, vector<1x8x384xf32>
    %124 = vector.shape_cast %123 : vector<1x8x384xf32> to vector<8x384xf32>
    %125 = arith.truncf %117 : vector<8x128xf32> to vector<8x128xbf16>
    %c0_44 = arith.constant 0 : index
    %c0_45 = arith.constant 0 : index
    %126 = vector.load %arg4[%c0_44, %c0_45] : memref<128x384xbf16, #tpu.memory_space<vmem>>, vector<128x384xbf16>
    %cst_46 = arith.constant dense<0.000000e+00> : vector<8x384xf32>
    %127 = tpu.matmul %125, %126, %cst_46 {dimension_numbers = #tpu.dot_dimension_numbers<[1], [0], [0], [1], [0, 0, 1, 1], [], []>} : vector<8x128xbf16>, vector<128x384xbf16>, vector<8x384xf32> -> vector<8x384xf32>
    %128 = vector.extract_strided_slice %124 {offsets = [0, 0], sizes = [8, 128], strides = [1, 1]} : vector<8x384xf32> to vector<8x128xf32>
    %129 = vector.extract_strided_slice %127 {offsets = [0, 0], sizes = [8, 128], strides = [1, 1]} : vector<8x384xf32> to vector<8x128xf32>
    %130 = arith.addf %128, %129 : vector<8x128xf32>
    %131 = arith.negf %130 : vector<8x128xf32>
    %132 = math.exp %131 : vector<8x128xf32>
    %cst_47 = arith.constant 1.000000e+00 : f32
    %133 = vector.broadcast %cst_47 : f32 to vector<8x128xf32>
    %134 = arith.addf %133, %132 : vector<8x128xf32>
    %135 = arith.divf %133, %134 : vector<8x128xf32>
    %136 = vector.extract_strided_slice %124 {offsets = [0, 128], sizes = [8, 128], strides = [1, 1]} : vector<8x384xf32> to vector<8x128xf32>
    %137 = vector.extract_strided_slice %127 {offsets = [0, 128], sizes = [8, 128], strides = [1, 1]} : vector<8x384xf32> to vector<8x128xf32>
    %138 = arith.addf %136, %137 : vector<8x128xf32>
    %139 = arith.negf %138 : vector<8x128xf32>
    %140 = math.exp %139 : vector<8x128xf32>
    %cst_48 = arith.constant 1.000000e+00 : f32
    %141 = vector.broadcast %cst_48 : f32 to vector<8x128xf32>
    %142 = arith.addf %141, %140 : vector<8x128xf32>
    %143 = arith.divf %141, %142 : vector<8x128xf32>
    %144 = vector.extract_strided_slice %124 {offsets = [0, 256], sizes = [8, 128], strides = [1, 1]} : vector<8x384xf32> to vector<8x128xf32>
    %145 = vector.extract_strided_slice %127 {offsets = [0, 256], sizes = [8, 128], strides = [1, 1]} : vector<8x384xf32> to vector<8x128xf32>
    %146 = arith.addf %145, %15 : vector<8x128xf32>
    %147 = arith.mulf %135, %146 : vector<8x128xf32>
    %148 = arith.addf %144, %147 : vector<8x128xf32>
    %149 = math.tanh %148 : vector<8x128xf32>
    %150 = arith.subf %117, %149 : vector<8x128xf32>
    %151 = arith.mulf %143, %150 : vector<8x128xf32>
    %152 = arith.addf %149, %151 : vector<8x128xf32>
    %153 = arith.index_cast %c3_i32 : i32 to index
    %c0_49 = arith.constant 0 : index
    %c0_50 = arith.constant 0 : index
    %154 = vector.load %arg7[%153, %c0_49, %c0_50] : memref<8x8x128xf32, #tpu.memory_space<vmem>>, vector<1x8x128xf32>
    %155 = vector.shape_cast %154 : vector<1x8x128xf32> to vector<8x128xf32>
    %156 = vector.shape_cast %152 : vector<8x128xf32> to vector<1x8x128xf32>
    tpu.vector_store %arg7[%153, %c0_49, %c0_50], %156 {strides = array<i32>} : memref<8x8x128xf32, #tpu.memory_space<vmem>>, vector<1x8x128xf32>,
    %c4_i32 = arith.constant 4 : i32
    %157 = arith.index_cast %c4_i32 : i32 to index
    %c0_51 = arith.constant 0 : index
    %c0_52 = arith.constant 0 : index
    %158 = vector.load %arg9[%157, %c0_51, %c0_52] : memref<8x8x384xf32, #tpu.memory_space<vmem>>, vector<1x8x384xf32>
    %159 = vector.shape_cast %158 : vector<1x8x384xf32> to vector<8x384xf32>
    %160 = arith.truncf %152 : vector<8x128xf32> to vector<8x128xbf16>
    %c0_53 = arith.constant 0 : index
    %c0_54 = arith.constant 0 : index
    %161 = vector.load %arg4[%c0_53, %c0_54] : memref<128x384xbf16, #tpu.memory_space<vmem>>, vector<128x384xbf16>
    %cst_55 = arith.constant dense<0.000000e+00> : vector<8x384xf32>
    %162 = tpu.matmul %160, %161, %cst_55 {dimension_numbers = #tpu.dot_dimension_numbers<[1], [0], [0], [1], [0, 0, 1, 1], [], []>} : vector<8x128xbf16>, vector<128x384xbf16>, vector<8x384xf32> -> vector<8x384xf32>
    %163 = vector.extract_strided_slice %159 {offsets = [0, 0], sizes = [8, 128], strides = [1, 1]} : vector<8x384xf32> to vector<8x128xf32>
    %164 = vector.extract_strided_slice %162 {offsets = [0, 0], sizes = [8, 128], strides = [1, 1]} : vector<8x384xf32> to vector<8x128xf32>
    %165 = arith.addf %163, %164 : vector<8x128xf32>
    %166 = arith.negf %165 : vector<8x128xf32>
    %167 = math.exp %166 : vector<8x128xf32>
    %cst_56 = arith.constant 1.000000e+00 : f32
    %168 = vector.broadcast %cst_56 : f32 to vector<8x128xf32>
    %169 = arith.addf %168, %167 : vector<8x128xf32>
    %170 = arith.divf %168, %169 : vector<8x128xf32>
    %171 = vector.extract_strided_slice %159 {offsets = [0, 128], sizes = [8, 128], strides = [1, 1]} : vector<8x384xf32> to vector<8x128xf32>
    %172 = vector.extract_strided_slice %162 {offsets = [0, 128], sizes = [8, 128], strides = [1, 1]} : vector<8x384xf32> to vector<8x128xf32>
    %173 = arith.addf %171, %172 : vector<8x128xf32>
    %174 = arith.negf %173 : vector<8x128xf32>
    %175 = math.exp %174 : vector<8x128xf32>
    %cst_57 = arith.constant 1.000000e+00 : f32
    %176 = vector.broadcast %cst_57 : f32 to vector<8x128xf32>
    %177 = arith.addf %176, %175 : vector<8x128xf32>
    %178 = arith.divf %176, %177 : vector<8x128xf32>
    %179 = vector.extract_strided_slice %159 {offsets = [0, 256], sizes = [8, 128], strides = [1, 1]} : vector<8x384xf32> to vector<8x128xf32>
    %180 = vector.extract_strided_slice %162 {offsets = [0, 256], sizes = [8, 128], strides = [1, 1]} : vector<8x384xf32> to vector<8x128xf32>
    %181 = arith.addf %180, %15 : vector<8x128xf32>
    %182 = arith.mulf %170, %181 : vector<8x128xf32>
    %183 = arith.addf %179, %182 : vector<8x128xf32>
    %184 = math.tanh %183 : vector<8x128xf32>
    %185 = arith.subf %152, %184 : vector<8x128xf32>
    %186 = arith.mulf %178, %185 : vector<8x128xf32>
    %187 = arith.addf %184, %186 : vector<8x128xf32>
    %188 = arith.index_cast %c4_i32 : i32 to index
    %c0_58 = arith.constant 0 : index
    %c0_59 = arith.constant 0 : index
    %189 = vector.load %arg7[%188, %c0_58, %c0_59] : memref<8x8x128xf32, #tpu.memory_space<vmem>>, vector<1x8x128xf32>
    %190 = vector.shape_cast %189 : vector<1x8x128xf32> to vector<8x128xf32>
    %191 = vector.shape_cast %187 : vector<8x128xf32> to vector<1x8x128xf32>
    tpu.vector_store %arg7[%188, %c0_58, %c0_59], %191 {strides = array<i32>} : memref<8x8x128xf32, #tpu.memory_space<vmem>>, vector<1x8x128xf32>,
    %c5_i32 = arith.constant 5 : i32
    %192 = arith.index_cast %c5_i32 : i32 to index
    %c0_60 = arith.constant 0 : index
    %c0_61 = arith.constant 0 : index
    %193 = vector.load %arg9[%192, %c0_60, %c0_61] : memref<8x8x384xf32, #tpu.memory_space<vmem>>, vector<1x8x384xf32>
    %194 = vector.shape_cast %193 : vector<1x8x384xf32> to vector<8x384xf32>
    %195 = arith.truncf %187 : vector<8x128xf32> to vector<8x128xbf16>
    %c0_62 = arith.constant 0 : index
    %c0_63 = arith.constant 0 : index
    %196 = vector.load %arg4[%c0_62, %c0_63] : memref<128x384xbf16, #tpu.memory_space<vmem>>, vector<128x384xbf16>
    %cst_64 = arith.constant dense<0.000000e+00> : vector<8x384xf32>
    %197 = tpu.matmul %195, %196, %cst_64 {dimension_numbers = #tpu.dot_dimension_numbers<[1], [0], [0], [1], [0, 0, 1, 1], [], []>} : vector<8x128xbf16>, vector<128x384xbf16>, vector<8x384xf32> -> vector<8x384xf32>
    %198 = vector.extract_strided_slice %194 {offsets = [0, 0], sizes = [8, 128], strides = [1, 1]} : vector<8x384xf32> to vector<8x128xf32>
    %199 = vector.extract_strided_slice %197 {offsets = [0, 0], sizes = [8, 128], strides = [1, 1]} : vector<8x384xf32> to vector<8x128xf32>
    %200 = arith.addf %198, %199 : vector<8x128xf32>
    %201 = arith.negf %200 : vector<8x128xf32>
    %202 = math.exp %201 : vector<8x128xf32>
    %cst_65 = arith.constant 1.000000e+00 : f32
    %203 = vector.broadcast %cst_65 : f32 to vector<8x128xf32>
    %204 = arith.addf %203, %202 : vector<8x128xf32>
    %205 = arith.divf %203, %204 : vector<8x128xf32>
    %206 = vector.extract_strided_slice %194 {offsets = [0, 128], sizes = [8, 128], strides = [1, 1]} : vector<8x384xf32> to vector<8x128xf32>
    %207 = vector.extract_strided_slice %197 {offsets = [0, 128], sizes = [8, 128], strides = [1, 1]} : vector<8x384xf32> to vector<8x128xf32>
    %208 = arith.addf %206, %207 : vector<8x128xf32>
    %209 = arith.negf %208 : vector<8x128xf32>
    %210 = math.exp %209 : vector<8x128xf32>
    %cst_66 = arith.constant 1.000000e+00 : f32
    %211 = vector.broadcast %cst_66 : f32 to vector<8x128xf32>
    %212 = arith.addf %211, %210 : vector<8x128xf32>
    %213 = arith.divf %211, %212 : vector<8x128xf32>
    %214 = vector.extract_strided_slice %194 {offsets = [0, 256], sizes = [8, 128], strides = [1, 1]} : vector<8x384xf32> to vector<8x128xf32>
    %215 = vector.extract_strided_slice %197 {offsets = [0, 256], sizes = [8, 128], strides = [1, 1]} : vector<8x384xf32> to vector<8x128xf32>
    %216 = arith.addf %215, %15 : vector<8x128xf32>
    %217 = arith.mulf %205, %216 : vector<8x128xf32>
    %218 = arith.addf %214, %217 : vector<8x128xf32>
    %219 = math.tanh %218 : vector<8x128xf32>
    %220 = arith.subf %187, %219 : vector<8x128xf32>
    %221 = arith.mulf %213, %220 : vector<8x128xf32>
    %222 = arith.addf %219, %221 : vector<8x128xf32>
    %223 = arith.index_cast %c5_i32 : i32 to index
    %c0_67 = arith.constant 0 : index
    %c0_68 = arith.constant 0 : index
    %224 = vector.load %arg7[%223, %c0_67, %c0_68] : memref<8x8x128xf32, #tpu.memory_space<vmem>>, vector<1x8x128xf32>
    %225 = vector.shape_cast %224 : vector<1x8x128xf32> to vector<8x128xf32>
    %226 = vector.shape_cast %222 : vector<8x128xf32> to vector<1x8x128xf32>
    tpu.vector_store %arg7[%223, %c0_67, %c0_68], %226 {strides = array<i32>} : memref<8x8x128xf32, #tpu.memory_space<vmem>>, vector<1x8x128xf32>,
    %c6_i32 = arith.constant 6 : i32
    %227 = arith.index_cast %c6_i32 : i32 to index
    %c0_69 = arith.constant 0 : index
    %c0_70 = arith.constant 0 : index
    %228 = vector.load %arg9[%227, %c0_69, %c0_70] : memref<8x8x384xf32, #tpu.memory_space<vmem>>, vector<1x8x384xf32>
    %229 = vector.shape_cast %228 : vector<1x8x384xf32> to vector<8x384xf32>
    %230 = arith.truncf %222 : vector<8x128xf32> to vector<8x128xbf16>
    %c0_71 = arith.constant 0 : index
    %c0_72 = arith.constant 0 : index
    %231 = vector.load %arg4[%c0_71, %c0_72] : memref<128x384xbf16, #tpu.memory_space<vmem>>, vector<128x384xbf16>
    %cst_73 = arith.constant dense<0.000000e+00> : vector<8x384xf32>
    %232 = tpu.matmul %230, %231, %cst_73 {dimension_numbers = #tpu.dot_dimension_numbers<[1], [0], [0], [1], [0, 0, 1, 1], [], []>} : vector<8x128xbf16>, vector<128x384xbf16>, vector<8x384xf32> -> vector<8x384xf32>
    %233 = vector.extract_strided_slice %229 {offsets = [0, 0], sizes = [8, 128], strides = [1, 1]} : vector<8x384xf32> to vector<8x128xf32>
    %234 = vector.extract_strided_slice %232 {offsets = [0, 0], sizes = [8, 128], strides = [1, 1]} : vector<8x384xf32> to vector<8x128xf32>
    %235 = arith.addf %233, %234 : vector<8x128xf32>
    %236 = arith.negf %235 : vector<8x128xf32>
    %237 = math.exp %236 : vector<8x128xf32>
    %cst_74 = arith.constant 1.000000e+00 : f32
    %238 = vector.broadcast %cst_74 : f32 to vector<8x128xf32>
    %239 = arith.addf %238, %237 : vector<8x128xf32>
    %240 = arith.divf %238, %239 : vector<8x128xf32>
    %241 = vector.extract_strided_slice %229 {offsets = [0, 128], sizes = [8, 128], strides = [1, 1]} : vector<8x384xf32> to vector<8x128xf32>
    %242 = vector.extract_strided_slice %232 {offsets = [0, 128], sizes = [8, 128], strides = [1, 1]} : vector<8x384xf32> to vector<8x128xf32>
    %243 = arith.addf %241, %242 : vector<8x128xf32>
    %244 = arith.negf %243 : vector<8x128xf32>
    %245 = math.exp %244 : vector<8x128xf32>
    %cst_75 = arith.constant 1.000000e+00 : f32
    %246 = vector.broadcast %cst_75 : f32 to vector<8x128xf32>
    %247 = arith.addf %246, %245 : vector<8x128xf32>
    %248 = arith.divf %246, %247 : vector<8x128xf32>
    %249 = vector.extract_strided_slice %229 {offsets = [0, 256], sizes = [8, 128], strides = [1, 1]} : vector<8x384xf32> to vector<8x128xf32>
    %250 = vector.extract_strided_slice %232 {offsets = [0, 256], sizes = [8, 128], strides = [1, 1]} : vector<8x384xf32> to vector<8x128xf32>
    %251 = arith.addf %250, %15 : vector<8x128xf32>
    %252 = arith.mulf %240, %251 : vector<8x128xf32>
    %253 = arith.addf %249, %252 : vector<8x128xf32>
    %254 = math.tanh %253 : vector<8x128xf32>
    %255 = arith.subf %222, %254 : vector<8x128xf32>
    %256 = arith.mulf %248, %255 : vector<8x128xf32>
    %257 = arith.addf %254, %256 : vector<8x128xf32>
    %258 = arith.index_cast %c6_i32 : i32 to index
    %c0_76 = arith.constant 0 : index
    %c0_77 = arith.constant 0 : index
    %259 = vector.load %arg7[%258, %c0_76, %c0_77] : memref<8x8x128xf32, #tpu.memory_space<vmem>>, vector<1x8x128xf32>
    %260 = vector.shape_cast %259 : vector<1x8x128xf32> to vector<8x128xf32>
    %261 = vector.shape_cast %257 : vector<8x128xf32> to vector<1x8x128xf32>
    tpu.vector_store %arg7[%258, %c0_76, %c0_77], %261 {strides = array<i32>} : memref<8x8x128xf32, #tpu.memory_space<vmem>>, vector<1x8x128xf32>,
    %c7_i32 = arith.constant 7 : i32
    %262 = arith.index_cast %c7_i32 : i32 to index
    %c0_78 = arith.constant 0 : index
    %c0_79 = arith.constant 0 : index
    %263 = vector.load %arg9[%262, %c0_78, %c0_79] : memref<8x8x384xf32, #tpu.memory_space<vmem>>, vector<1x8x384xf32>
    %264 = vector.shape_cast %263 : vector<1x8x384xf32> to vector<8x384xf32>
    %265 = arith.truncf %257 : vector<8x128xf32> to vector<8x128xbf16>
    %c0_80 = arith.constant 0 : index
    %c0_81 = arith.constant 0 : index
    %266 = vector.load %arg4[%c0_80, %c0_81] : memref<128x384xbf16, #tpu.memory_space<vmem>>, vector<128x384xbf16>
    %cst_82 = arith.constant dense<0.000000e+00> : vector<8x384xf32>
    %267 = tpu.matmul %265, %266, %cst_82 {dimension_numbers = #tpu.dot_dimension_numbers<[1], [0], [0], [1], [0, 0, 1, 1], [], []>} : vector<8x128xbf16>, vector<128x384xbf16>, vector<8x384xf32> -> vector<8x384xf32>
    %268 = vector.extract_strided_slice %264 {offsets = [0, 0], sizes = [8, 128], strides = [1, 1]} : vector<8x384xf32> to vector<8x128xf32>
    %269 = vector.extract_strided_slice %267 {offsets = [0, 0], sizes = [8, 128], strides = [1, 1]} : vector<8x384xf32> to vector<8x128xf32>
    %270 = arith.addf %268, %269 : vector<8x128xf32>
    %271 = arith.negf %270 : vector<8x128xf32>
    %272 = math.exp %271 : vector<8x128xf32>
    %cst_83 = arith.constant 1.000000e+00 : f32
    %273 = vector.broadcast %cst_83 : f32 to vector<8x128xf32>
    %274 = arith.addf %273, %272 : vector<8x128xf32>
    %275 = arith.divf %273, %274 : vector<8x128xf32>
    %276 = vector.extract_strided_slice %264 {offsets = [0, 128], sizes = [8, 128], strides = [1, 1]} : vector<8x384xf32> to vector<8x128xf32>
    %277 = vector.extract_strided_slice %267 {offsets = [0, 128], sizes = [8, 128], strides = [1, 1]} : vector<8x384xf32> to vector<8x128xf32>
    %278 = arith.addf %276, %277 : vector<8x128xf32>
    %279 = arith.negf %278 : vector<8x128xf32>
    %280 = math.exp %279 : vector<8x128xf32>
    %cst_84 = arith.constant 1.000000e+00 : f32
    %281 = vector.broadcast %cst_84 : f32 to vector<8x128xf32>
    %282 = arith.addf %281, %280 : vector<8x128xf32>
    %283 = arith.divf %281, %282 : vector<8x128xf32>
    %284 = vector.extract_strided_slice %264 {offsets = [0, 256], sizes = [8, 128], strides = [1, 1]} : vector<8x384xf32> to vector<8x128xf32>
    %285 = vector.extract_strided_slice %267 {offsets = [0, 256], sizes = [8, 128], strides = [1, 1]} : vector<8x384xf32> to vector<8x128xf32>
    %286 = arith.addf %285, %15 : vector<8x128xf32>
    %287 = arith.mulf %275, %286 : vector<8x128xf32>
    %288 = arith.addf %284, %287 : vector<8x128xf32>
    %289 = math.tanh %288 : vector<8x128xf32>
    %290 = arith.subf %257, %289 : vector<8x128xf32>
    %291 = arith.mulf %283, %290 : vector<8x128xf32>
    %292 = arith.addf %289, %291 : vector<8x128xf32>
    %293 = arith.index_cast %c7_i32 : i32 to index
    %c0_85 = arith.constant 0 : index
    %c0_86 = arith.constant 0 : index
    %294 = vector.load %arg7[%293, %c0_85, %c0_86] : memref<8x8x128xf32, #tpu.memory_space<vmem>>, vector<1x8x128xf32>
    %295 = vector.shape_cast %294 : vector<1x8x128xf32> to vector<8x128xf32>
    %296 = vector.shape_cast %292 : vector<8x128xf32> to vector<1x8x128xf32>
    tpu.vector_store %arg7[%293, %c0_85, %c0_86], %296 {strides = array<i32>} : memref<8x8x128xf32, #tpu.memory_space<vmem>>, vector<1x8x128xf32>,
    %c8_i32 = arith.constant 8 : i32
    %c0_87 = arith.constant 0 : index
    %c0_88 = arith.constant 0 : index
    %297 = vector.load %arg8[%c0_87, %c0_88] : memref<8x128xf32, #tpu.memory_space<vmem>>, vector<8x128xf32>
    tpu.vector_store %arg8[%c0_87, %c0_88], %292 {strides = array<i32>} : memref<8x128xf32, #tpu.memory_space<vmem>>, vector<8x128xf32>,
    return
  }
  func.func @transform_0(%arg0: i32, %arg1: i32) -> (i32, i32, i32) {
    %c0_i32 = arith.constant 0 : i32
    %c0_i32_0 = arith.constant 0 : i32
    return %arg1, %arg0, %c0_i32 : i32, i32, i32
  }
  func.func @transform_1(%arg0: i32, %arg1: i32) -> (i32, i32) {
    %c0_i32 = arith.constant 0 : i32
    %c0_i32_0 = arith.constant 0 : i32
    %c0_i32_1 = arith.constant 0 : i32
    return %c0_i32, %c0_i32_0 : i32, i32
  }
  func.func @transform_2(%arg0: i32, %arg1: i32) -> (i32, i32) {
    %c0_i32 = arith.constant 0 : i32
    %c0_i32_0 = arith.constant 0 : i32
    %c0_i32_1 = arith.constant 0 : i32
    return %c0_i32, %c0_i32_0 : i32, i32
  }
  func.func @transform_3(%arg0: i32, %arg1: i32) -> (i32, i32) {
    %c0_i32 = arith.constant 0 : i32
    %c0_i32_0 = arith.constant 0 : i32
    %c0_i32_1 = arith.constant 0 : i32
    return %c0_i32, %c0_i32_0 : i32, i32
  }
  func.func @transform_4(%arg0: i32, %arg1: i32) -> (i32, i32) {
    %c0_i32 = arith.constant 0 : i32
    %c0_i32_0 = arith.constant 0 : i32
    %c0_i32_1 = arith.constant 0 : i32
    return %c0_i32, %c0_i32_0 : i32, i32
  }
  func.func @transform_5(%arg0: i32, %arg1: i32) -> (i32, i32, i32) {
    %c0_i32 = arith.constant 0 : i32
    %c0_i32_0 = arith.constant 0 : i32
    return %arg1, %arg0, %c0_i32 : i32, i32, i32
  }
}

module attributes {stable_mosaic.version = 11 : i64} {
  func.func @gru_chunk_kernel(%arg0: i32, %arg1: i32, %arg2: memref<8x8x128xf32, #tpu.memory_space<vmem>>, %arg3: memref<128x384xbf16, #tpu.memory_space<vmem>>, %arg4: memref<128x384xbf16, #tpu.memory_space<vmem>>, %arg5: memref<1x384xf32, #tpu.memory_space<vmem>>, %arg6: memref<1x128xf32, #tpu.memory_space<vmem>>, %arg7: memref<8x8x128xf32, #tpu.memory_space<vmem>>, %arg8: memref<8x128xf32, #tpu.memory_space<vmem>>, %arg9: memref<8x8x384xf32, #tpu.memory_space<vmem>>) attributes {dimension_semantics = [#tpu.dimension_semantics<parallel>, #tpu.dimension_semantics<arbitrary>], iteration_bounds = array<i64: 1, 1>, scalar_prefetch = 0 : i64, scratch_operands = 2 : i64, tpu.core_type = #tpu.core_type<tc>, window_params = [{transform_indices = @transform_0, window_bounds = array<i64: 8, 8, 128>}, {pipeline_mode = #tpu.pipeline_mode<synchronous>, transform_indices = @transform_1, window_bounds = array<i64: 128, 384>}, {pipeline_mode = #tpu.pipeline_mode<synchronous>, transform_indices = @transform_2, window_bounds = array<i64: 128, 384>}, {pipeline_mode = #tpu.pipeline_mode<synchronous>, transform_indices = @transform_3, window_bounds = array<i64: 1, 384>}, {pipeline_mode = #tpu.pipeline_mode<synchronous>, transform_indices = @transform_4, window_bounds = array<i64: 1, 128>}, {transform_indices = @transform_5, window_bounds = array<i64: 8, 8, 128>}]} {
    %c0_i32 = arith.constant 0 : i32
    %0 = arith.cmpi eq, %arg1, %c0_i32 : i32
    %1 = arith.extui %0 : i1 to i32
    %c0_i32_0 = arith.constant 0 : i32
    %2 = arith.cmpi ne, %1, %c0_i32_0 : i32
    scf.if %2 {
      %cst_89 = arith.constant 0.000000e+00 : f32
      %298 = vector.broadcast %cst_89 : f32 to vector<8x128xf32>
      %c0_90 = arith.constant 0 : index
      %c0_91 = arith.constant 0 : index
      %299 = vector.load %arg8[%c0_90, %c0_91] : memref<8x128xf32, #tpu.memory_space<vmem>>, vector<8x128xf32>
      tpu.vector_store %arg8[%c0_90, %c0_91], %298 {strides = array<i32>} : memref<8x128xf32, #tpu.memory_space<vmem>>, vector<8x128xf32>,
    } else {
    }
    %c0 = arith.constant 0 : index
    %c0_1 = arith.constant 0 : index
    %c0_2 = arith.constant 0 : index
    %3 = vector.load %arg2[%c0, %c0_1, %c0_2] : memref<8x8x128xf32, #tpu.memory_space<vmem>>, vector<8x8x128xf32>
    %4 = vector.shape_cast %3 : vector<8x8x128xf32> to vector<64x128xf32>
    %5 = arith.truncf %4 : vector<64x128xf32> to vector<64x128xbf16>
    %c0_3 = arith.constant 0 : index
    %c0_4 = arith.constant 0 : index
    %6 = vector.load %arg3[%c0_3, %c0_4] : memref<128x384xbf16, #tpu.memory_space<vmem>>, vector<128x384xbf16>
    %cst = arith.constant dense<0.000000e+00> : vector<64x384xf32>
    %7 = tpu.matmul %5, %6, %cst {dimension_numbers = #tpu.dot_dimension_numbers<[1], [0], [0], [1], [0, 0, 1, 1], [], []>} : vector<64x128xbf16>, vector<128x384xbf16>, vector<64x384xf32> -> vector<64x384xf32>
    %c0_5 = arith.constant 0 : index
    %c0_6 = arith.constant 0 : index
    %8 = vector.load %arg5[%c0_5, %c0_6] : memref<1x384xf32, #tpu.memory_space<vmem>>, vector<1x384xf32>
    %9 = vector.broadcast %8 : vector<1x384xf32> to vector<64x384xf32>
    %10 = arith.addf %7, %9 : vector<64x384xf32>
    %11 = vector.shape_cast %10 : vector<64x384xf32> to vector<8x8x384xf32>
    %c0_7 = arith.constant 0 : index
    %c0_8 = arith.constant 0 : index
    %c0_9 = arith.constant 0 : index
    %12 = vector.load %arg9[%c0_7, %c0_8, %c0_9] : memref<8x8x384xf32, #tpu.memory_space<vmem>>, vector<8x8x384xf32>
    tpu.vector_store %arg9[%c0_7, %c0_8, %c0_9], %11 {strides = array<i32>} : memref<8x8x384xf32, #tpu.memory_space<vmem>>, vector<8x8x384xf32>,
    %c0_10 = arith.constant 0 : index
    %c0_11 = arith.constant 0 : index
    %13 = vector.load %arg6[%c0_10, %c0_11] : memref<1x128xf32, #tpu.memory_space<vmem>>, vector<1x128xf32>
    %14 = vector.shape_cast %13 : vector<1x128xf32> to vector<1x128xf32>
    %15 = vector.broadcast %14 : vector<1x128xf32> to vector<8x128xf32>
    %c0_12 = arith.constant 0 : index
    %c0_13 = arith.constant 0 : index
    %16 = vector.load %arg8[%c0_12, %c0_13] : memref<8x128xf32, #tpu.memory_space<vmem>>, vector<8x128xf32>
    %c0_i32_14 = arith.constant 0 : i32
    %17 = arith.index_cast %c0_i32_14 : i32 to index
    %c0_15 = arith.constant 0 : index
    %c0_16 = arith.constant 0 : index
    %18 = vector.load %arg9[%17, %c0_15, %c0_16] : memref<8x8x384xf32, #tpu.memory_space<vmem>>, vector<1x8x384xf32>
    %19 = vector.shape_cast %18 : vector<1x8x384xf32> to vector<8x384xf32>
    %20 = arith.truncf %16 : vector<8x128xf32> to vector<8x128xbf16>
    %c0_17 = arith.constant 0 : index
    %c0_18 = arith.constant 0 : index
    %21 = vector.load %arg4[%c0_17, %c0_18] : memref<128x384xbf16, #tpu.memory_space<vmem>>, vector<128x384xbf16>
    %cst_19 = arith.constant dense<0.000000e+00> : vector<8x384xf32>
    %22 = tpu.matmul %20, %21, %cst_19 {dimension_numbers = #tpu.dot_dimension_numbers<[1], [0], [0], [1], [0, 0, 1, 1], [], []>} : vector<8x128xbf16>, vector<128x384xbf16>, vector<8x384xf32> -> vector<8x384xf32>
    %23 = vector.extract_strided_slice %19 {offsets = [0, 0], sizes = [8, 128], strides = [1, 1]} : vector<8x384xf32> to vector<8x128xf32>
    %24 = vector.extract_strided_slice %22 {offsets = [0, 0], sizes = [8, 128], strides = [1, 1]} : vector<8x384xf32> to vector<8x128xf32>
    %25 = arith.addf %23, %24 : vector<8x128xf32>
    %26 = arith.negf %25 : vector<8x128xf32>
    %27 = math.exp %26 : vector<8x128xf32>
    %cst_20 = arith.constant 1.000000e+00 : f32
    %28 = vector.broadcast %cst_20 : f32 to vector<8x128xf32>
    %29 = arith.addf %28, %27 : vector<8x128xf32>
    %30 = arith.divf %28, %29 : vector<8x128xf32>
    %31 = vector.extract_strided_slice %19 {offsets = [0, 128], sizes = [8, 128], strides = [1, 1]} : vector<8x384xf32> to vector<8x128xf32>
    %32 = vector.extract_strided_slice %22 {offsets = [0, 128], sizes = [8, 128], strides = [1, 1]} : vector<8x384xf32> to vector<8x128xf32>
    %33 = arith.addf %31, %32 : vector<8x128xf32>
    %34 = arith.negf %33 : vector<8x128xf32>
    %35 = math.exp %34 : vector<8x128xf32>
    %cst_21 = arith.constant 1.000000e+00 : f32
    %36 = vector.broadcast %cst_21 : f32 to vector<8x128xf32>
    %37 = arith.addf %36, %35 : vector<8x128xf32>
    %38 = arith.divf %36, %37 : vector<8x128xf32>
    %39 = vector.extract_strided_slice %19 {offsets = [0, 256], sizes = [8, 128], strides = [1, 1]} : vector<8x384xf32> to vector<8x128xf32>
    %40 = vector.extract_strided_slice %22 {offsets = [0, 256], sizes = [8, 128], strides = [1, 1]} : vector<8x384xf32> to vector<8x128xf32>
    %41 = arith.addf %40, %15 : vector<8x128xf32>
    %42 = arith.mulf %30, %41 : vector<8x128xf32>
    %43 = arith.addf %39, %42 : vector<8x128xf32>
    %44 = math.tanh %43 : vector<8x128xf32>
    %45 = arith.subf %16, %44 : vector<8x128xf32>
    %46 = arith.mulf %38, %45 : vector<8x128xf32>
    %47 = arith.addf %44, %46 : vector<8x128xf32>
    %48 = arith.index_cast %c0_i32_14 : i32 to index
    %c0_22 = arith.constant 0 : index
    %c0_23 = arith.constant 0 : index
    %49 = vector.load %arg7[%48, %c0_22, %c0_23] : memref<8x8x128xf32, #tpu.memory_space<vmem>>, vector<1x8x128xf32>
    %50 = vector.shape_cast %49 : vector<1x8x128xf32> to vector<8x128xf32>
    %51 = vector.shape_cast %47 : vector<8x128xf32> to vector<1x8x128xf32>
    tpu.vector_store %arg7[%48, %c0_22, %c0_23], %51 {strides = array<i32>} : memref<8x8x128xf32, #tpu.memory_space<vmem>>, vector<1x8x128xf32>,
    %c1_i32 = arith.constant 1 : i32
    %52 = arith.index_cast %c1_i32 : i32 to index
    %c0_24 = arith.constant 0 : index
    %c0_25 = arith.constant 0 : index
    %53 = vector.load %arg9[%52, %c0_24, %c0_25] : memref<8x8x384xf32, #tpu.memory_space<vmem>>, vector<1x8x384xf32>
    %54 = vector.shape_cast %53 : vector<1x8x384xf32> to vector<8x384xf32>
    %55 = arith.truncf %47 : vector<8x128xf32> to vector<8x128xbf16>
    %c0_26 = arith.constant 0 : index
    %c0_27 = arith.constant 0 : index
    %56 = vector.load %arg4[%c0_26, %c0_27] : memref<128x384xbf16, #tpu.memory_space<vmem>>, vector<128x384xbf16>
    %cst_28 = arith.constant dense<0.000000e+00> : vector<8x384xf32>
    %57 = tpu.matmul %55, %56, %cst_28 {dimension_numbers = #tpu.dot_dimension_numbers<[1], [0], [0], [1], [0, 0, 1, 1], [], []>} : vector<8x128xbf16>, vector<128x384xbf16>, vector<8x384xf32> -> vector<8x384xf32>
    %58 = vector.extract_strided_slice %54 {offsets = [0, 0], sizes = [8, 128], strides = [1, 1]} : vector<8x384xf32> to vector<8x128xf32>
    %59 = vector.extract_strided_slice %57 {offsets = [0, 0], sizes = [8, 128], strides = [1, 1]} : vector<8x384xf32> to vector<8x128xf32>
    %60 = arith.addf %58, %59 : vector<8x128xf32>
    %61 = arith.negf %60 : vector<8x128xf32>
    %62 = math.exp %61 : vector<8x128xf32>
    %cst_29 = arith.constant 1.000000e+00 : f32
    %63 = vector.broadcast %cst_29 : f32 to vector<8x128xf32>
    %64 = arith.addf %63, %62 : vector<8x128xf32>
    %65 = arith.divf %63, %64 : vector<8x128xf32>
    %66 = vector.extract_strided_slice %54 {offsets = [0, 128], sizes = [8, 128], strides = [1, 1]} : vector<8x384xf32> to vector<8x128xf32>
    %67 = vector.extract_strided_slice %57 {offsets = [0, 128], sizes = [8, 128], strides = [1, 1]} : vector<8x384xf32> to vector<8x128xf32>
    %68 = arith.addf %66, %67 : vector<8x128xf32>
    %69 = arith.negf %68 : vector<8x128xf32>
    %70 = math.exp %69 : vector<8x128xf32>
    %cst_30 = arith.constant 1.000000e+00 : f32
    %71 = vector.broadcast %cst_30 : f32 to vector<8x128xf32>
    %72 = arith.addf %71, %70 : vector<8x128xf32>
    %73 = arith.divf %71, %72 : vector<8x128xf32>
    %74 = vector.extract_strided_slice %54 {offsets = [0, 256], sizes = [8, 128], strides = [1, 1]} : vector<8x384xf32> to vector<8x128xf32>
    %75 = vector.extract_strided_slice %57 {offsets = [0, 256], sizes = [8, 128], strides = [1, 1]} : vector<8x384xf32> to vector<8x128xf32>
    %76 = arith.addf %75, %15 : vector<8x128xf32>
    %77 = arith.mulf %65, %76 : vector<8x128xf32>
    %78 = arith.addf %74, %77 : vector<8x128xf32>
    %79 = math.tanh %78 : vector<8x128xf32>
    %80 = arith.subf %47, %79 : vector<8x128xf32>
    %81 = arith.mulf %73, %80 : vector<8x128xf32>
    %82 = arith.addf %79, %81 : vector<8x128xf32>
    %83 = arith.index_cast %c1_i32 : i32 to index
    %c0_31 = arith.constant 0 : index
    %c0_32 = arith.constant 0 : index
    %84 = vector.load %arg7[%83, %c0_31, %c0_32] : memref<8x8x128xf32, #tpu.memory_space<vmem>>, vector<1x8x128xf32>
    %85 = vector.shape_cast %84 : vector<1x8x128xf32> to vector<8x128xf32>
    %86 = vector.shape_cast %82 : vector<8x128xf32> to vector<1x8x128xf32>
    tpu.vector_store %arg7[%83, %c0_31, %c0_32], %86 {strides = array<i32>} : memref<8x8x128xf32, #tpu.memory_space<vmem>>, vector<1x8x128xf32>,
    %c2_i32 = arith.constant 2 : i32
    %87 = arith.index_cast %c2_i32 : i32 to index
    %c0_33 = arith.constant 0 : index
    %c0_34 = arith.constant 0 : index
    %88 = vector.load %arg9[%87, %c0_33, %c0_34] : memref<8x8x384xf32, #tpu.memory_space<vmem>>, vector<1x8x384xf32>
    %89 = vector.shape_cast %88 : vector<1x8x384xf32> to vector<8x384xf32>
    %90 = arith.truncf %82 : vector<8x128xf32> to vector<8x128xbf16>
    %c0_35 = arith.constant 0 : index
    %c0_36 = arith.constant 0 : index
    %91 = vector.load %arg4[%c0_35, %c0_36] : memref<128x384xbf16, #tpu.memory_space<vmem>>, vector<128x384xbf16>
    %cst_37 = arith.constant dense<0.000000e+00> : vector<8x384xf32>
    %92 = tpu.matmul %90, %91, %cst_37 {dimension_numbers = #tpu.dot_dimension_numbers<[1], [0], [0], [1], [0, 0, 1, 1], [], []>} : vector<8x128xbf16>, vector<128x384xbf16>, vector<8x384xf32> -> vector<8x384xf32>
    %93 = vector.extract_strided_slice %89 {offsets = [0, 0], sizes = [8, 128], strides = [1, 1]} : vector<8x384xf32> to vector<8x128xf32>
    %94 = vector.extract_strided_slice %92 {offsets = [0, 0], sizes = [8, 128], strides = [1, 1]} : vector<8x384xf32> to vector<8x128xf32>
    %95 = arith.addf %93, %94 : vector<8x128xf32>
    %96 = arith.negf %95 : vector<8x128xf32>
    %97 = math.exp %96 : vector<8x128xf32>
    %cst_38 = arith.constant 1.000000e+00 : f32
    %98 = vector.broadcast %cst_38 : f32 to vector<8x128xf32>
    %99 = arith.addf %98, %97 : vector<8x128xf32>
    %100 = arith.divf %98, %99 : vector<8x128xf32>
    %101 = vector.extract_strided_slice %89 {offsets = [0, 128], sizes = [8, 128], strides = [1, 1]} : vector<8x384xf32> to vector<8x128xf32>
    %102 = vector.extract_strided_slice %92 {offsets = [0, 128], sizes = [8, 128], strides = [1, 1]} : vector<8x384xf32> to vector<8x128xf32>
    %103 = arith.addf %101, %102 : vector<8x128xf32>
    %104 = arith.negf %103 : vector<8x128xf32>
    %105 = math.exp %104 : vector<8x128xf32>
    %cst_39 = arith.constant 1.000000e+00 : f32
    %106 = vector.broadcast %cst_39 : f32 to vector<8x128xf32>
    %107 = arith.addf %106, %105 : vector<8x128xf32>
    %108 = arith.divf %106, %107 : vector<8x128xf32>
    %109 = vector.extract_strided_slice %89 {offsets = [0, 256], sizes = [8, 128], strides = [1, 1]} : vector<8x384xf32> to vector<8x128xf32>
    %110 = vector.extract_strided_slice %92 {offsets = [0, 256], sizes = [8, 128], strides = [1, 1]} : vector<8x384xf32> to vector<8x128xf32>
    %111 = arith.addf %110, %15 : vector<8x128xf32>
    %112 = arith.mulf %100, %111 : vector<8x128xf32>
    %113 = arith.addf %109, %112 : vector<8x128xf32>
    %114 = math.tanh %113 : vector<8x128xf32>
    %115 = arith.subf %82, %114 : vector<8x128xf32>
    %116 = arith.mulf %108, %115 : vector<8x128xf32>
    %117 = arith.addf %114, %116 : vector<8x128xf32>
    %118 = arith.index_cast %c2_i32 : i32 to index
    %c0_40 = arith.constant 0 : index
    %c0_41 = arith.constant 0 : index
    %119 = vector.load %arg7[%118, %c0_40, %c0_41] : memref<8x8x128xf32, #tpu.memory_space<vmem>>, vector<1x8x128xf32>
    %120 = vector.shape_cast %119 : vector<1x8x128xf32> to vector<8x128xf32>
    %121 = vector.shape_cast %117 : vector<8x128xf32> to vector<1x8x128xf32>
    tpu.vector_store %arg7[%118, %c0_40, %c0_41], %121 {strides = array<i32>} : memref<8x8x128xf32, #tpu.memory_space<vmem>>, vector<1x8x128xf32>,
    %c3_i32 = arith.constant 3 : i32
    %122 = arith.index_cast %c3_i32 : i32 to index
    %c0_42 = arith.constant 0 : index
    %c0_43 = arith.constant 0 : index
    %123 = vector.load %arg9[%122, %c0_42, %c0_43] : memref<8x8x384xf32, #tpu.memory_space<vmem>>, vector<1x8x384xf32>
    %124 = vector.shape_cast %123 : vector<1x8x384xf32> to vector<8x384xf32>
    %125 = arith.truncf %117 : vector<8x128xf32> to vector<8x128xbf16>
    %c0_44 = arith.constant 0 : index
    %c0_45 = arith.constant 0 : index
    %126 = vector.load %arg4[%c0_44, %c0_45] : memref<128x384xbf16, #tpu.memory_space<vmem>>, vector<128x384xbf16>
    %cst_46 = arith.constant dense<0.000000e+00> : vector<8x384xf32>
    %127 = tpu.matmul %125, %126, %cst_46 {dimension_numbers = #tpu.dot_dimension_numbers<[1], [0], [0], [1], [0, 0, 1, 1], [], []>} : vector<8x128xbf16>, vector<128x384xbf16>, vector<8x384xf32> -> vector<8x384xf32>
    %128 = vector.extract_strided_slice %124 {offsets = [0, 0], sizes = [8, 128], strides = [1, 1]} : vector<8x384xf32> to vector<8x128xf32>
    %129 = vector.extract_strided_slice %127 {offsets = [0, 0], sizes = [8, 128], strides = [1, 1]} : vector<8x384xf32> to vector<8x128xf32>
    %130 = arith.addf %128, %129 : vector<8x128xf32>
    %131 = arith.negf %130 : vector<8x128xf32>
    %132 = math.exp %131 : vector<8x128xf32>
    %cst_47 = arith.constant 1.000000e+00 : f32
    %133 = vector.broadcast %cst_47 : f32 to vector<8x128xf32>
    %134 = arith.addf %133, %132 : vector<8x128xf32>
    %135 = arith.divf %133, %134 : vector<8x128xf32>
    %136 = vector.extract_strided_slice %124 {offsets = [0, 128], sizes = [8, 128], strides = [1, 1]} : vector<8x384xf32> to vector<8x128xf32>
    %137 = vector.extract_strided_slice %127 {offsets = [0, 128], sizes = [8, 128], strides = [1, 1]} : vector<8x384xf32> to vector<8x128xf32>
    %138 = arith.addf %136, %137 : vector<8x128xf32>
    %139 = arith.negf %138 : vector<8x128xf32>
    %140 = math.exp %139 : vector<8x128xf32>
    %cst_48 = arith.constant 1.000000e+00 : f32
    %141 = vector.broadcast %cst_48 : f32 to vector<8x128xf32>
    %142 = arith.addf %141, %140 : vector<8x128xf32>
    %143 = arith.divf %141, %142 : vector<8x128xf32>
    %144 = vector.extract_strided_slice %124 {offsets = [0, 256], sizes = [8, 128], strides = [1, 1]} : vector<8x384xf32> to vector<8x128xf32>
    %145 = vector.extract_strided_slice %127 {offsets = [0, 256], sizes = [8, 128], strides = [1, 1]} : vector<8x384xf32> to vector<8x128xf32>
    %146 = arith.addf %145, %15 : vector<8x128xf32>
    %147 = arith.mulf %135, %146 : vector<8x128xf32>
    %148 = arith.addf %144, %147 : vector<8x128xf32>
    %149 = math.tanh %148 : vector<8x128xf32>
    %150 = arith.subf %117, %149 : vector<8x128xf32>
    %151 = arith.mulf %143, %150 : vector<8x128xf32>
    %152 = arith.addf %149, %151 : vector<8x128xf32>
    %153 = arith.index_cast %c3_i32 : i32 to index
    %c0_49 = arith.constant 0 : index
    %c0_50 = arith.constant 0 : index
    %154 = vector.load %arg7[%153, %c0_49, %c0_50] : memref<8x8x128xf32, #tpu.memory_space<vmem>>, vector<1x8x128xf32>
    %155 = vector.shape_cast %154 : vector<1x8x128xf32> to vector<8x128xf32>
    %156 = vector.shape_cast %152 : vector<8x128xf32> to vector<1x8x128xf32>
    tpu.vector_store %arg7[%153, %c0_49, %c0_50], %156 {strides = array<i32>} : memref<8x8x128xf32, #tpu.memory_space<vmem>>, vector<1x8x128xf32>,
    %c4_i32 = arith.constant 4 : i32
    %157 = arith.index_cast %c4_i32 : i32 to index
    %c0_51 = arith.constant 0 : index
    %c0_52 = arith.constant 0 : index
    %158 = vector.load %arg9[%157, %c0_51, %c0_52] : memref<8x8x384xf32, #tpu.memory_space<vmem>>, vector<1x8x384xf32>
    %159 = vector.shape_cast %158 : vector<1x8x384xf32> to vector<8x384xf32>
    %160 = arith.truncf %152 : vector<8x128xf32> to vector<8x128xbf16>
    %c0_53 = arith.constant 0 : index
    %c0_54 = arith.constant 0 : index
    %161 = vector.load %arg4[%c0_53, %c0_54] : memref<128x384xbf16, #tpu.memory_space<vmem>>, vector<128x384xbf16>
    %cst_55 = arith.constant dense<0.000000e+00> : vector<8x384xf32>
    %162 = tpu.matmul %160, %161, %cst_55 {dimension_numbers = #tpu.dot_dimension_numbers<[1], [0], [0], [1], [0, 0, 1, 1], [], []>} : vector<8x128xbf16>, vector<128x384xbf16>, vector<8x384xf32> -> vector<8x384xf32>
    %163 = vector.extract_strided_slice %159 {offsets = [0, 0], sizes = [8, 128], strides = [1, 1]} : vector<8x384xf32> to vector<8x128xf32>
    %164 = vector.extract_strided_slice %162 {offsets = [0, 0], sizes = [8, 128], strides = [1, 1]} : vector<8x384xf32> to vector<8x128xf32>
    %165 = arith.addf %163, %164 : vector<8x128xf32>
    %166 = arith.negf %165 : vector<8x128xf32>
    %167 = math.exp %166 : vector<8x128xf32>
    %cst_56 = arith.constant 1.000000e+00 : f32
    %168 = vector.broadcast %cst_56 : f32 to vector<8x128xf32>
    %169 = arith.addf %168, %167 : vector<8x128xf32>
    %170 = arith.divf %168, %169 : vector<8x128xf32>
    %171 = vector.extract_strided_slice %159 {offsets = [0, 128], sizes = [8, 128], strides = [1, 1]} : vector<8x384xf32> to vector<8x128xf32>
    %172 = vector.extract_strided_slice %162 {offsets = [0, 128], sizes = [8, 128], strides = [1, 1]} : vector<8x384xf32> to vector<8x128xf32>
    %173 = arith.addf %171, %172 : vector<8x128xf32>
    %174 = arith.negf %173 : vector<8x128xf32>
    %175 = math.exp %174 : vector<8x128xf32>
    %cst_57 = arith.constant 1.000000e+00 : f32
    %176 = vector.broadcast %cst_57 : f32 to vector<8x128xf32>
    %177 = arith.addf %176, %175 : vector<8x128xf32>
    %178 = arith.divf %176, %177 : vector<8x128xf32>
    %179 = vector.extract_strided_slice %159 {offsets = [0, 256], sizes = [8, 128], strides = [1, 1]} : vector<8x384xf32> to vector<8x128xf32>
    %180 = vector.extract_strided_slice %162 {offsets = [0, 256], sizes = [8, 128], strides = [1, 1]} : vector<8x384xf32> to vector<8x128xf32>
    %181 = arith.addf %180, %15 : vector<8x128xf32>
    %182 = arith.mulf %170, %181 : vector<8x128xf32>
    %183 = arith.addf %179, %182 : vector<8x128xf32>
    %184 = math.tanh %183 : vector<8x128xf32>
    %185 = arith.subf %152, %184 : vector<8x128xf32>
    %186 = arith.mulf %178, %185 : vector<8x128xf32>
    %187 = arith.addf %184, %186 : vector<8x128xf32>
    %188 = arith.index_cast %c4_i32 : i32 to index
    %c0_58 = arith.constant 0 : index
    %c0_59 = arith.constant 0 : index
    %189 = vector.load %arg7[%188, %c0_58, %c0_59] : memref<8x8x128xf32, #tpu.memory_space<vmem>>, vector<1x8x128xf32>
    %190 = vector.shape_cast %189 : vector<1x8x128xf32> to vector<8x128xf32>
    %191 = vector.shape_cast %187 : vector<8x128xf32> to vector<1x8x128xf32>
    tpu.vector_store %arg7[%188, %c0_58, %c0_59], %191 {strides = array<i32>} : memref<8x8x128xf32, #tpu.memory_space<vmem>>, vector<1x8x128xf32>,
    %c5_i32 = arith.constant 5 : i32
    %192 = arith.index_cast %c5_i32 : i32 to index
    %c0_60 = arith.constant 0 : index
    %c0_61 = arith.constant 0 : index
    %193 = vector.load %arg9[%192, %c0_60, %c0_61] : memref<8x8x384xf32, #tpu.memory_space<vmem>>, vector<1x8x384xf32>
    %194 = vector.shape_cast %193 : vector<1x8x384xf32> to vector<8x384xf32>
    %195 = arith.truncf %187 : vector<8x128xf32> to vector<8x128xbf16>
    %c0_62 = arith.constant 0 : index
    %c0_63 = arith.constant 0 : index
    %196 = vector.load %arg4[%c0_62, %c0_63] : memref<128x384xbf16, #tpu.memory_space<vmem>>, vector<128x384xbf16>
    %cst_64 = arith.constant dense<0.000000e+00> : vector<8x384xf32>
    %197 = tpu.matmul %195, %196, %cst_64 {dimension_numbers = #tpu.dot_dimension_numbers<[1], [0], [0], [1], [0, 0, 1, 1], [], []>} : vector<8x128xbf16>, vector<128x384xbf16>, vector<8x384xf32> -> vector<8x384xf32>
    %198 = vector.extract_strided_slice %194 {offsets = [0, 0], sizes = [8, 128], strides = [1, 1]} : vector<8x384xf32> to vector<8x128xf32>
    %199 = vector.extract_strided_slice %197 {offsets = [0, 0], sizes = [8, 128], strides = [1, 1]} : vector<8x384xf32> to vector<8x128xf32>
    %200 = arith.addf %198, %199 : vector<8x128xf32>
    %201 = arith.negf %200 : vector<8x128xf32>
    %202 = math.exp %201 : vector<8x128xf32>
    %cst_65 = arith.constant 1.000000e+00 : f32
    %203 = vector.broadcast %cst_65 : f32 to vector<8x128xf32>
    %204 = arith.addf %203, %202 : vector<8x128xf32>
    %205 = arith.divf %203, %204 : vector<8x128xf32>
    %206 = vector.extract_strided_slice %194 {offsets = [0, 128], sizes = [8, 128], strides = [1, 1]} : vector<8x384xf32> to vector<8x128xf32>
    %207 = vector.extract_strided_slice %197 {offsets = [0, 128], sizes = [8, 128], strides = [1, 1]} : vector<8x384xf32> to vector<8x128xf32>
    %208 = arith.addf %206, %207 : vector<8x128xf32>
    %209 = arith.negf %208 : vector<8x128xf32>
    %210 = math.exp %209 : vector<8x128xf32>
    %cst_66 = arith.constant 1.000000e+00 : f32
    %211 = vector.broadcast %cst_66 : f32 to vector<8x128xf32>
    %212 = arith.addf %211, %210 : vector<8x128xf32>
    %213 = arith.divf %211, %212 : vector<8x128xf32>
    %214 = vector.extract_strided_slice %194 {offsets = [0, 256], sizes = [8, 128], strides = [1, 1]} : vector<8x384xf32> to vector<8x128xf32>
    %215 = vector.extract_strided_slice %197 {offsets = [0, 256], sizes = [8, 128], strides = [1, 1]} : vector<8x384xf32> to vector<8x128xf32>
    %216 = arith.addf %215, %15 : vector<8x128xf32>
    %217 = arith.mulf %205, %216 : vector<8x128xf32>
    %218 = arith.addf %214, %217 : vector<8x128xf32>
    %219 = math.tanh %218 : vector<8x128xf32>
    %220 = arith.subf %187, %219 : vector<8x128xf32>
    %221 = arith.mulf %213, %220 : vector<8x128xf32>
    %222 = arith.addf %219, %221 : vector<8x128xf32>
    %223 = arith.index_cast %c5_i32 : i32 to index
    %c0_67 = arith.constant 0 : index
    %c0_68 = arith.constant 0 : index
    %224 = vector.load %arg7[%223, %c0_67, %c0_68] : memref<8x8x128xf32, #tpu.memory_space<vmem>>, vector<1x8x128xf32>
    %225 = vector.shape_cast %224 : vector<1x8x128xf32> to vector<8x128xf32>
    %226 = vector.shape_cast %222 : vector<8x128xf32> to vector<1x8x128xf32>
    tpu.vector_store %arg7[%223, %c0_67, %c0_68], %226 {strides = array<i32>} : memref<8x8x128xf32, #tpu.memory_space<vmem>>, vector<1x8x128xf32>,
    %c6_i32 = arith.constant 6 : i32
    %227 = arith.index_cast %c6_i32 : i32 to index
    %c0_69 = arith.constant 0 : index
    %c0_70 = arith.constant 0 : index
    %228 = vector.load %arg9[%227, %c0_69, %c0_70] : memref<8x8x384xf32, #tpu.memory_space<vmem>>, vector<1x8x384xf32>
    %229 = vector.shape_cast %228 : vector<1x8x384xf32> to vector<8x384xf32>
    %230 = arith.truncf %222 : vector<8x128xf32> to vector<8x128xbf16>
    %c0_71 = arith.constant 0 : index
    %c0_72 = arith.constant 0 : index
    %231 = vector.load %arg4[%c0_71, %c0_72] : memref<128x384xbf16, #tpu.memory_space<vmem>>, vector<128x384xbf16>
    %cst_73 = arith.constant dense<0.000000e+00> : vector<8x384xf32>
    %232 = tpu.matmul %230, %231, %cst_73 {dimension_numbers = #tpu.dot_dimension_numbers<[1], [0], [0], [1], [0, 0, 1, 1], [], []>} : vector<8x128xbf16>, vector<128x384xbf16>, vector<8x384xf32> -> vector<8x384xf32>
    %233 = vector.extract_strided_slice %229 {offsets = [0, 0], sizes = [8, 128], strides = [1, 1]} : vector<8x384xf32> to vector<8x128xf32>
    %234 = vector.extract_strided_slice %232 {offsets = [0, 0], sizes = [8, 128], strides = [1, 1]} : vector<8x384xf32> to vector<8x128xf32>
    %235 = arith.addf %233, %234 : vector<8x128xf32>
    %236 = arith.negf %235 : vector<8x128xf32>
    %237 = math.exp %236 : vector<8x128xf32>
    %cst_74 = arith.constant 1.000000e+00 : f32
    %238 = vector.broadcast %cst_74 : f32 to vector<8x128xf32>
    %239 = arith.addf %238, %237 : vector<8x128xf32>
    %240 = arith.divf %238, %239 : vector<8x128xf32>
    %241 = vector.extract_strided_slice %229 {offsets = [0, 128], sizes = [8, 128], strides = [1, 1]} : vector<8x384xf32> to vector<8x128xf32>
    %242 = vector.extract_strided_slice %232 {offsets = [0, 128], sizes = [8, 128], strides = [1, 1]} : vector<8x384xf32> to vector<8x128xf32>
    %243 = arith.addf %241, %242 : vector<8x128xf32>
    %244 = arith.negf %243 : vector<8x128xf32>
    %245 = math.exp %244 : vector<8x128xf32>
    %cst_75 = arith.constant 1.000000e+00 : f32
    %246 = vector.broadcast %cst_75 : f32 to vector<8x128xf32>
    %247 = arith.addf %246, %245 : vector<8x128xf32>
    %248 = arith.divf %246, %247 : vector<8x128xf32>
    %249 = vector.extract_strided_slice %229 {offsets = [0, 256], sizes = [8, 128], strides = [1, 1]} : vector<8x384xf32> to vector<8x128xf32>
    %250 = vector.extract_strided_slice %232 {offsets = [0, 256], sizes = [8, 128], strides = [1, 1]} : vector<8x384xf32> to vector<8x128xf32>
    %251 = arith.addf %250, %15 : vector<8x128xf32>
    %252 = arith.mulf %240, %251 : vector<8x128xf32>
    %253 = arith.addf %249, %252 : vector<8x128xf32>
    %254 = math.tanh %253 : vector<8x128xf32>
    %255 = arith.subf %222, %254 : vector<8x128xf32>
    %256 = arith.mulf %248, %255 : vector<8x128xf32>
    %257 = arith.addf %254, %256 : vector<8x128xf32>
    %258 = arith.index_cast %c6_i32 : i32 to index
    %c0_76 = arith.constant 0 : index
    %c0_77 = arith.constant 0 : index
    %259 = vector.load %arg7[%258, %c0_76, %c0_77] : memref<8x8x128xf32, #tpu.memory_space<vmem>>, vector<1x8x128xf32>
    %260 = vector.shape_cast %259 : vector<1x8x128xf32> to vector<8x128xf32>
    %261 = vector.shape_cast %257 : vector<8x128xf32> to vector<1x8x128xf32>
    tpu.vector_store %arg7[%258, %c0_76, %c0_77], %261 {strides = array<i32>} : memref<8x8x128xf32, #tpu.memory_space<vmem>>, vector<1x8x128xf32>,
    %c7_i32 = arith.constant 7 : i32
    %262 = arith.index_cast %c7_i32 : i32 to index
    %c0_78 = arith.constant 0 : index
    %c0_79 = arith.constant 0 : index
    %263 = vector.load %arg9[%262, %c0_78, %c0_79] : memref<8x8x384xf32, #tpu.memory_space<vmem>>, vector<1x8x384xf32>
    %264 = vector.shape_cast %263 : vector<1x8x384xf32> to vector<8x384xf32>
    %265 = arith.truncf %257 : vector<8x128xf32> to vector<8x128xbf16>
    %c0_80 = arith.constant 0 : index
    %c0_81 = arith.constant 0 : index
    %266 = vector.load %arg4[%c0_80, %c0_81] : memref<128x384xbf16, #tpu.memory_space<vmem>>, vector<128x384xbf16>
    %cst_82 = arith.constant dense<0.000000e+00> : vector<8x384xf32>
    %267 = tpu.matmul %265, %266, %cst_82 {dimension_numbers = #tpu.dot_dimension_numbers<[1], [0], [0], [1], [0, 0, 1, 1], [], []>} : vector<8x128xbf16>, vector<128x384xbf16>, vector<8x384xf32> -> vector<8x384xf32>
    %268 = vector.extract_strided_slice %264 {offsets = [0, 0], sizes = [8, 128], strides = [1, 1]} : vector<8x384xf32> to vector<8x128xf32>
    %269 = vector.extract_strided_slice %267 {offsets = [0, 0], sizes = [8, 128], strides = [1, 1]} : vector<8x384xf32> to vector<8x128xf32>
    %270 = arith.addf %268, %269 : vector<8x128xf32>
    %271 = arith.negf %270 : vector<8x128xf32>
    %272 = math.exp %271 : vector<8x128xf32>
    %cst_83 = arith.constant 1.000000e+00 : f32
    %273 = vector.broadcast %cst_83 : f32 to vector<8x128xf32>
    %274 = arith.addf %273, %272 : vector<8x128xf32>
    %275 = arith.divf %273, %274 : vector<8x128xf32>
    %276 = vector.extract_strided_slice %264 {offsets = [0, 128], sizes = [8, 128], strides = [1, 1]} : vector<8x384xf32> to vector<8x128xf32>
    %277 = vector.extract_strided_slice %267 {offsets = [0, 128], sizes = [8, 128], strides = [1, 1]} : vector<8x384xf32> to vector<8x128xf32>
    %278 = arith.addf %276, %277 : vector<8x128xf32>
    %279 = arith.negf %278 : vector<8x128xf32>
    %280 = math.exp %279 : vector<8x128xf32>
    %cst_84 = arith.constant 1.000000e+00 : f32
    %281 = vector.broadcast %cst_84 : f32 to vector<8x128xf32>
    %282 = arith.addf %281, %280 : vector<8x128xf32>
    %283 = arith.divf %281, %282 : vector<8x128xf32>
    %284 = vector.extract_strided_slice %264 {offsets = [0, 256], sizes = [8, 128], strides = [1, 1]} : vector<8x384xf32> to vector<8x128xf32>
    %285 = vector.extract_strided_slice %267 {offsets = [0, 256], sizes = [8, 128], strides = [1, 1]} : vector<8x384xf32> to vector<8x128xf32>
    %286 = arith.addf %285, %15 : vector<8x128xf32>
    %287 = arith.mulf %275, %286 : vector<8x128xf32>
    %288 = arith.addf %284, %287 : vector<8x128xf32>
    %289 = math.tanh %288 : vector<8x128xf32>
    %290 = arith.subf %257, %289 : vector<8x128xf32>
    %291 = arith.mulf %283, %290 : vector<8x128xf32>
    %292 = arith.addf %289, %291 : vector<8x128xf32>
    %293 = arith.index_cast %c7_i32 : i32 to index
    %c0_85 = arith.constant 0 : index
    %c0_86 = arith.constant 0 : index
    %294 = vector.load %arg7[%293, %c0_85, %c0_86] : memref<8x8x128xf32, #tpu.memory_space<vmem>>, vector<1x8x128xf32>
    %295 = vector.shape_cast %294 : vector<1x8x128xf32> to vector<8x128xf32>
    %296 = vector.shape_cast %292 : vector<8x128xf32> to vector<1x8x128xf32>
    tpu.vector_store %arg7[%293, %c0_85, %c0_86], %296 {strides = array<i32>} : memref<8x8x128xf32, #tpu.memory_space<vmem>>, vector<1x8x128xf32>,
    %c8_i32 = arith.constant 8 : i32
    %c0_87 = arith.constant 0 : index
    %c0_88 = arith.constant 0 : index
    %297 = vector.load %arg8[%c0_87, %c0_88] : memref<8x128xf32, #tpu.memory_space<vmem>>, vector<8x128xf32>
    tpu.vector_store %arg8[%c0_87, %c0_88], %292 {strides = array<i32>} : memref<8x128xf32, #tpu.memory_space<vmem>>, vector<8x128xf32>,
    return
  }
  func.func @transform_0(%arg0: i32, %arg1: i32) -> (i32, i32, i32) {
    %c0_i32 = arith.constant 0 : i32
    %c0_i32_0 = arith.constant 0 : i32
    return %arg1, %arg0, %c0_i32 : i32, i32, i32
  }
  func.func @transform_1(%arg0: i32, %arg1: i32) -> (i32, i32) {
    %c0_i32 = arith.constant 0 : i32
    %c0_i32_0 = arith.constant 0 : i32
    %c0_i32_1 = arith.constant 0 : i32
    return %c0_i32, %c0_i32_0 : i32, i32
  }
  func.func @transform_2(%arg0: i32, %arg1: i32) -> (i32, i32) {
    %c0_i32 = arith.constant 0 : i32
    %c0_i32_0 = arith.constant 0 : i32
    %c0_i32_1 = arith.constant 0 : i32
    return %c0_i32, %c0_i32_0 : i32, i32
  }
  func.func @transform_3(%arg0: i32, %arg1: i32) -> (i32, i32) {
    %c0_i32 = arith.constant 0 : i32
    %c0_i32_0 = arith.constant 0 : i32
    %c0_i32_1 = arith.constant 0 : i32
    return %c0_i32, %c0_i32_0 : i32, i32
  }
  func.func @transform_4(%arg0: i32, %arg1: i32) -> (i32, i32) {
    %c0_i32 = arith.constant 0 : i32
    %c0_i32_0 = arith.constant 0 : i32
    %c0_i32_1 = arith.constant 0 : i32
    return %c0_i32, %c0_i32_0 : i32, i32
  }
  func.func @transform_5(%arg0: i32, %arg1: i32) -> (i32, i32, i32) {
    %c0_i32 = arith.constant 0 : i32
    %c0_i32_0 = arith.constant 0 : i32
    return %arg1, %arg0, %c0_i32 : i32, i32, i32
  }
}

</mosaic_0001>

<llo_original>
// kernel: tpu_custom_call.1
$region0: #{tpu_custom_call.1}
  #allocation0 [shape = 'u32[]', space=smem, size = 0x4, offset = 0x4, fixed_abs, tag = 'smem constant byte address 0x4 - core index']
  #allocation1 [shape = 'u32[144,128]{1,0:T(1,128)}', space=vmem, size = 0x12000, scoped, tag = 'internal scratch']
  #allocation2 [shape = 'f32[8,128]{1,0:T(8,128)}', space=vmem, size = 0x1000, scoped, tag = 'scratch operand']
  #allocation3 [shape = 'f32[8,8,384]{2,1,0:T(8,128)}', space=vmem, size = 0x18000, scoped, tag = 'scratch operand']
  %s0 = inlined_call_operand.hbm [shape: f32[8,8,128], index: 0, kind: input, shape index: {}]
  %s1 = inlined_call_operand.hbm [shape: bf16[128,384], index: 1, kind: input, shape index: {}]
  %s2 = inlined_call_operand.hbm [shape: bf16[128,384], index: 2, kind: input, shape index: {}]
  %s3 = inlined_call_operand.vmem [shape: f32[1,384], index: 3, kind: input, shape index: {}]
  %s4 = inlined_call_operand.vmem [shape: f32[1,128], index: 4, kind: input, shape index: {}]
  %s5 = inlined_call_operand.hbm [shape: f32[8,8,128], index: 5, kind: output, shape index: {}]
  %s6 = sld [smem:[#allocation0]]
  $region46: #{tpu_custom_call.1} parent=0
    _
  %s8 = ssub.s32 1, %s6
  %s9 = scalar_select 0, %s8, %s6
  $region1: #{tpu_custom_call.1} parent=0
    #allocation4 [shape = 'u8[32768]{0}', space=vmem, size = 0x8000, scoped, tag = 'input window, operand 0, single buffered']
    #allocation5 [shape = 's32[1]{0}', space=sflag, size = 0x4, scoped, tag = 'scoped memory for tpu_custom_call.1']
    #allocation6 [shape = 's32[1]{0}', space=sflag, size = 0x4, scoped, tag = 'scoped memory for tpu_custom_call.1']
    #allocation7 [shape = 'u8[98304]{0}', space=vmem, size = 0x18000, scoped, tag = 'input window, operand 1, single buffered']
    #allocation8 [shape = 's32[1]{0}', space=sflag, size = 0x4, scoped, tag = 'scoped memory for tpu_custom_call.1']
    #allocation9 [shape = 'u8[98304]{0}', space=vmem, size = 0x18000, scoped, tag = 'input window, operand 2, single buffered']
    #allocation10 [shape = 'u8[32768]{0}', space=vmem, size = 0x8000, scoped, tag = 'output window, operand 0, single buffered']
    %10 = vsyncpa [#allocation5], 0
    %11 = vsyncpa [#allocation8], 0
    %12 = vsyncpa [#allocation6], 0
    // Predicated region
    $region2: #{tpu_custom_call.1} parent=1 // pred_check
      _
    $region3: #{tpu_custom_call.1} parent=1 // pred_check_branch
      %14 = sbr.rel (0) target = $region5
    $region4: #{tpu_custom_call.1} parent=1 // pred_region
      %s16 = ssub.s32 1024, 1024
      %17 = vsyncadd [#allocation5], %s16
      %s18 = sshll.u32 [#allocation4], 4
      %s19 = int_to_ptr.vmem [resolvable:$true] %s18
      %24 = dma.hbm_to_vmem [thread:$0]  %s0, 1024, %s19, [#allocation5], 128, 128, 8
    $region5: #{tpu_custom_call.1} parent=1 // pred_fallthru
      _
    // Predicated region
    $region6: #{tpu_custom_call.1} parent=1 // pred_check
      _
    $region7: #{tpu_custom_call.1} parent=1 // pred_check_branch
      %26 = sbr.rel (0) target = $region9
    $region8: #{tpu_custom_call.1} parent=1 // pred_region
      %s28 = ssub.s32 3072, 3072
      %29 = vsyncadd [#allocation8], %s28
      %s30 = sshll.u32 [#allocation7], 4
      %s31 = int_to_ptr.vmem [resolvable:$true] %s30
      %36 = dma.hbm_to_vmem [thread:$0]  %s1, 3072, %s31, [#allocation8], 192, 192, 12
    $region9: #{tpu_custom_call.1} parent=1 // pred_fallthru
      _
    // Predicated region
    $region10: #{tpu_custom_call.1} parent=1 // pred_check
      _
    $region11: #{tpu_custom_call.1} parent=1 // pred_check_branch
      %38 = sbr.rel (0) target = $region13
    $region12: #{tpu_custom_call.1} parent=1 // pred_region
      %s40 = ssub.s32 3072, 3072
      %41 = vsyncadd [#allocation8], %s40
      %s42 = sshll.u32 [#allocation9], 4
      %s43 = int_to_ptr.vmem [resolvable:$true] %s42
      %48 = dma.hbm_to_vmem [thread:$0]  %s2, 3072, %s43, [#allocation8], 192, 192, 12
    $region13: #{tpu_custom_call.1} parent=1 // pred_fallthru
      _
    // Predicated region
    $region14: #{tpu_custom_call.1} parent=1 // pred_check
      _
    $region15: #{tpu_custom_call.1} parent=1 // pred_check_branch
      %50 = sbr.rel (0) target = $region17
    $region16: #{tpu_custom_call.1} parent=1 // pred_region
      _
    $region17: #{tpu_custom_call.1} parent=1 // pred_fallthru
      _
    // Predicated region
    $region18: #{tpu_custom_call.1} parent=1 // pred_check
      _
    $region19: #{tpu_custom_call.1} parent=1 // pred_check_branch
      %52 = sbr.rel (0) target = $region21
    $region20: #{tpu_custom_call.1} parent=1 // pred_region
      _
    $region21: #{tpu_custom_call.1} parent=1 // pred_fallthru
      _
    // Predicated region
    $region22: #{tpu_custom_call.1} parent=1 // pred_check
      _
    $region23: #{tpu_custom_call.1} parent=1 // pred_check_branch
      %54 = sbr.rel (0) target = $region25
    $region24: #{tpu_custom_call.1} parent=1 // pred_region
      %55 = dma.done [#allocation5], 1024
    $region25: #{tpu_custom_call.1} parent=1 // pred_fallthru
      _
    // Predicated region
    $region26: #{tpu_custom_call.1} parent=1 // pred_check
      _
    $region27: #{tpu_custom_call.1} parent=1 // pred_check_branch
      %57 = sbr.rel (0) target = $region29
    $region28: #{tpu_custom_call.1} parent=1 // pred_region
      %58 = dma.done [#allocation8], 3072
    $region29: #{tpu_custom_call.1} parent=1 // pred_fallthru
      _
    // Predicated region
    $region30: #{tpu_custom_call.1} parent=1 // pred_check
      _
    $region31: #{tpu_custom_call.1} parent=1 // pred_check_branch
      %60 = sbr.rel (0) target = $region33
    $region32: #{tpu_custom_call.1} parent=1 // pred_region
      %61 = dma.done [#allocation8], 3072
    $region33: #{tpu_custom_call.1} parent=1 // pred_fallthru
      _
    %p63 = scmp.eq.s32.totalorder 0, 0
    // Predicated region
    $region34: #{tpu_custom_call.1} parent=1 // pred_check
      %p64 = pneg %p63
    $region35: #{tpu_custom_call.1} parent=1 // pred_check_branch
      %66 = sbr.rel (%p64) target = $region37
    $region36: #{tpu_custom_call.1} parent=1 // pred_region
      %67 = vst [vmem:[#allocation2] sm:$0xff] 0.0
    $region37: #{tpu_custom_call.1} parent=1 // pred_fallthru
      _
    %v68 = vld [vmem:[#allocation4] sm:$0xff]
    %v69 = vld [vmem:[#allocation4 + $0x8] sm:$0xff]
    %v70 = vld [vmem:[#allocation4 + $0x10] sm:$0xff]
    %v71 = vld [vmem:[#allocation4 + $0x18] sm:$0xff]
    %v72 = vld [vmem:[#allocation4 + $0x20] sm:$0xff]
    %v73 = vld [vmem:[#allocation4 + $0x28] sm:$0xff]
    %v74 = vld [vmem:[#allocation4 + $0x30] sm:$0xff]
    %v75 = vld [vmem:[#allocation4 + $0x38] sm:$0xff]
    %v76 = vpack.c.bf16 %v69, %v68
    %v77 = vpack.c.bf16 %v71, %v70
    %v78 = vpack.c.bf16 %v73, %v72
    %v79 = vpack.c.bf16 %v75, %v74
    %v80 = vld [vmem:[#allocation7] sm:$0xff]
    %v81 = vld [vmem:[#allocation7 + $0x8] sm:$0xf]
    %v82 = vld [vmem:[#allocation7 + $0xc] sm:$0xff]
    %v83 = vld [vmem:[#allocation7 + $0x14] sm:$0xf]
    %v84 = vld [vmem:[#allocation7 + $0x18] sm:$0xff]
    %v85 = vld [vmem:[#allocation7 + $0x20] sm:$0xf]
    %v86 = vld [vmem:[#allocation7 + $0x24] sm:$0xff]
    %v87 = vld [vmem:[#allocation7 + $0x2c] sm:$0xf]
    %v88 = vld [vmem:[#allocation7 + $0x30] sm:$0xff]
    %v89 = vld [vmem:[#allocation7 + $0x38] sm:$0xf]
    %v90 = vld [vmem:[#allocation7 + $0x3c] sm:$0xff]
    %v91 = vld [vmem:[#allocation7 + $0x44] sm:$0xf]
    %v92 = vld [vmem:[#allocation7 + $0x48] sm:$0xff]
    %v93 = vld [vmem:[#allocation7 + $0x50] sm:$0xf]
    %v94 = vld [vmem:[#allocation7 + $0x54] sm:$0xff]
    %v95 = vld [vmem:[#allocation7 + $0x5c] sm:$0xf]
    %v96 = vld [vmem:[#allocation7 + $0x60] sm:$0xff]
    %v97 = vld [vmem:[#allocation7 + $0x68] sm:$0xf]
    %v98 = vld [vmem:[#allocation7 + $0x6c] sm:$0xff]
    %v99 = vld [vmem:[#allocation7 + $0x74] sm:$0xf]
    %v100 = vld [vmem:[#allocation7 + $0x78] sm:$0xff]
    %v101 = vld [vmem:[#allocation7 + $0x80] sm:$0xf]
    %v102 = vld [vmem:[#allocation7 + $0x84] sm:$0xff]
    %v103 = vld [vmem:[#allocation7 + $0x8c] sm:$0xf]
    %v104 = vld [vmem:[#allocation7 + $0x90] sm:$0xff]
    %v105 = vld [vmem:[#allocation7 + $0x98] sm:$0xf]
    %v106 = vld [vmem:[#allocation7 + $0x9c] sm:$0xff]
    %v107 = vld [vmem:[#allocation7 + $0xa4] sm:$0xf]
    %v108 = vld [vmem:[#allocation7 + $0xa8] sm:$0xff]
    %v109 = vld [vmem:[#allocation7 + $0xb0] sm:$0xf]
    %v110 = vld [vmem:[#allocation7 + $0xb4] sm:$0xff]
    %v111 = vld [vmem:[#allocation7 + $0xbc] sm:$0xf]
    %v112 = vld [vmem:[%s3] sm:$0x7]
    %v114 = vlaneseq
    %v115 = vshrl.u32 %v114, 7
    %v116 = vsub.s32 0, %v115
    %v117 = vrot.slane %v112, %v116
    %v118 = vlaneseq
    %v119 = vshrl.u32 %v118, 7
    %v120 = vsub.s32 1, %v119
    %v121 = vrot.slane %v112, %v120
    %v122 = vlaneseq
    %v123 = vshrl.u32 %v122, 7
    %v124 = vsub.s32 2, %v123
    %v125 = vrot.slane %v112, %v124
    %v161 = vunpack.c.l.b16 %v80
    %v162 = vunpack.c.h.b16 %v80
    %v163 = vunpack.c.l.b16 %v81
    %v164 = vunpack.c.l.b16 %v82
    %v165 = vunpack.c.h.b16 %v82
    %v166 = vunpack.c.l.b16 %v83
    %v167 = vunpack.c.l.b16 %v84
    %v168 = vunpack.c.h.b16 %v84
    %v169 = vunpack.c.l.b16 %v85
    %v170 = vunpack.c.l.b16 %v86
    %v171 = vunpack.c.h.b16 %v86
    %v172 = vunpack.c.l.b16 %v87
    %v173 = vunpack.c.l.b16 %v88
    %v174 = vunpack.c.h.b16 %v88
    %v175 = vunpack.c.l.b16 %v89
    %v176 = vunpack.c.l.b16 %v90
    %v177 = vunpack.c.h.b16 %v90
    %v178 = vunpack.c.l.b16 %v91
    %v179 = vunpack.c.l.b16 %v92
    %v180 = vunpack.c.h.b16 %v92
    %v181 = vunpack.c.l.b16 %v93
    %v182 = vunpack.c.l.b16 %v94
    %v183 = vunpack.c.h.b16 %v94
    %v184 = vunpack.c.l.b16 %v95
    %v185 = vunpack.c.l.b16 %v96
    %v186 = vunpack.c.h.b16 %v96
    %v187 = vunpack.c.l.b16 %v97
    %v188 = vunpack.c.l.b16 %v98
    %v189 = vunpack.c.h.b16 %v98
    %v190 = vunpack.c.l.b16 %v99
    %v191 = vunpack.c.l.b16 %v100
    %v192 = vunpack.c.h.b16 %v100
    %v193 = vunpack.c.l.b16 %v101
    %v194 = vunpack.c.l.b16 %v102
    %v195 = vunpack.c.h.b16 %v102
    %v196 = vunpack.c.l.b16 %v103
    %v197 = vunpack.c.l.b16 %v104
    %v198 = vunpack.c.h.b16 %v104
    %v199 = vunpack.c.l.b16 %v105
    %v200 = vunpack.c.l.b16 %v106
    %v201 = vunpack.c.h.b16 %v106
    %v202 = vunpack.c.l.b16 %v107
    %v203 = vunpack.c.l.b16 %v108
    %v204 = vunpack.c.h.b16 %v108
    %v205 = vunpack.c.l.b16 %v109
    %v206 = vunpack.c.l.b16 %v110
    %v207 = vunpack.c.h.b16 %v110
    %v208 = vunpack.c.l.b16 %v111
    %v209 = vpack.c.b16 %v164, %v161
    %v210 = vpack.c.b16 %v165, %v162
    %v211 = vpack.c.b16 %v166, %v163
    %v212 = vpack.c.b16 %v170, %v167
    %v213 = vpack.c.b16 %v171, %v168
    %v214 = vpack.c.b16 %v172, %v169
    %v215 = vpack.c.b16 %v176, %v173
    %v216 = vpack.c.b16 %v177, %v174
    %v217 = vpack.c.b16 %v178, %v175
    %v218 = vpack.c.b16 %v182, %v179
    %v219 = vpack.c.b16 %v183, %v180
    %v220 = vpack.c.b16 %v184, %v181
    %v221 = vpack.c.b16 %v188, %v185
    %v222 = vpack.c.b16 %v189, %v186
    %v223 = vpack.c.b16 %v190, %v187
    %v224 = vpack.c.b16 %v194, %v191
    %v225 = vpack.c.b16 %v195, %v192
    %v226 = vpack.c.b16 %v196, %v193
    %v227 = vpack.c.b16 %v200, %v197
    %v228 = vpack.c.b16 %v201, %v198
    %v229 = vpack.c.b16 %v202, %v199
    %v230 = vpack.c.b16 %v206, %v203
    %v231 = vpack.c.b16 %v207, %v204
    %v232 = vpack.c.b16 %v208, %v205
    %257 = vmatprep.subr.bf16.mxu0 %v210
    %258 = vmatpush1.bf16.msra.mxu0 %v209
    %259 = vmatprep.subr.bf16.mxu0 %v213
    %260 = vmatpush1.bf16.msra.mxu0 %v212
    %261 = vmatprep.subr.bf16.mxu0 %v216
    %262 = vmatpush1.bf16.msra.mxu0 %v215
    %263 = vmatprep.subr.bf16.mxu0 %v219
    %264 = vmatpush1.bf16.msra.mxu0 %v218
    %265 = vmatprep.subr.bf16.mxu0 %v222
    %266 = vmatpush1.bf16.msra.mxu0 %v221
    %267 = vmatprep.subr.bf16.mxu0 %v225
    %268 = vmatpush1.bf16.msra.mxu0 %v224
    %269 = vmatprep.subr.bf16.mxu0 %v228
    %270 = vmatpush1.bf16.msra.mxu0 %v227
    %271 = vmatprep.subr.bf16.mxu0 %v231
    %272 = vmatpush1.bf16.msra.mxu0 %v230
    %273 = vmatprep.subr.bf16.mxu0 0
    %274 = vmatpush1.bf16.msra.mxu0 0
    %275 = vmatprep.subr.bf16.mxu0 0
    %276 = vmatpush1.bf16.msra.mxu0 0
    %277 = vmatprep.subr.bf16.mxu0 0
    %278 = vmatpush1.bf16.msra.mxu0 0
    %279 = vmatprep.subr.bf16.mxu0 0
    %280 = vmatpush1.bf16.msra.mxu0 0
    %281 = vmatprep.subr.bf16.mxu0 0
    %282 = vmatpush1.bf16.msra.mxu0 0
    %283 = vmatprep.subr.bf16.mxu0 0
    %284 = vmatpush1.bf16.msra.mxu0 0
    %285 = vmatprep.subr.bf16.mxu0 0
    %286 = vmatpush1.bf16.msra.mxu0 0
    %287 = vmatprep.subr.bf16.mxu0 0
    %288 = vmatpush1.bf16.msra.mxu0 0
    %289 = vmatprep.mubr.bf16.mxu0 0
    %290 = vmatmul.mubr.bf16.gmra.mrb[0].mxu0 %v76
    %v291 = vpop.f32.mrb[0].mxu0
    %v292 = vadd.f32 %v117, %v291
    %v293 = vpop.f32.mrb[0].mxu0
    %v294 = vadd.f32 %v121, %v293
    %v295 = vpop.f32.mrb[0].mxu0
    %v296 = vadd.f32 %v117, %v295
    %v297 = vpop.f32.mrb[0].mxu0
    %v298 = vadd.f32 %v121, %v297
    %299 = vmatprep.mubr.bf16.mxu0 0
    %300 = vmatmul.mubr.bf16.gmra.mrb[0].mxu0 %v77
    %v301 = vpop.f32.mrb[0].mxu0
    %v302 = vadd.f32 %v117, %v301
    %v303 = vpop.f32.mrb[0].mxu0
    %v304 = vadd.f32 %v121, %v303
    %v305 = vpop.f32.mrb[0].mxu0
    %v306 = vadd.f32 %v117, %v305
    %v307 = vpop.f32.mrb[0].mxu0
    %v308 = vadd.f32 %v121, %v307
    %309 = vmatprep.mubr.bf16.mxu0 0
    %310 = vmatmul.mubr.bf16.gmra.mrb[0].mxu0 %v78
    %v311 = vpop.f32.mrb[0].mxu0
    %v312 = vadd.f32 %v117, %v311
    %v313 = vpop.f32.mrb[0].mxu0
    %v314 = vadd.f32 %v121, %v313
    %v315 = vpop.f32.mrb[0].mxu0
    %v316 = vadd.f32 %v117, %v315
    %v317 = vpop.f32.mrb[0].mxu0
    %v318 = vadd.f32 %v121, %v317
    %319 = vmatprep.mubr.bf16.mxu0 0
    %320 = vmatmul.mubr.bf16.gmra.mrb[0].mxu0 %v79
    %v321 = vpop.f32.mrb[0].mxu0
    %v322 = vadd.f32 %v117, %v321
    %v323 = vpop.f32.mrb[0].mxu0
    %v324 = vadd.f32 %v121, %v323
    %v325 = vpop.f32.mrb[0].mxu0
    %v326 = vadd.f32 %v117, %v325
    %v327 = vpop.f32.mrb[0].mxu0
    %v328 = vadd.f32 %v121, %v327
    %329 = vdwg.mxu0
    %330 = vmatprep.subr.bf16.mxu0 0
    %331 = vmatpush1.bf16.msra.mxu0 %v211
    %332 = vmatprep.subr.bf16.mxu0 0
    %333 = vmatpush1.bf16.msra.mxu0 %v214
    %334 = vmatprep.subr.bf16.mxu0 0
    %335 = vmatpush1.bf16.msra.mxu0 %v217
    %336 = vmatprep.subr.bf16.mxu0 0
    %337 = vmatpush1.bf16.msra.mxu0 %v220
    %338 = vmatprep.subr.bf16.mxu0 0
    %339 = vmatpush1.bf16.msra.mxu0 %v223
    %340 = vmatprep.subr.bf16.mxu0 0
    %341 = vmatpush1.bf16.msra.mxu0 %v226
    %342 = vmatprep.subr.bf16.mxu0 0
    %343 = vmatpush1.bf16.msra.mxu0 %v229
    %344 = vmatprep.subr.bf16.mxu0 0
    %345 = vmatpush1.bf16.msra.mxu0 %v232
    %346 = vmatprep.subr.bf16.mxu0 0
    %347 = vmatpush1.bf16.msra.mxu0 0
    %348 = vmatprep.subr.bf16.mxu0 0
    %349 = vmatpush1.bf16.msra.mxu0 0
    %350 = vmatprep.subr.bf16.mxu0 0
    %351 = vmatpush1.bf16.msra.mxu0 0
    %352 = vmatprep.subr.bf16.mxu0 0
    %353 = vmatpush1.bf16.msra.mxu0 0
    %354 = vmatprep.subr.bf16.mxu0 0
    %355 = vmatpush1.bf16.msra.mxu0 0
    %356 = vmatprep.subr.bf16.mxu0 0
    %357 = vmatpush1.bf16.msra.mxu0 0
    %358 = vmatprep.subr.bf16.mxu0 0
    %359 = vmatpush1.bf16.msra.mxu0 0
    %360 = vmatprep.subr.bf16.mxu0 0
    %361 = vmatpush1.bf16.msra.mxu0 0
    %362 = vmatprep.mubr.bf16.mxu0 0
    %363 = vmatmul.mubr.bf16.gmra.mrb[0].mxu0 %v76
    %v364 = vpop.f32.mrb[0].mxu0
    %v365 = vadd.f32 %v125, %v364
    %v366 = vpop.f32.mrb[0].mxu0
    %v367 = vpop.f32.mrb[0].mxu0
    %v368 = vadd.f32 %v125, %v367
    %v369 = vpop.f32.mrb[0].mxu0
    %370 = vmatprep.mubr.bf16.mxu0 0
    %371 = vmatmul.mubr.bf16.gmra.mrb[0].mxu0 %v77
    %v372 = vpop.f32.mrb[0].mxu0
    %v373 = vadd.f32 %v125, %v372
    %v374 = vpop.f32.mrb[0].mxu0
    %v375 = vpop.f32.mrb[0].mxu0
    %v376 = vadd.f32 %v125, %v375
    %v377 = vpop.f32.mrb[0].mxu0
    %378 = vmatprep.mubr.bf16.mxu0 0
    %379 = vmatmul.mubr.bf16.gmra.mrb[0].mxu0 %v78
    %v380 = vpop.f32.mrb[0].mxu0
    %v381 = vadd.f32 %v125, %v380
    %v382 = vpop.f32.mrb[0].mxu0
    %v383 = vpop.f32.mrb[0].mxu0
    %v384 = vadd.f32 %v125, %v383
    %v385 = vpop.f32.mrb[0].mxu0
    %386 = vmatprep.mubr.bf16.mxu0 0
    %387 = vmatmul.mubr.bf16.gmra.mrb[0].mxu0 %v79
    %v388 = vpop.f32.mrb[0].mxu0
    %v389 = vadd.f32 %v125, %v388
    %v390 = vpop.f32.mrb[0].mxu0
    %v391 = vpop.f32.mrb[0].mxu0
    %v392 = vadd.f32 %v125, %v391
    %v393 = vpop.f32.mrb[0].mxu0
    %394 = vdwg.mxu0
    %395 = vst [vmem:[#allocation3] sm:$0xff] %v292
    %396 = vst [vmem:[#allocation3 + $0x8] sm:$0xff] %v294
    %397 = vst [vmem:[#allocation3 + $0x10] sm:$0xff] %v365
    %398 = vst [vmem:[#allocation3 + $0x18] sm:$0xff] %v296
    %399 = vst [vmem:[#allocation3 + $0x20] sm:$0xff] %v298
    %400 = vst [vmem:[#allocation3 + $0x28] sm:$0xff] %v368
    %401 = vst [vmem:[#allocation3 + $0x30] sm:$0xff] %v302
    %402 = vst [vmem:[#allocation3 + $0x38] sm:$0xff] %v304
    %403 = vst [vmem:[#allocation3 + $0x40] sm:$0xff] %v373
    %404 = vst [vmem:[#allocation3 + $0x48] sm:$0xff] %v306
    %405 = vst [vmem:[#allocation3 + $0x50] sm:$0xff] %v308
    %406 = vst [vmem:[#allocation3 + $0x58] sm:$0xff] %v376
    %407 = vst [vmem:[#allocation3 + $0x60] sm:$0xff] %v312
    %408 = vst [vmem:[#allocation3 + $0x68] sm:$0xff] %v314
    %409 = vst [vmem:[#allocation3 + $0x70] sm:$0xff] %v381
    %410 = vst [vmem:[#allocation3 + $0x78] sm:$0xff] %v316
    %411 = vst [vmem:[#allocation3 + $0x80] sm:$0xff] %v318
    %412 = vst [vmem:[#allocation3 + $0x88] sm:$0xff] %v384
    %413 = vst [vmem:[#allocation3 + $0x90] sm:$0xff] %v322
    %414 = vst [vmem:[#allocation3 + $0x98] sm:$0xff] %v324
    %415 = vst [vmem:[#allocation3 + $0xa0] sm:$0xff] %v389
    %416 = vst [vmem:[#allocation3 + $0xa8] sm:$0xff] %v326
    %417 = vst [vmem:[#allocation3 + $0xb0] sm:$0xff] %v328
    %418 = vst [vmem:[#allocation3 + $0xb8] sm:$0xff] %v392
    %v419 = vld [vmem:[%s4] sm:$0x1]
    %v421 = vlaneseq
    %v422 = vshrl.u32 %v421, 7
    %v423 = vsub.s32 0, %v422
    %v424 = vrot.slane %v419, %v423
    %v426 = vld [vmem:[#allocation2] sm:$0xff]
    %v427 = vld [vmem:[#allocation3] sm:$0xff]
    %v428 = vld [vmem:[#allocation3 + $0x8] sm:$0xff]
    %v429 = vld [vmem:[#allocation3 + $0x10] sm:$0xff]
    %v430 = vpack.c.bf16 %v426, %v426
    %v431 = vld [vmem:[#allocation9] sm:$0xff]
    %v432 = vld [vmem:[#allocation9 + $0x8] sm:$0xf]
    %v433 = vld [vmem:[#allocation9 + $0xc] sm:$0xff]
    %v434 = vld [vmem:[#allocation9 + $0x14] sm:$0xf]
    %v435 = vld [vmem:[#allocation9 + $0x18] sm:$0xff]
    %v436 = vld [vmem:[#allocation9 + $0x20] sm:$0xf]
    %v437 = vld [vmem:[#allocation9 + $0x24] sm:$0xff]
    %v438 = vld [vmem:[#allocation9 + $0x2c] sm:$0xf]
    %v439 = vld [vmem:[#allocation9 + $0x30] sm:$0xff]
    %v440 = vld [vmem:[#allocation9 + $0x38] sm:$0xf]
    %v441 = vld [vmem:[#allocation9 + $0x3c] sm:$0xff]
    %v442 = vld [vmem:[#allocation9 + $0x44] sm:$0xf]
    %v443 = vld [vmem:[#allocation9 + $0x48] sm:$0xff]
    %v444 = vld [vmem:[#allocation9 + $0x50] sm:$0xf]
    %v445 = vld [vmem:[#allocation9 + $0x54] sm:$0xff]
    %v446 = vld [vmem:[#allocation9 + $0x5c] sm:$0xf]
    %v447 = vld [vmem:[#allocation9 + $0x60] sm:$0xff]
    %v448 = vld [vmem:[#allocation9 + $0x68] sm:$0xf]
    %v449 = vld [vmem:[#allocation9 + $0x6c] sm:$0xff]
    %v450 = vld [vmem:[#allocation9 + $0x74] sm:$0xf]
    %v451 = vld [vmem:[#allocation9 + $0x78] sm:$0xff]
    %v452 = vld [vmem:[#allocation9 + $0x80] sm:$0xf]
    %v453 = vld [vmem:[#allocation9 + $0x84] sm:$0xff]
    %v454 = vld [vmem:[#allocation9 + $0x8c] sm:$0xf]
    %v455 = vld [vmem:[#allocation9 + $0x90] sm:$0xff]
    %v456 = vld [vmem:[#allocation9 + $0x98] sm:$0xf]
    %v457 = vld [vmem:[#allocation9 + $0x9c] sm:$0xff]
    %v458 = vld [vmem:[#allocation9 + $0xa4] sm:$0xf]
    %v459 = vld [vmem:[#allocation9 + $0xa8] sm:$0xff]
    %v460 = vld [vmem:[#allocation9 + $0xb0] sm:$0xf]
    %v461 = vld [vmem:[#allocation9 + $0xb4] sm:$0xff]
    %v462 = vld [vmem:[#allocation9 + $0xbc] sm:$0xf]
    %v495 = vunpack.c.l.b16 %v431
    %v496 = vunpack.c.h.b16 %v431
    %v497 = vunpack.c.l.b16 %v432
    %v498 = vunpack.c.l.b16 %v433
    %v499 = vunpack.c.h.b16 %v433
    %v500 = vunpack.c.l.b16 %v434
    %v501 = vunpack.c.l.b16 %v435
    %v502 = vunpack.c.h.b16 %v435
    %v503 = vunpack.c.l.b16 %v436
    %v504 = vunpack.c.l.b16 %v437
    %v505 = vunpack.c.h.b16 %v437
    %v506 = vunpack.c.l.b16 %v438
    %v507 = vunpack.c.l.b16 %v439
    %v508 = vunpack.c.h.b16 %v439
    %v509 = vunpack.c.l.b16 %v440
    %v510 = vunpack.c.l.b16 %v441
    %v511 = vunpack.c.h.b16 %v441
    %v512 = vunpack.c.l.b16 %v442
    %v513 = vunpack.c.l.b16 %v443
    %v514 = vunpack.c.h.b16 %v443
    %v515 = vunpack.c.l.b16 %v444
    %v516 = vunpack.c.l.b16 %v445
    %v517 = vunpack.c.h.b16 %v445
    %v518 = vunpack.c.l.b16 %v446
    %v519 = vunpack.c.l.b16 %v447
    %v520 = vunpack.c.h.b16 %v447
    %v521 = vunpack.c.l.b16 %v448
    %v522 = vunpack.c.l.b16 %v449
    %v523 = vunpack.c.h.b16 %v449
    %v524 = vunpack.c.l.b16 %v450
    %v525 = vunpack.c.l.b16 %v451
    %v526 = vunpack.c.h.b16 %v451
    %v527 = vunpack.c.l.b16 %v452
    %v528 = vunpack.c.l.b16 %v453
    %v529 = vunpack.c.h.b16 %v453
    %v530 = vunpack.c.l.b16 %v454
    %v531 = vunpack.c.l.b16 %v455
    %v532 = vunpack.c.h.b16 %v455
    %v533 = vunpack.c.l.b16 %v456
    %v534 = vunpack.c.l.b16 %v457
    %v535 = vunpack.c.h.b16 %v457
    %v536 = vunpack.c.l.b16 %v458
    %v537 = vunpack.c.l.b16 %v459
    %v538 = vunpack.c.h.b16 %v459
    %v539 = vunpack.c.l.b16 %v460
    %v540 = vunpack.c.l.b16 %v461
    %v541 = vunpack.c.h.b16 %v461
    %v542 = vunpack.c.l.b16 %v462
    %v543 = vpack.c.b16 %v498, %v495
    %v544 = vpack.c.b16 %v499, %v496
    %v545 = vpack.c.b16 %v500, %v497
    %v546 = vpack.c.b16 %v504, %v501
    %v547 = vpack.c.b16 %v505, %v502
    %v548 = vpack.c.b16 %v506, %v503
    %v549 = vpack.c.b16 %v510, %v507
    %v550 = vpack.c.b16 %v511, %v508
    %v551 = vpack.c.b16 %v512, %v509
    %v552 = vpack.c.b16 %v516, %v513
    %v553 = vpack.c.b16 %v517, %v514
    %v554 = vpack.c.b16 %v518, %v515
    %v555 = vpack.c.b16 %v522, %v519
    %v556 = vpack.c.b16 %v523, %v520
    %v557 = vpack.c.b16 %v524, %v521
    %v558 = vpack.c.b16 %v528, %v525
    %v559 = vpack.c.b16 %v529, %v526
    %v560 = vpack.c.b16 %v530, %v527
    %v561 = vpack.c.b16 %v534, %v531
    %v562 = vpack.c.b16 %v535, %v532
    %v563 = vpack.c.b16 %v536, %v533
    %v564 = vpack.c.b16 %v540, %v537
    %v565 = vpack.c.b16 %v541, %v538
    %v566 = vpack.c.b16 %v542, %v539
    %591 = vmatprep.subr.bf16.mxu0 %v544
    %592 = vmatpush1.bf16.msra.mxu0 %v543
    %593 = vmatprep.subr.bf16.mxu0 %v547
    %594 = vmatpush1.bf16.msra.mxu0 %v546
    %595 = vmatprep.subr.bf16.mxu0 %v550
    %596 = vmatpush1.bf16.msra.mxu0 %v549
    %597 = vmatprep.subr.bf16.mxu0 %v553
    %598 = vmatpush1.bf16.msra.mxu0 %v552
    %599 = vmatprep.subr.bf16.mxu0 %v556
    %600 = vmatpush1.bf16.msra.mxu0 %v555
    %601 = vmatprep.subr.bf16.mxu0 %v559
    %602 = vmatpush1.bf16.msra.mxu0 %v558
    %603 = vmatprep.subr.bf16.mxu0 %v562
    %604 = vmatpush1.bf16.msra.mxu0 %v561
    %605 = vmatprep.subr.bf16.mxu0 %v565
    %606 = vmatpush1.bf16.msra.mxu0 %v564
    %607 = vmatprep.subr.bf16.mxu0 0
    %608 = vmatpush1.bf16.msra.mxu0 0
    %609 = vmatprep.subr.bf16.mxu0 0
    %610 = vmatpush1.bf16.msra.mxu0 0
    %611 = vmatprep.subr.bf16.mxu0 0
    %612 = vmatpush1.bf16.msra.mxu0 0
    %613 = vmatprep.subr.bf16.mxu0 0
    %614 = vmatpush1.bf16.msra.mxu0 0
    %615 = vmatprep.subr.bf16.mxu0 0
    %616 = vmatpush1.bf16.msra.mxu0 0
    %617 = vmatprep.subr.bf16.mxu0 0
    %618 = vmatpush1.bf16.msra.mxu0 0
    %619 = vmatprep.subr.bf16.mxu0 0
    %620 = vmatpush1.bf16.msra.mxu0 0
    %621 = vmatprep.subr.bf16.mxu0 0
    %622 = vmatpush1.bf16.msra.mxu0 0
    %623 = vmatprep.mubr.bf16.mxu0 0
    %624 = vmatmul.mubr.bf16.gmra.mrb[0].mxu0 %v430
    %v625 = vpop.f32.mrb[0].mxu0
    %v626 = vadd.f32 0.0, %v625
    %v627 = vpop.f32.mrb[0].mxu0
    %v628 = vadd.f32 0.0, %v627
    %v629 = vpop.f32.mrb[0].mxu0
    %v630 = vpop.f32.mrb[0].mxu0
    %631 = vdwg.mxu0
    %632 = vmatprep.subr.bf16.mxu0 0
    %633 = vmatpush1.bf16.msra.mxu0 %v545
    %634 = vmatprep.subr.bf16.mxu0 0
    %635 = vmatpush1.bf16.msra.mxu0 %v548
    %636 = vmatprep.subr.bf16.mxu0 0
    %637 = vmatpush1.bf16.msra.mxu0 %v551
    %638 = vmatprep.subr.bf16.mxu0 0
    %639 = vmatpush1.bf16.msra.mxu0 %v554
    %640 = vmatprep.subr.bf16.mxu0 0
    %641 = vmatpush1.bf16.msra.mxu0 %v557
    %642 = vmatprep.subr.bf16.mxu0 0
    %643 = vmatpush1.bf16.msra.mxu0 %v560
    %644 = vmatprep.subr.bf16.mxu0 0
    %645 = vmatpush1.bf16.msra.mxu0 %v563
    %646 = vmatprep.subr.bf16.mxu0 0
    %647 = vmatpush1.bf16.msra.mxu0 %v566
    %648 = vmatprep.subr.bf16.mxu0 0
    %649 = vmatpush1.bf16.msra.mxu0 0
    %650 = vmatprep.subr.bf16.mxu0 0
    %651 = vmatpush1.bf16.msra.mxu0 0
    %652 = vmatprep.subr.bf16.mxu0 0
    %653 = vmatpush1.bf16.msra.mxu0 0
    %654 = vmatprep.subr.bf16.mxu0 0
    %655 = vmatpush1.bf16.msra.mxu0 0
    %656 = vmatprep.subr.bf16.mxu0 0
    %657 = vmatpush1.bf16.msra.mxu0 0
    %658 = vmatprep.subr.bf16.mxu0 0
    %659 = vmatpush1.bf16.msra.mxu0 0
    %660 = vmatprep.subr.bf16.mxu0 0
    %661 = vmatpush1.bf16.msra.mxu0 0
    %662 = vmatprep.subr.bf16.mxu0 0
    %663 = vmatpush1.bf16.msra.mxu0 0
    %664 = vmatprep.mubr.bf16.mxu0 0
    %665 = vmatmul.mubr.bf16.gmra.mrb[0].mxu0 %v430
    %v666 = vpop.f32.mrb[0].mxu0
    %v667 = vadd.f32 0.0, %v666
    %v668 = vpop.f32.mrb[0].mxu0
    %v669 = vpop.f32.mrb[0].mxu0
    %v670 = vpop.f32.mrb[0].mxu0
    %671 = vdwg.mxu0
    %v672 = vadd.f32 %v427, %v626
    %v673 = vxor.u32 %v672, 2147483648
    %v674 = vmul.f32 %v673, 1.442695
    %v675 = vpow.pop %v674
    %v676 = vadd.f32 %v675, 1.0
    %v677 = vrcp.pop %v676
    %v678 = vmul.f32 1.0, %v677
    %v679 = vadd.f32 %v428, %v628
    %v680 = vxor.u32 %v679, 2147483648
    %v681 = vmul.f32 %v680, 1.442695
    %v682 = vpow.pop %v681
    %v683 = vadd.f32 %v682, 1.0
    %v684 = vrcp.pop %v683
    %v685 = vmul.f32 1.0, %v684
    %v686 = vadd.f32 %v667, %v424
    %v687 = vmul.f32 %v678, %v686
    %v688 = vadd.f32 %v429, %v687
    %v689 = vtanh.pop %v688
    %v690 = vsub.f32 %v426, %v689
    %v691 = vmul.f32 %v685, %v690
    %v692 = vadd.f32 %v689, %v691
    %693 = vst [vmem:[#allocation10] sm:$0xff] %v692
    %s694 = scalar_lea.vmem [#allocation3], 24
    %v695 = vld [vmem:[%s694] sm:$0xff]
    %v696 = vld [vmem:[%s694 + $0x8] sm:$0xff]
    %v697 = vld [vmem:[%s694 + $0x10] sm:$0xff]
    %v698 = vpack.c.bf16 %v692, %v692
    %v699 = vld [vmem:[#allocation9] sm:$0xff]
    %v700 = vld [vmem:[#allocation9 + $0x8] sm:$0xf]
    %v701 = vld [vmem:[#allocation9 + $0xc] sm:$0xff]
    %v702 = vld [vmem:[#allocation9 + $0x14] sm:$0xf]
    %v703 = vld [vmem:[#allocation9 + $0x18] sm:$0xff]
    %v704 = vld [vmem:[#allocation9 + $0x20] sm:$0xf]
    %v705 = vld [vmem:[#allocation9 + $0x24] sm:$0xff]
    %v706 = vld [vmem:[#allocation9 + $0x2c] sm:$0xf]
    %v707 = vld [vmem:[#allocation9 + $0x30] sm:$0xff]
    %v708 = vld [vmem:[#allocation9 + $0x38] sm:$0xf]
    %v709 = vld [vmem:[#allocation9 + $0x3c] sm:$0xff]
    %v710 = vld [vmem:[#allocation9 + $0x44] sm:$0xf]
    %v711 = vld [vmem:[#allocation9 + $0x48] sm:$0xff]
    %v712 = vld [vmem:[#allocation9 + $0x50] sm:$0xf]
    %v713 = vld [vmem:[#allocation9 + $0x54] sm:$0xff]
    %v714 = vld [vmem:[#allocation9 + $0x5c] sm:$0xf]
    %v715 = vld [vmem:[#allocation9 + $0x60] sm:$0xff]
    %v716 = vld [vmem:[#allocation9 + $0x68] sm:$0xf]
    %v717 = vld [vmem:[#allocation9 + $0x6c] sm:$0xff]
    %v718 = vld [vmem:[#allocation9 + $0x74] sm:$0xf]
    %v719 = vld [vmem:[#allocation9 + $0x78] sm:$0xff]
    %v720 = vld [vmem:[#allocation9 + $0x80] sm:$0xf]
    %v721 = vld [vmem:[#allocation9 + $0x84] sm:$0xff]
    %v722 = vld [vmem:[#allocation9 + $0x8c] sm:$0xf]
    %v723 = vld [vmem:[#allocation9 + $0x90] sm:$0xff]
    %v724 = vld [vmem:[#allocation9 + $0x98] sm:$0xf]
    %v725 = vld [vmem:[#allocation9 + $0x9c] sm:$0xff]
    %v726 = vld [vmem:[#allocation9 + $0xa4] sm:$0xf]
    %v727 = vld [vmem:[#allocation9 + $0xa8] sm:$0xff]
    %v728 = vld [vmem:[#allocation9 + $0xb0] sm:$0xf]
    %v729 = vld [vmem:[#allocation9 + $0xb4] sm:$0xff]
    %v730 = vld [vmem:[#allocation9 + $0xbc] sm:$0xf]
    %v763 = vunpack.c.l.b16 %v699
    %v764 = vunpack.c.h.b16 %v699
    %v765 = vunpack.c.l.b16 %v700
    %v766 = vunpack.c.l.b16 %v701
    %v767 = vunpack.c.h.b16 %v701
    %v768 = vunpack.c.l.b16 %v702
    %v769 = vunpack.c.l.b16 %v703
    %v770 = vunpack.c.h.b16 %v703
    %v771 = vunpack.c.l.b16 %v704
    %v772 = vunpack.c.l.b16 %v705
    %v773 = vunpack.c.h.b16 %v705
    %v774 = vunpack.c.l.b16 %v706
    %v775 = vunpack.c.l.b16 %v707
    %v776 = vunpack.c.h.b16 %v707
    %v777 = vunpack.c.l.b16 %v708
    %v778 = vunpack.c.l.b16 %v709
    %v779 = vunpack.c.h.b16 %v709
    %v780 = vunpack.c.l.b16 %v710
    %v781 = vunpack.c.l.b16 %v711
    %v782 = vunpack.c.h.b16 %v711
    %v783 = vunpack.c.l.b16 %v712
    %v784 = vunpack.c.l.b16 %v713
    %v785 = vunpack.c.h.b16 %v713
    %v786 = vunpack.c.l.b16 %v714
    %v787 = vunpack.c.l.b16 %v715
    %v788 = vunpack.c.h.b16 %v715
    %v789 = vunpack.c.l.b16 %v716
    %v790 = vunpack.c.l.b16 %v717
    %v791 = vunpack.c.h.b16 %v717
    %v792 = vunpack.c.l.b16 %v718
    %v793 = vunpack.c.l.b16 %v719
    %v794 = vunpack.c.h.b16 %v719
    %v795 = vunpack.c.l.b16 %v720
    %v796 = vunpack.c.l.b16 %v721
    %v797 = vunpack.c.h.b16 %v721
    %v798 = vunpack.c.l.b16 %v722
    %v799 = vunpack.c.l.b16 %v723
    %v800 = vunpack.c.h.b16 %v723
    %v801 = vunpack.c.l.b16 %v724
    %v802 = vunpack.c.l.b16 %v725
    %v803 = vunpack.c.h.b16 %v725
    %v804 = vunpack.c.l.b16 %v726
    %v805 = vunpack.c.l.b16 %v727
    %v806 = vunpack.c.h.b16 %v727
    %v807 = vunpack.c.l.b16 %v728
    %v808 = vunpack.c.l.b16 %v729
    %v809 = vunpack.c.h.b16 %v729
    %v810 = vunpack.c.l.b16 %v730
    %v811 = vpack.c.b16 %v766, %v763
    %v812 = vpack.c.b16 %v767, %v764
    %v813 = vpack.c.b16 %v768, %v765
    %v814 = vpack.c.b16 %v772, %v769
    %v815 = vpack.c.b16 %v773, %v770
    %v816 = vpack.c.b16 %v774, %v771
    %v817 = vpack.c.b16 %v778, %v775
    %v818 = vpack.c.b16 %v779, %v776
    %v819 = vpack.c.b16 %v780, %v777
    %v820 = vpack.c.b16 %v784, %v781
    %v821 = vpack.c.b16 %v785, %v782
    %v822 = vpack.c.b16 %v786, %v783
    %v823 = vpack.c.b16 %v790, %v787
    %v824 = vpack.c.b16 %v791, %v788
    %v825 = vpack.c.b16 %v792, %v789
    %v826 = vpack.c.b16 %v796, %v793
    %v827 = vpack.c.b16 %v797, %v794
    %v828 = vpack.c.b16 %v798, %v795
    %v829 = vpack.c.b16 %v802, %v799
    %v830 = vpack.c.b16 %v803, %v800
    %v831 = vpack.c.b16 %v804, %v801
    %v832 = vpack.c.b16 %v808, %v805
    %v833 = vpack.c.b16 %v809, %v806
    %v834 = vpack.c.b16 %v810, %v807
    %859 = vmatprep.subr.bf16.mxu0 %v812
    %860 = vmatpush1.bf16.msra.mxu0 %v811
    %861 = vmatprep.subr.bf16.mxu0 %v815
    %862 = vmatpush1.bf16.msra.mxu0 %v814
    %863 = vmatprep.subr.bf16.mxu0 %v818
    %864 = vmatpush1.bf16.msra.mxu0 %v817
    %865 = vmatprep.subr.bf16.mxu0 %v821
    %866 = vmatpush1.bf16.msra.mxu0 %v820
    %867 = vmatprep.subr.bf16.mxu0 %v824
    %868 = vmatpush1.bf16.msra.mxu0 %v823
    %869 = vmatprep.subr.bf16.mxu0 %v827
    %870 = vmatpush1.bf16.msra.mxu0 %v826
    %871 = vmatprep.subr.bf16.mxu0 %v830
    %872 = vmatpush1.bf16.msra.mxu0 %v829
    %873 = vmatprep.subr.bf16.mxu0 %v833
    %874 = vmatpush1.bf16.msra.mxu0 %v832
    %875 = vmatprep.subr.bf16.mxu0 0
    %876 = vmatpush1.bf16.msra.mxu0 0
    %877 = vmatprep.subr.bf16.mxu0 0
    %878 = vmatpush1.bf16.msra.mxu0 0
    %879 = vmatprep.subr.bf16.mxu0 0
    %880 = vmatpush1.bf16.msra.mxu0 0
    %881 = vmatprep.subr.bf16.mxu0 0
    %882 = vmatpush1.bf16.msra.mxu0 0
    %883 = vmatprep.subr.bf16.mxu0 0
    %884 = vmatpush1.bf16.msra.mxu0 0
    %885 = vmatprep.subr.bf16.mxu0 0
    %886 = vmatpush1.bf16.msra.mxu0 0
    %887 = vmatprep.subr.bf16.mxu0 0
    %888 = vmatpush1.bf16.msra.mxu0 0
    %889 = vmatprep.subr.bf16.mxu0 0
    %890 = vmatpush1.bf16.msra.mxu0 0
    %891 = vmatprep.mubr.bf16.mxu0 0
    %892 = vmatmul.mubr.bf16.gmra.mrb[0].mxu0 %v698
    %v893 = vpop.f32.mrb[0].mxu0
    %v894 = vadd.f32 0.0, %v893
    %v895 = vpop.f32.mrb[0].mxu0
    %v896 = vadd.f32 0.0, %v895
    %v897 = vpop.f32.mrb[0].mxu0
    %v898 = vpop.f32.mrb[0].mxu0
    %899 = vdwg.mxu0
    %900 = vmatprep.subr.bf16.mxu0 0
    %901 = vmatpush1.bf16.msra.mxu0 %v813
    %902 = vmatprep.subr.bf16.mxu0 0
    %903 = vmatpush1.bf16.msra.mxu0 %v816
    %904 = vmatprep.subr.bf16.mxu0 0
    %905 = vmatpush1.bf16.msra.mxu0 %v819
    %906 = vmatprep.subr.bf16.mxu0 0
    %907 = vmatpush1.bf16.msra.mxu0 %v822
    %908 = vmatprep.subr.bf16.mxu0 0
    %909 = vmatpush1.bf16.msra.mxu0 %v825
    %910 = vmatprep.subr.bf16.mxu0 0
    %911 = vmatpush1.bf16.msra.mxu0 %v828
    %912 = vmatprep.subr.bf16.mxu0 0
    %913 = vmatpush1.bf16.msra.mxu0 %v831
    %914 = vmatprep.subr.bf16.mxu0 0
    %915 = vmatpush1.bf16.msra.mxu0 %v834
    %916 = vmatprep.subr.bf16.mxu0 0
    %917 = vmatpush1.bf16.msra.mxu0 0
    %918 = vmatprep.subr.bf16.mxu0 0
    %919 = vmatpush1.bf16.msra.mxu0 0
    %920 = vmatprep.subr.bf16.mxu0 0
    %921 = vmatpush1.bf16.msra.mxu0 0
    %922 = vmatprep.subr.bf16.mxu0 0
    %923 = vmatpush1.bf16.msra.mxu0 0
    %924 = vmatprep.subr.bf16.mxu0 0
    %925 = vmatpush1.bf16.msra.mxu0 0
    %926 = vmatprep.subr.bf16.mxu0 0
    %927 = vmatpush1.bf16.msra.mxu0 0
    %928 = vmatprep.subr.bf16.mxu0 0
    %929 = vmatpush1.bf16.msra.mxu0 0
    %930 = vmatprep.subr.bf16.mxu0 0
    %931 = vmatpush1.bf16.msra.mxu0 0
    %932 = vmatprep.mubr.bf16.mxu0 0
    %933 = vmatmul.mubr.bf16.gmra.mrb[0].mxu0 %v698
    %v934 = vpop.f32.mrb[0].mxu0
    %v935 = vadd.f32 0.0, %v934
    %v936 = vpop.f32.mrb[0].mxu0
    %v937 = vpop.f32.mrb[0].mxu0
    %v938 = vpop.f32.mrb[0].mxu0
    %939 = vdwg.mxu0
    %v940 = vadd.f32 %v695, %v894
    %v941 = vxor.u32 %v940, 2147483648
    %v942 = vmul.f32 %v941, 1.442695
    %v943 = vpow.pop %v942
    %v944 = vadd.f32 %v943, 1.0
    %v945 = vrcp.pop %v944
    %v946 = vmul.f32 1.0, %v945
    %v947 = vadd.f32 %v696, %v896
    %v948 = vxor.u32 %v947, 2147483648
    %v949 = vmul.f32 %v948, 1.442695
    %v950 = vpow.pop %v949
    %v951 = vadd.f32 %v950, 1.0
    %v952 = vrcp.pop %v951
    %v953 = vmul.f32 1.0, %v952
    %v954 = vadd.f32 %v935, %v424
    %v955 = vmul.f32 %v946, %v954
    %v956 = vadd.f32 %v697, %v955
    %v957 = vtanh.pop %v956
    %v958 = vsub.f32 %v692, %v957
    %v959 = vmul.f32 %v953, %v958
    %v960 = vadd.f32 %v957, %v959
    %s961 = scalar_lea.vmem [#allocation10], 8
    %962 = vst [vmem:[%s961] sm:$0xff] %v960
    %s963 = scalar_lea.vmem [#allocation3], 48
    %v964 = vld [vmem:[%s963] sm:$0xff]
    %v965 = vld [vmem:[%s963 + $0x8] sm:$0xff]
    %v966 = vld [vmem:[%s963 + $0x10] sm:$0xff]
    %v967 = vpack.c.bf16 %v960, %v960
    %v968 = vld [vmem:[#allocation9] sm:$0xff]
    %v969 = vld [vmem:[#allocation9 + $0x8] sm:$0xf]
    %v970 = vld [vmem:[#allocation9 + $0xc] sm:$0xff]
    %v971 = vld [vmem:[#allocation9 + $0x14] sm:$0xf]
    %v972 = vld [vmem:[#allocation9 + $0x18] sm:$0xff]
    %v973 = vld [vmem:[#allocation9 + $0x20] sm:$0xf]
    %v974 = vld [vmem:[#allocation9 + $0x24] sm:$0xff]
    %v975 = vld [vmem:[#allocation9 + $0x2c] sm:$0xf]
    %v976 = vld [vmem:[#allocation9 + $0x30] sm:$0xff]
    %v977 = vld [vmem:[#allocation9 + $0x38] sm:$0xf]
    %v978 = vld [vmem:[#allocation9 + $0x3c] sm:$0xff]
    %v979 = vld [vmem:[#allocation9 + $0x44] sm:$0xf]
    %v980 = vld [vmem:[#allocation9 + $0x48] sm:$0xff]
    %v981 = vld [vmem:[#allocation9 + $0x50] sm:$0xf]
    %v982 = vld [vmem:[#allocation9 + $0x54] sm:$0xff]
    %v983 = vld [vmem:[#allocation9 + $0x5c] sm:$0xf]
    %v984 = vld [vmem:[#allocation9 + $0x60] sm:$0xff]
    %v985 = vld [vmem:[#allocation9 + $0x68] sm:$0xf]
    %v986 = vld [vmem:[#allocation9 + $0x6c] sm:$0xff]
    %v987 = vld [vmem:[#allocation9 + $0x74] sm:$0xf]
    %v988 = vld [vmem:[#allocation9 + $0x78] sm:$0xff]
    %v989 = vld [vmem:[#allocation9 + $0x80] sm:$0xf]
    %v990 = vld [vmem:[#allocation9 + $0x84] sm:$0xff]
    %v991 = vld [vmem:[#allocation9 + $0x8c] sm:$0xf]
    %v992 = vld [vmem:[#allocation9 + $0x90] sm:$0xff]
    %v993 = vld [vmem:[#allocation9 + $0x98] sm:$0xf]
    %v994 = vld [vmem:[#allocation9 + $0x9c] sm:$0xff]
    %v995 = vld [vmem:[#allocation9 + $0xa4] sm:$0xf]
    %v996 = vld [vmem:[#allocation9 + $0xa8] sm:$0xff]
    %v997 = vld [vmem:[#allocation9 + $0xb0] sm:$0xf]
    %v998 = vld [vmem:[#allocation9 + $0xb4] sm:$0xff]
    %v999 = vld [vmem:[#allocation9 + $0xbc] sm:$0xf]
    %v1032 = vunpack.c.l.b16 %v968
    %v1033 = vunpack.c.h.b16 %v968
    %v1034 = vunpack.c.l.b16 %v969
    %v1035 = vunpack.c.l.b16 %v970
    %v1036 = vunpack.c.h.b16 %v970
    %v1037 = vunpack.c.l.b16 %v971
    %v1038 = vunpack.c.l.b16 %v972
    %v1039 = vunpack.c.h.b16 %v972
    %v1040 = vunpack.c.l.b16 %v973
    %v1041 = vunpack.c.l.b16 %v974
    %v1042 = vunpack.c.h.b16 %v974
    %v1043 = vunpack.c.l.b16 %v975
    %v1044 = vunpack.c.l.b16 %v976
    %v1045 = vunpack.c.h.b16 %v976
    %v1046 = vunpack.c.l.b16 %v977
    %v1047 = vunpack.c.l.b16 %v978
    %v1048 = vunpack.c.h.b16 %v978
    %v1049 = vunpack.c.l.b16 %v979
    %v1050 = vunpack.c.l.b16 %v980
    %v1051 = vunpack.c.h.b16 %v980
    %v1052 = vunpack.c.l.b16 %v981
    %v1053 = vunpack.c.l.b16 %v982
    %v1054 = vunpack.c.h.b16 %v982
    %v1055 = vunpack.c.l.b16 %v983
    %v1056 = vunpack.c.l.b16 %v984
    %v1057 = vunpack.c.h.b16 %v984
    %v1058 = vunpack.c.l.b16 %v985
    %v1059 = vunpack.c.l.b16 %v986
    %v1060 = vunpack.c.h.b16 %v986
    %v1061 = vunpack.c.l.b16 %v987
    %v1062 = vunpack.c.l.b16 %v988
    %v1063 = vunpack.c.h.b16 %v988
    %v1064 = vunpack.c.l.b16 %v989
    %v1065 = vunpack.c.l.b16 %v990
    %v1066 = vunpack.c.h.b16 %v990
    %v1067 = vunpack.c.l.b16 %v991
    %v1068 = vunpack.c.l.b16 %v992
    %v1069 = vunpack.c.h.b16 %v992
    %v1070 = vunpack.c.l.b16 %v993
    %v1071 = vunpack.c.l.b16 %v994
    %v1072 = vunpack.c.h.b16 %v994
    %v1073 = vunpack.c.l.b16 %v995
    %v1074 = vunpack.c.l.b16 %v996
    %v1075 = vunpack.c.h.b16 %v996
    %v1076 = vunpack.c.l.b16 %v997
    %v1077 = vunpack.c.l.b16 %v998
    %v1078 = vunpack.c.h.b16 %v998
    %v1079 = vunpack.c.l.b16 %v999
    %v1080 = vpack.c.b16 %v1035, %v1032
    %v1081 = vpack.c.b16 %v1036, %v1033
    %v1082 = vpack.c.b16 %v1037, %v1034
    %v1083 = vpack.c.b16 %v1041, %v1038
    %v1084 = vpack.c.b16 %v1042, %v1039
    %v1085 = vpack.c.b16 %v1043, %v1040
    %v1086 = vpack.c.b16 %v1047, %v1044
    %v1087 = vpack.c.b16 %v1048, %v1045
    %v1088 = vpack.c.b16 %v1049, %v1046
    %v1089 = vpack.c.b16 %v1053, %v1050
    %v1090 = vpack.c.b16 %v1054, %v1051
    %v1091 = vpack.c.b16 %v1055, %v1052
    %v1092 = vpack.c.b16 %v1059, %v1056
    %v1093 = vpack.c.b16 %v1060, %v1057
    %v1094 = vpack.c.b16 %v1061, %v1058
    %v1095 = vpack.c.b16 %v1065, %v1062
    %v1096 = vpack.c.b16 %v1066, %v1063
    %v1097 = vpack.c.b16 %v1067, %v1064
    %v1098 = vpack.c.b16 %v1071, %v1068
    %v1099 = vpack.c.b16 %v1072, %v1069
    %v1100 = vpack.c.b16 %v1073, %v1070
    %v1101 = vpack.c.b16 %v1077, %v1074
    %v1102 = vpack.c.b16 %v1078, %v1075
    %v1103 = vpack.c.b16 %v1079, %v1076
    %1128 = vmatprep.subr.bf16.mxu0 %v1081
    %1129 = vmatpush1.bf16.msra.mxu0 %v1080
    %1130 = vmatprep.subr.bf16.mxu0 %v1084
    %1131 = vmatpush1.bf16.msra.mxu0 %v1083
    %1132 = vmatprep.subr.bf16.mxu0 %v1087
    %1133 = vmatpush1.bf16.msra.mxu0 %v1086
    %1134 = vmatprep.subr.bf16.mxu0 %v1090
    %1135 = vmatpush1.bf16.msra.mxu0 %v1089
    %1136 = vmatprep.subr.bf16.mxu0 %v1093
    %1137 = vmatpush1.bf16.msra.mxu0 %v1092
    %1138 = vmatprep.subr.bf16.mxu0 %v1096
    %1139 = vmatpush1.bf16.msra.mxu0 %v1095
    %1140 = vmatprep.subr.bf16.mxu0 %v1099
    %1141 = vmatpush1.bf16.msra.mxu0 %v1098
    %1142 = vmatprep.subr.bf16.mxu0 %v1102
    %1143 = vmatpush1.bf16.msra.mxu0 %v1101
    %1144 = vmatprep.subr.bf16.mxu0 0
    %1145 = vmatpush1.bf16.msra.mxu0 0
    %1146 = vmatprep.subr.bf16.mxu0 0
    %1147 = vmatpush1.bf16.msra.mxu0 0
    %1148 = vmatprep.subr.bf16.mxu0 0
    %1149 = vmatpush1.bf16.msra.mxu0 0
    %1150 = vmatprep.subr.bf16.mxu0 0
    %1151 = vmatpush1.bf16.msra.mxu0 0
    %1152 = vmatprep.subr.bf16.mxu0 0
    %1153 = vmatpush1.bf16.msra.mxu0 0
    %1154 = vmatprep.subr.bf16.mxu0 0
    %1155 = vmatpush1.bf16.msra.mxu0 0
    %1156 = vmatprep.subr.bf16.mxu0 0
    %1157 = vmatpush1.bf16.msra.mxu0 0
    %1158 = vmatprep.subr.bf16.mxu0 0
    %1159 = vmatpush1.bf16.msra.mxu0 0
    %1160 = vmatprep.mubr.bf16.mxu0 0
    %1161 = vmatmul.mubr.bf16.gmra.mrb[0].mxu0 %v967
    %v1162 = vpop.f32.mrb[0].mxu0
    %v1163 = vadd.f32 0.0, %v1162
    %v1164 = vpop.f32.mrb[0].mxu0
    %v1165 = vadd.f32 0.0, %v1164
    %v1166 = vpop.f32.mrb[0].mxu0
    %v1167 = vpop.f32.mrb[0].mxu0
    %1168 = vdwg.mxu0
    %1169 = vmatprep.subr.bf16.mxu0 0
    %1170 = vmatpush1.bf16.msra.mxu0 %v1082
    %1171 = vmatprep.subr.bf16.mxu0 0
    %1172 = vmatpush1.bf16.msra.mxu0 %v1085
    %1173 = vmatprep.subr.bf16.mxu0 0
    %1174 = vmatpush1.bf16.msra.mxu0 %v1088
    %1175 = vmatprep.subr.bf16.mxu0 0
    %1176 = vmatpush1.bf16.msra.mxu0 %v1091
    %1177 = vmatprep.subr.bf16.mxu0 0
    %1178 = vmatpush1.bf16.msra.mxu0 %v1094
    %1179 = vmatprep.subr.bf16.mxu0 0
    %1180 = vmatpush1.bf16.msra.mxu0 %v1097
    %1181 = vmatprep.subr.bf16.mxu0 0
    %1182 = vmatpush1.bf16.msra.mxu0 %v1100
    %1183 = vmatprep.subr.bf16.mxu0 0
    %1184 = vmatpush1.bf16.msra.mxu0 %v1103
    %1185 = vmatprep.subr.bf16.mxu0 0
    %1186 = vmatpush1.bf16.msra.mxu0 0
    %1187 = vmatprep.subr.bf16.mxu0 0
    %1188 = vmatpush1.bf16.msra.mxu0 0
    %1189 = vmatprep.subr.bf16.mxu0 0
    %1190 = vmatpush1.bf16.msra.mxu0 0
    %1191 = vmatprep.subr.bf16.mxu0 0
    %1192 = vmatpush1.bf16.msra.mxu0 0
    %1193 = vmatprep.subr.bf16.mxu0 0
    %1194 = vmatpush1.bf16.msra.mxu0 0
    %1195 = vmatprep.subr.bf16.mxu0 0
    %1196 = vmatpush1.bf16.msra.mxu0 0
    %1197 = vmatprep.subr.bf16.mxu0 0
    %1198 = vmatpush1.bf16.msra.mxu0 0
    %1199 = vmatprep.subr.bf16.mxu0 0
    %1200 = vmatpush1.bf16.msra.mxu0 0
    %1201 = vmatprep.mubr.bf16.mxu0 0
    %1202 = vmatmul.mubr.bf16.gmra.mrb[0].mxu0 %v967
    %v1203 = vpop.f32.mrb[0].mxu0
    %v1204 = vadd.f32 0.0, %v1203
    %v1205 = vpop.f32.mrb[0].mxu0
    %v1206 = vpop.f32.mrb[0].mxu0
    %v1207 = vpop.f32.mrb[0].mxu0
    %1208 = vdwg.mxu0
    %v1209 = vadd.f32 %v964, %v1163
    %v1210 = vxor.u32 %v1209, 2147483648
    %v1211 = vmul.f32 %v1210, 1.442695
    %v1212 = vpow.pop %v1211
    %v1213 = vadd.f32 %v1212, 1.0
    %v1214 = vrcp.pop %v1213
    %v1215 = vmul.f32 1.0, %v1214
    %v1216 = vadd.f32 %v965, %v1165
    %v1217 = vxor.u32 %v1216, 2147483648
    %v1218 = vmul.f32 %v1217, 1.442695
    %v1219 = vpow.pop %v1218
    %v1220 = vadd.f32 %v1219, 1.0
    %v1221 = vrcp.pop %v1220
    %v1222 = vmul.f32 1.0, %v1221
    %v1223 = vadd.f32 %v1204, %v424
    %v1224 = vmul.f32 %v1215, %v1223
    %v1225 = vadd.f32 %v966, %v1224
    %v1226 = vtanh.pop %v1225
    %v1227 = vsub.f32 %v960, %v1226
    %v1228 = vmul.f32 %v1222, %v1227
    %v1229 = vadd.f32 %v1226, %v1228
    %s1230 = scalar_lea.vmem [#allocation10], 16
    %1231 = vst [vmem:[%s1230] sm:$0xff] %v1229
    %s1232 = scalar_lea.vmem [#allocation3], 72
    %v1233 = vld [vmem:[%s1232] sm:$0xff]
    %v1234 = vld [vmem:[%s1232 + $0x8] sm:$0xff]
    %v1235 = vld [vmem:[%s1232 + $0x10] sm:$0xff]
    %v1236 = vpack.c.bf16 %v1229, %v1229
    %v1237 = vld [vmem:[#allocation9] sm:$0xff]
    %v1238 = vld [vmem:[#allocation9 + $0x8] sm:$0xf]
    %v1239 = vld [vmem:[#allocation9 + $0xc] sm:$0xff]
    %v1240 = vld [vmem:[#allocation9 + $0x14] sm:$0xf]
    %v1241 = vld [vmem:[#allocation9 + $0x18] sm:$0xff]
    %v1242 = vld [vmem:[#allocation9 + $0x20] sm:$0xf]
    %v1243 = vld [vmem:[#allocation9 + $0x24] sm:$0xff]
    %v1244 = vld [vmem:[#allocation9 + $0x2c] sm:$0xf]
    %v1245 = vld [vmem:[#allocation9 + $0x30] sm:$0xff]
    %v1246 = vld [vmem:[#allocation9 + $0x38] sm:$0xf]
    %v1247 = vld [vmem:[#allocation9 + $0x3c] sm:$0xff]
    %v1248 = vld [vmem:[#allocation9 + $0x44] sm:$0xf]
    %v1249 = vld [vmem:[#allocation9 + $0x48] sm:$0xff]
    %v1250 = vld [vmem:[#allocation9 + $0x50] sm:$0xf]
    %v1251 = vld [vmem:[#allocation9 + $0x54] sm:$0xff]
    %v1252 = vld [vmem:[#allocation9 + $0x5c] sm:$0xf]
    %v1253 = vld [vmem:[#allocation9 + $0x60] sm:$0xff]
    %v1254 = vld [vmem:[#allocation9 + $0x68] sm:$0xf]
    %v1255 = vld [vmem:[#allocation9 + $0x6c] sm:$0xff]
    %v1256 = vld [vmem:[#allocation9 + $0x74] sm:$0xf]
    %v1257 = vld [vmem:[#allocation9 + $0x78] sm:$0xff]
    %v1258 = vld [vmem:[#allocation9 + $0x80] sm:$0xf]
    %v1259 = vld [vmem:[#allocation9 + $0x84] sm:$0xff]
    %v1260 = vld [vmem:[#allocation9 + $0x8c] sm:$0xf]
    %v1261 = vld [vmem:[#allocation9 + $0x90] sm:$0xff]
    %v1262 = vld [vmem:[#allocation9 + $0x98] sm:$0xf]
    %v1263 = vld [vmem:[#allocation9 + $0x9c] sm:$0xff]
    %v1264 = vld [vmem:[#allocation9 + $0xa4] sm:$0xf]
    %v1265 = vld [vmem:[#allocation9 + $0xa8] sm:$0xff]
    %v1266 = vld [vmem:[#allocation9 + $0xb0] sm:$0xf]
    %v1267 = vld [vmem:[#allocation9 + $0xb4] sm:$0xff]
    %v1268 = vld [vmem:[#allocation9 + $0xbc] sm:$0xf]
    %v1301 = vunpack.c.l.b16 %v1237
    %v1302 = vunpack.c.h.b16 %v1237
    %v1303 = vunpack.c.l.b16 %v1238
    %v1304 = vunpack.c.l.b16 %v1239
    %v1305 = vunpack.c.h.b16 %v1239
    %v1306 = vunpack.c.l.b16 %v1240
    %v1307 = vunpack.c.l.b16 %v1241
    %v1308 = vunpack.c.h.b16 %v1241
    %v1309 = vunpack.c.l.b16 %v1242
    %v1310 = vunpack.c.l.b16 %v1243
    %v1311 = vunpack.c.h.b16 %v1243
    %v1312 = vunpack.c.l.b16 %v1244
    %v1313 = vunpack.c.l.b16 %v1245
    %v1314 = vunpack.c.h.b16 %v1245
    %v1315 = vunpack.c.l.b16 %v1246
    %v1316 = vunpack.c.l.b16 %v1247
    %v1317 = vunpack.c.h.b16 %v1247
    %v1318 = vunpack.c.l.b16 %v1248
    %v1319 = vunpack.c.l.b16 %v1249
    %v1320 = vunpack.c.h.b16 %v1249
    %v1321 = vunpack.c.l.b16 %v1250
    %v1322 = vunpack.c.l.b16 %v1251
    %v1323 = vunpack.c.h.b16 %v1251
    %v1324 = vunpack.c.l.b16 %v1252
    %v1325 = vunpack.c.l.b16 %v1253
    %v1326 = vunpack.c.h.b16 %v1253
    %v1327 = vunpack.c.l.b16 %v1254
    %v1328 = vunpack.c.l.b16 %v1255
    %v1329 = vunpack.c.h.b16 %v1255
    %v1330 = vunpack.c.l.b16 %v1256
    %v1331 = vunpack.c.l.b16 %v1257
    %v1332 = vunpack.c.h.b16 %v1257
    %v1333 = vunpack.c.l.b16 %v1258
    %v1334 = vunpack.c.l.b16 %v1259
    %v1335 = vunpack.c.h.b16 %v1259
    %v1336 = vunpack.c.l.b16 %v1260
    %v1337 = vunpack.c.l.b16 %v1261
    %v1338 = vunpack.c.h.b16 %v1261
    %v1339 = vunpack.c.l.b16 %v1262
    %v1340 = vunpack.c.l.b16 %v1263
    %v1341 = vunpack.c.h.b16 %v1263
    %v1342 = vunpack.c.l.b16 %v1264
    %v1343 = vunpack.c.l.b16 %v1265
    %v1344 = vunpack.c.h.b16 %v1265
    %v1345 = vunpack.c.l.b16 %v1266
    %v1346 = vunpack.c.l.b16 %v1267
    %v1347 = vunpack.c.h.b16 %v1267
    %v1348 = vunpack.c.l.b16 %v1268
    %v1349 = vpack.c.b16 %v1304, %v1301
    %v1350 = vpack.c.b16 %v1305, %v1302
    %v1351 = vpack.c.b16 %v1306, %v1303
    %v1352 = vpack.c.b16 %v1310, %v1307
    %v1353 = vpack.c.b16 %v1311, %v1308
    %v1354 = vpack.c.b16 %v1312, %v1309
    %v1355 = vpack.c.b16 %v1316, %v1313
    %v1356 = vpack.c.b16 %v1317, %v1314
    %v1357 = vpack.c.b16 %v1318, %v1315
    %v1358 = vpack.c.b16 %v1322, %v1319
    %v1359 = vpack.c.b16 %v1323, %v1320
    %v1360 = vpack.c.b16 %v1324, %v1321
    %v1361 = vpack.c.b16 %v1328, %v1325
    %v1362 = vpack.c.b16 %v1329, %v1326
    %v1363 = vpack.c.b16 %v1330, %v1327
    %v1364 = vpack.c.b16 %v1334, %v1331
    %v1365 = vpack.c.b16 %v1335, %v1332
    %v1366 = vpack.c.b16 %v1336, %v1333
    %v1367 = vpack.c.b16 %v1340, %v1337
    %v1368 = vpack.c.b16 %v1341, %v1338
    %v1369 = vpack.c.b16 %v1342, %v1339
    %v1370 = vpack.c.b16 %v1346, %v1343
    %v1371 = vpack.c.b16 %v1347, %v1344
    %v1372 = vpack.c.b16 %v1348, %v1345
    %1397 = vmatprep.subr.bf16.mxu0 %v1350
    %1398 = vmatpush1.bf16.msra.mxu0 %v1349
    %1399 = vmatprep.subr.bf16.mxu0 %v1353
    %1400 = vmatpush1.bf16.msra.mxu0 %v1352
    %1401 = vmatprep.subr.bf16.mxu0 %v1356
    %1402 = vmatpush1.bf16.msra.mxu0 %v1355
    %1403 = vmatprep.subr.bf16.mxu0 %v1359
    %1404 = vmatpush1.bf16.msra.mxu0 %v1358
    %1405 = vmatprep.subr.bf16.mxu0 %v1362
    %1406 = vmatpush1.bf16.msra.mxu0 %v1361
    %1407 = vmatprep.subr.bf16.mxu0 %v1365
    %1408 = vmatpush1.bf16.msra.mxu0 %v1364
    %1409 = vmatprep.subr.bf16.mxu0 %v1368
    %1410 = vmatpush1.bf16.msra.mxu0 %v1367
    %1411 = vmatprep.subr.bf16.mxu0 %v1371
    %1412 = vmatpush1.bf16.msra.mxu0 %v1370
    %1413 = vmatprep.subr.bf16.mxu0 0
    %1414 = vmatpush1.bf16.msra.mxu0 0
    %1415 = vmatprep.subr.bf16.mxu0 0
    %1416 = vmatpush1.bf16.msra.mxu0 0
    %1417 = vmatprep.subr.bf16.mxu0 0
    %1418 = vmatpush1.bf16.msra.mxu0 0
    %1419 = vmatprep.subr.bf16.mxu0 0
    %1420 = vmatpush1.bf16.msra.mxu0 0
    %1421 = vmatprep.subr.bf16.mxu0 0
    %1422 = vmatpush1.bf16.msra.mxu0 0
    %1423 = vmatprep.subr.bf16.mxu0 0
    %1424 = vmatpush1.bf16.msra.mxu0 0
    %1425 = vmatprep.subr.bf16.mxu0 0
    %1426 = vmatpush1.bf16.msra.mxu0 0
    %1427 = vmatprep.subr.bf16.mxu0 0
    %1428 = vmatpush1.bf16.msra.mxu0 0
    %1429 = vmatprep.mubr.bf16.mxu0 0
    %1430 = vmatmul.mubr.bf16.gmra.mrb[0].mxu0 %v1236
    %v1431 = vpop.f32.mrb[0].mxu0
    %v1432 = vadd.f32 0.0, %v1431
    %v1433 = vpop.f32.mrb[0].mxu0
    %v1434 = vadd.f32 0.0, %v1433
    %v1435 = vpop.f32.mrb[0].mxu0
    %v1436 = vpop.f32.mrb[0].mxu0
    %1437 = vdwg.mxu0
    %1438 = vmatprep.subr.bf16.mxu0 0
    %1439 = vmatpush1.bf16.msra.mxu0 %v1351
    %1440 = vmatprep.subr.bf16.mxu0 0
    %1441 = vmatpush1.bf16.msra.mxu0 %v1354
    %1442 = vmatprep.subr.bf16.mxu0 0
    %1443 = vmatpush1.bf16.msra.mxu0 %v1357
    %1444 = vmatprep.subr.bf16.mxu0 0
    %1445 = vmatpush1.bf16.msra.mxu0 %v1360
    %1446 = vmatprep.subr.bf16.mxu0 0
    %1447 = vmatpush1.bf16.msra.mxu0 %v1363
    %1448 = vmatprep.subr.bf16.mxu0 0
    %1449 = vmatpush1.bf16.msra.mxu0 %v1366
    %1450 = vmatprep.subr.bf16.mxu0 0
    %1451 = vmatpush1.bf16.msra.mxu0 %v1369
    %1452 = vmatprep.subr.bf16.mxu0 0
    %1453 = vmatpush1.bf16.msra.mxu0 %v1372
    %1454 = vmatprep.subr.bf16.mxu0 0
    %1455 = vmatpush1.bf16.msra.mxu0 0
    %1456 = vmatprep.subr.bf16.mxu0 0
    %1457 = vmatpush1.bf16.msra.mxu0 0
    %1458 = vmatprep.subr.bf16.mxu0 0
    %1459 = vmatpush1.bf16.msra.mxu0 0
    %1460 = vmatprep.subr.bf16.mxu0 0
    %1461 = vmatpush1.bf16.msra.mxu0 0
    %1462 = vmatprep.subr.bf16.mxu0 0
    %1463 = vmatpush1.bf16.msra.mxu0 0
    %1464 = vmatprep.subr.bf16.mxu0 0
    %1465 = vmatpush1.bf16.msra.mxu0 0
    %1466 = vmatprep.subr.bf16.mxu0 0
    %1467 = vmatpush1.bf16.msra.mxu0 0
    %1468 = vmatprep.subr.bf16.mxu0 0
    %1469 = vmatpush1.bf16.msra.mxu0 0
    %1470 = vmatprep.mubr.bf16.mxu0 0
    %1471 = vmatmul.mubr.bf16.gmra.mrb[0].mxu0 %v1236
    %v1472 = vpop.f32.mrb[0].mxu0
    %v1473 = vadd.f32 0.0, %v1472
    %v1474 = vpop.f32.mrb[0].mxu0
    %v1475 = vpop.f32.mrb[0].mxu0
    %v1476 = vpop.f32.mrb[0].mxu0
    %1477 = vdwg.mxu0
    %v1478 = vadd.f32 %v1233, %v1432
    %v1479 = vxor.u32 %v1478, 2147483648
    %v1480 = vmul.f32 %v1479, 1.442695
    %v1481 = vpow.pop %v1480
    %v1482 = vadd.f32 %v1481, 1.0
    %v1483 = vrcp.pop %v1482
    %v1484 = vmul.f32 1.0, %v1483
    %v1485 = vadd.f32 %v1234, %v1434
    %v1486 = vxor.u32 %v1485, 2147483648
    %v1487 = vmul.f32 %v1486, 1.442695
    %v1488 = vpow.pop %v1487
    %v1489 = vadd.f32 %v1488, 1.0
    %v1490 = vrcp.pop %v1489
    %v1491 = vmul.f32 1.0, %v1490
    %v1492 = vadd.f32 %v1473, %v424
    %v1493 = vmul.f32 %v1484, %v1492
    %v1494 = vadd.f32 %v1235, %v1493
    %v1495 = vtanh.pop %v1494
    %v1496 = vsub.f32 %v1229, %v1495
    %v1497 = vmul.f32 %v1491, %v1496
    %v1498 = vadd.f32 %v1495, %v1497
    %s1499 = scalar_lea.vmem [#allocation10], 24
    %1500 = vst [vmem:[%s1499] sm:$0xff] %v1498
    %s1501 = scalar_lea.vmem [#allocation3], 96
    %v1502 = vld [vmem:[%s1501] sm:$0xff]
    %v1503 = vld [vmem:[%s1501 + $0x8] sm:$0xff]
    %v1504 = vld [vmem:[%s1501 + $0x10] sm:$0xff]
    %v1505 = vpack.c.bf16 %v1498, %v1498
    %v1506 = vld [vmem:[#allocation9] sm:$0xff]
    %v1507 = vld [vmem:[#allocation9 + $0x8] sm:$0xf]
    %v1508 = vld [vmem:[#allocation9 + $0xc] sm:$0xff]
    %v1509 = vld [vmem:[#allocation9 + $0x14] sm:$0xf]
    %v1510 = vld [vmem:[#allocation9 + $0x18] sm:$0xff]
    %v1511 = vld [vmem:[#allocation9 + $0x20] sm:$0xf]
    %v1512 = vld [vmem:[#allocation9 + $0x24] sm:$0xff]
    %v1513 = vld [vmem:[#allocation9 + $0x2c] sm:$0xf]
    %v1514 = vld [vmem:[#allocation9 + $0x30] sm:$0xff]
    %v1515 = vld [vmem:[#allocation9 + $0x38] sm:$0xf]
    %v1516 = vld [vmem:[#allocation9 + $0x3c] sm:$0xff]
    %v1517 = vld [vmem:[#allocation9 + $0x44] sm:$0xf]
    %v1518 = vld [vmem:[#allocation9 + $0x48] sm:$0xff]
    %v1519 = vld [vmem:[#allocation9 + $0x50] sm:$0xf]
    %v1520 = vld [vmem:[#allocation9 + $0x54] sm:$0xff]
    %v1521 = vld [vmem:[#allocation9 + $0x5c] sm:$0xf]
    %v1522 = vld [vmem:[#allocation9 + $0x60] sm:$0xff]
    %v1523 = vld [vmem:[#allocation9 + $0x68] sm:$0xf]
    %v1524 = vld [vmem:[#allocation9 + $0x6c] sm:$0xff]
    %v1525 = vld [vmem:[#allocation9 + $0x74] sm:$0xf]
    %v1526 = vld [vmem:[#allocation9 + $0x78] sm:$0xff]
    %v1527 = vld [vmem:[#allocation9 + $0x80] sm:$0xf]
    %v1528 = vld [vmem:[#allocation9 + $0x84] sm:$0xff]
    %v1529 = vld [vmem:[#allocation9 + $0x8c] sm:$0xf]
    %v1530 = vld [vmem:[#allocation9 + $0x90] sm:$0xff]
    %v1531 = vld [vmem:[#allocation9 + $0x98] sm:$0xf]
    %v1532 = vld [vmem:[#allocation9 + $0x9c] sm:$0xff]
    %v1533 = vld [vmem:[#allocation9 + $0xa4] sm:$0xf]
    %v1534 = vld [vmem:[#allocation9 + $0xa8] sm:$0xff]
    %v1535 = vld [vmem:[#allocation9 + $0xb0] sm:$0xf]
    %v1536 = vld [vmem:[#allocation9 + $0xb4] sm:$0xff]
    %v1537 = vld [vmem:[#allocation9 + $0xbc] sm:$0xf]
    %v1570 = vunpack.c.l.b16 %v1506
    %v1571 = vunpack.c.h.b16 %v1506
    %v1572 = vunpack.c.l.b16 %v1507
    %v1573 = vunpack.c.l.b16 %v1508
    %v1574 = vunpack.c.h.b16 %v1508
    %v1575 = vunpack.c.l.b16 %v1509
    %v1576 = vunpack.c.l.b16 %v1510
    %v1577 = vunpack.c.h.b16 %v1510
    %v1578 = vunpack.c.l.b16 %v1511
    %v1579 = vunpack.c.l.b16 %v1512
    %v1580 = vunpack.c.h.b16 %v1512
    %v1581 = vunpack.c.l.b16 %v1513
    %v1582 = vunpack.c.l.b16 %v1514
    %v1583 = vunpack.c.h.b16 %v1514
    %v1584 = vunpack.c.l.b16 %v1515
    %v1585 = vunpack.c.l.b16 %v1516
    %v1586 = vunpack.c.h.b16 %v1516
    %v1587 = vunpack.c.l.b16 %v1517
    %v1588 = vunpack.c.l.b16 %v1518
    %v1589 = vunpack.c.h.b16 %v1518
    %v1590 = vunpack.c.l.b16 %v1519
    %v1591 = vunpack.c.l.b16 %v1520
    %v1592 = vunpack.c.h.b16 %v1520
    %v1593 = vunpack.c.l.b16 %v1521
    %v1594 = vunpack.c.l.b16 %v1522
    %v1595 = vunpack.c.h.b16 %v1522
    %v1596 = vunpack.c.l.b16 %v1523
    %v1597 = vunpack.c.l.b16 %v1524
    %v1598 = vunpack.c.h.b16 %v1524
    %v1599 = vunpack.c.l.b16 %v1525
    %v1600 = vunpack.c.l.b16 %v1526
    %v1601 = vunpack.c.h.b16 %v1526
    %v1602 = vunpack.c.l.b16 %v1527
    %v1603 = vunpack.c.l.b16 %v1528
    %v1604 = vunpack.c.h.b16 %v1528
    %v1605 = vunpack.c.l.b16 %v1529
    %v1606 = vunpack.c.l.b16 %v1530
    %v1607 = vunpack.c.h.b16 %v1530
    %v1608 = vunpack.c.l.b16 %v1531
    %v1609 = vunpack.c.l.b16 %v1532
    %v1610 = vunpack.c.h.b16 %v1532
    %v1611 = vunpack.c.l.b16 %v1533
    %v1612 = vunpack.c.l.b16 %v1534
    %v1613 = vunpack.c.h.b16 %v1534
    %v1614 = vunpack.c.l.b16 %v1535
    %v1615 = vunpack.c.l.b16 %v1536
    %v1616 = vunpack.c.h.b16 %v1536
    %v1617 = vunpack.c.l.b16 %v1537
    %v1618 = vpack.c.b16 %v1573, %v1570
    %v1619 = vpack.c.b16 %v1574, %v1571
    %v1620 = vpack.c.b16 %v1575, %v1572
    %v1621 = vpack.c.b16 %v1579, %v1576
    %v1622 = vpack.c.b16 %v1580, %v1577
    %v1623 = vpack.c.b16 %v1581, %v1578
    %v1624 = vpack.c.b16 %v1585, %v1582
    %v1625 = vpack.c.b16 %v1586, %v1583
    %v1626 = vpack.c.b16 %v1587, %v1584
    %v1627 = vpack.c.b16 %v1591, %v1588
    %v1628 = vpack.c.b16 %v1592, %v1589
    %v1629 = vpack.c.b16 %v1593, %v1590
    %v1630 = vpack.c.b16 %v1597, %v1594
    %v1631 = vpack.c.b16 %v1598, %v1595
    %v1632 = vpack.c.b16 %v1599, %v1596
    %v1633 = vpack.c.b16 %v1603, %v1600
    %v1634 = vpack.c.b16 %v1604, %v1601
    %v1635 = vpack.c.b16 %v1605, %v1602
    %v1636 = vpack.c.b16 %v1609, %v1606
    %v1637 = vpack.c.b16 %v1610, %v1607
    %v1638 = vpack.c.b16 %v1611, %v1608
    %v1639 = vpack.c.b16 %v1615, %v1612
    %v1640 = vpack.c.b16 %v1616, %v1613
    %v1641 = vpack.c.b16 %v1617, %v1614
    %1666 = vmatprep.subr.bf16.mxu0 %v1619
    %1667 = vmatpush1.bf16.msra.mxu0 %v1618
    %1668 = vmatprep.subr.bf16.mxu0 %v1622
    %1669 = vmatpush1.bf16.msra.mxu0 %v1621
    %1670 = vmatprep.subr.bf16.mxu0 %v1625
    %1671 = vmatpush1.bf16.msra.mxu0 %v1624
    %1672 = vmatprep.subr.bf16.mxu0 %v1628
    %1673 = vmatpush1.bf16.msra.mxu0 %v1627
    %1674 = vmatprep.subr.bf16.mxu0 %v1631
    %1675 = vmatpush1.bf16.msra.mxu0 %v1630
    %1676 = vmatprep.subr.bf16.mxu0 %v1634
    %1677 = vmatpush1.bf16.msra.mxu0 %v1633
    %1678 = vmatprep.subr.bf16.mxu0 %v1637
    %1679 = vmatpush1.bf16.msra.mxu0 %v1636
    %1680 = vmatprep.subr.bf16.mxu0 %v1640
    %1681 = vmatpush1.bf16.msra.mxu0 %v1639
    %1682 = vmatprep.subr.bf16.mxu0 0
    %1683 = vmatpush1.bf16.msra.mxu0 0
    %1684 = vmatprep.subr.bf16.mxu0 0
    %1685 = vmatpush1.bf16.msra.mxu0 0
    %1686 = vmatprep.subr.bf16.mxu0 0
    %1687 = vmatpush1.bf16.msra.mxu0 0
    %1688 = vmatprep.subr.bf16.mxu0 0
    %1689 = vmatpush1.bf16.msra.mxu0 0
    %1690 = vmatprep.subr.bf16.mxu0 0
    %1691 = vmatpush1.bf16.msra.mxu0 0
    %1692 = vmatprep.subr.bf16.mxu0 0
    %1693 = vmatpush1.bf16.msra.mxu0 0
    %1694 = vmatprep.subr.bf16.mxu0 0
    %1695 = vmatpush1.bf16.msra.mxu0 0
    %1696 = vmatprep.subr.bf16.mxu0 0
    %1697 = vmatpush1.bf16.msra.mxu0 0
    %1698 = vmatprep.mubr.bf16.mxu0 0
    %1699 = vmatmul.mubr.bf16.gmra.mrb[0].mxu0 %v1505
    %v1700 = vpop.f32.mrb[0].mxu0
    %v1701 = vadd.f32 0.0, %v1700
    %v1702 = vpop.f32.mrb[0].mxu0
    %v1703 = vadd.f32 0.0, %v1702
    %v1704 = vpop.f32.mrb[0].mxu0
    %v1705 = vpop.f32.mrb[0].mxu0
    %1706 = vdwg.mxu0
    %1707 = vmatprep.subr.bf16.mxu0 0
    %1708 = vmatpush1.bf16.msra.mxu0 %v1620
    %1709 = vmatprep.subr.bf16.mxu0 0
    %1710 = vmatpush1.bf16.msra.mxu0 %v1623
    %1711 = vmatprep.subr.bf16.mxu0 0
    %1712 = vmatpush1.bf16.msra.mxu0 %v1626
    %1713 = vmatprep.subr.bf16.mxu0 0
    %1714 = vmatpush1.bf16.msra.mxu0 %v1629
    %1715 = vmatprep.subr.bf16.mxu0 0
    %1716 = vmatpush1.bf16.msra.mxu0 %v1632
    %1717 = vmatprep.subr.bf16.mxu0 0
    %1718 = vmatpush1.bf16.msra.mxu0 %v1635
    %1719 = vmatprep.subr.bf16.mxu0 0
    %1720 = vmatpush1.bf16.msra.mxu0 %v1638
    %1721 = vmatprep.subr.bf16.mxu0 0
    %1722 = vmatpush1.bf16.msra.mxu0 %v1641
    %1723 = vmatprep.subr.bf16.mxu0 0
    %1724 = vmatpush1.bf16.msra.mxu0 0
    %1725 = vmatprep.subr.bf16.mxu0 0
    %1726 = vmatpush1.bf16.msra.mxu0 0
    %1727 = vmatprep.subr.bf16.mxu0 0
    %1728 = vmatpush1.bf16.msra.mxu0 0
    %1729 = vmatprep.subr.bf16.mxu0 0
    %1730 = vmatpush1.bf16.msra.mxu0 0
    %1731 = vmatprep.subr.bf16.mxu0 0
    %1732 = vmatpush1.bf16.msra.mxu0 0
    %1733 = vmatprep.subr.bf16.mxu0 0
    %1734 = vmatpush1.bf16.msra.mxu0 0
    %1735 = vmatprep.subr.bf16.mxu0 0
    %1736 = vmatpush1.bf16.msra.mxu0 0
    %1737 = vmatprep.subr.bf16.mxu0 0
    %1738 = vmatpush1.bf16.msra.mxu0 0
    %1739 = vmatprep.mubr.bf16.mxu0 0
    %1740 = vmatmul.mubr.bf16.gmra.mrb[0].mxu0 %v1505
    %v1741 = vpop.f32.mrb[0].mxu0
    %v1742 = vadd.f32 0.0, %v1741
    %v1743 = vpop.f32.mrb[0].mxu0
    %v1744 = vpop.f32.mrb[0].mxu0
    %v1745 = vpop.f32.mrb[0].mxu0
    %1746 = vdwg.mxu0
    %v1747 = vadd.f32 %v1502, %v1701
    %v1748 = vxor.u32 %v1747, 2147483648
    %v1749 = vmul.f32 %v1748, 1.442695
    %v1750 = vpow.pop %v1749
    %v1751 = vadd.f32 %v1750, 1.0
    %v1752 = vrcp.pop %v1751
    %v1753 = vmul.f32 1.0, %v1752
    %v1754 = vadd.f32 %v1503, %v1703
    %v1755 = vxor.u32 %v1754, 2147483648
    %v1756 = vmul.f32 %v1755, 1.442695
    %v1757 = vpow.pop %v1756
    %v1758 = vadd.f32 %v1757, 1.0
    %v1759 = vrcp.pop %v1758
    %v1760 = vmul.f32 1.0, %v1759
    %v1761 = vadd.f32 %v1742, %v424
    %v1762 = vmul.f32 %v1753, %v1761
    %v1763 = vadd.f32 %v1504, %v1762
    %v1764 = vtanh.pop %v1763
    %v1765 = vsub.f32 %v1498, %v1764
    %v1766 = vmul.f32 %v1760, %v1765
    %v1767 = vadd.f32 %v1764, %v1766
    %s1768 = scalar_lea.vmem [#allocation10], 32
    %1769 = vst [vmem:[%s1768] sm:$0xff] %v1767
    %s1770 = scalar_lea.vmem [#allocation3], 120
    %v1771 = vld [vmem:[%s1770] sm:$0xff]
    %v1772 = vld [vmem:[%s1770 + $0x8] sm:$0xff]
    %v1773 = vld [vmem:[%s1770 + $0x10] sm:$0xff]
    %v1774 = vpack.c.bf16 %v1767, %v1767
    %v1775 = vld [vmem:[#allocation9] sm:$0xff]
    %v1776 = vld [vmem:[#allocation9 + $0x8] sm:$0xf]
    %v1777 = vld [vmem:[#allocation9 + $0xc] sm:$0xff]
    %v1778 = vld [vmem:[#allocation9 + $0x14] sm:$0xf]
    %v1779 = vld [vmem:[#allocation9 + $0x18] sm:$0xff]
    %v1780 = vld [vmem:[#allocation9 + $0x20] sm:$0xf]
    %v1781 = vld [vmem:[#allocation9 + $0x24] sm:$0xff]
    %v1782 = vld [vmem:[#allocation9 + $0x2c] sm:$0xf]
    %v1783 = vld [vmem:[#allocation9 + $0x30] sm:$0xff]
    %v1784 = vld [vmem:[#allocation9 + $0x38] sm:$0xf]
    %v1785 = vld [vmem:[#allocation9 + $0x3c] sm:$0xff]
    %v1786 = vld [vmem:[#allocation9 + $0x44] sm:$0xf]
    %v1787 = vld [vmem:[#allocation9 + $0x48] sm:$0xff]
    %v1788 = vld [vmem:[#allocation9 + $0x50] sm:$0xf]
    %v1789 = vld [vmem:[#allocation9 + $0x54] sm:$0xff]
    %v1790 = vld [vmem:[#allocation9 + $0x5c] sm:$0xf]
    %v1791 = vld [vmem:[#allocation9 + $0x60] sm:$0xff]
    %v1792 = vld [vmem:[#allocation9 + $0x68] sm:$0xf]
    %v1793 = vld [vmem:[#allocation9 + $0x6c] sm:$0xff]
    %v1794 = vld [vmem:[#allocation9 + $0x74] sm:$0xf]
    %v1795 = vld [vmem:[#allocation9 + $0x78] sm:$0xff]
    %v1796 = vld [vmem:[#allocation9 + $0x80] sm:$0xf]
    %v1797 = vld [vmem:[#allocation9 + $0x84] sm:$0xff]
    %v1798 = vld [vmem:[#allocation9 + $0x8c] sm:$0xf]
    %v1799 = vld [vmem:[#allocation9 + $0x90] sm:$0xff]
    %v1800 = vld [vmem:[#allocation9 + $0x98] sm:$0xf]
    %v1801 = vld [vmem:[#allocation9 + $0x9c] sm:$0xff]
    %v1802 = vld [vmem:[#allocation9 + $0xa4] sm:$0xf]
    %v1803 = vld [vmem:[#allocation9 + $0xa8] sm:$0xff]
    %v1804 = vld [vmem:[#allocation9 + $0xb0] sm:$0xf]
    %v1805 = vld [vmem:[#allocation9 + $0xb4] sm:$0xff]
    %v1806 = vld [vmem:[#allocation9 + $0xbc] sm:$0xf]
    %v1839 = vunpack.c.l.b16 %v1775
    %v1840 = vunpack.c.h.b16 %v1775
    %v1841 = vunpack.c.l.b16 %v1776
    %v1842 = vunpack.c.l.b16 %v1777
    %v1843 = vunpack.c.h.b16 %v1777
    %v1844 = vunpack.c.l.b16 %v1778
    %v1845 = vunpack.c.l.b16 %v1779
    %v1846 = vunpack.c.h.b16 %v1779
    %v1847 = vunpack.c.l.b16 %v1780
    %v1848 = vunpack.c.l.b16 %v1781
    %v1849 = vunpack.c.h.b16 %v1781
    %v1850 = vunpack.c.l.b16 %v1782
    %v1851 = vunpack.c.l.b16 %v1783
    %v1852 = vunpack.c.h.b16 %v1783
    %v1853 = vunpack.c.l.b16 %v1784
    %v1854 = vunpack.c.l.b16 %v1785
    %v1855 = vunpack.c.h.b16 %v1785
    %v1856 = vunpack.c.l.b16 %v1786
    %v1857 = vunpack.c.l.b16 %v1787
    %v1858 = vunpack.c.h.b16 %v1787
    %v1859 = vunpack.c.l.b16 %v1788
    %v1860 = vunpack.c.l.b16 %v1789
    %v1861 = vunpack.c.h.b16 %v1789
    %v1862 = vunpack.c.l.b16 %v1790
    %v1863 = vunpack.c.l.b16 %v1791
    %v1864 = vunpack.c.h.b16 %v1791
    %v1865 = vunpack.c.l.b16 %v1792
    %v1866 = vunpack.c.l.b16 %v1793
    %v1867 = vunpack.c.h.b16 %v1793
    %v1868 = vunpack.c.l.b16 %v1794
    %v1869 = vunpack.c.l.b16 %v1795
    %v1870 = vunpack.c.h.b16 %v1795
    %v1871 = vunpack.c.l.b16 %v1796
    %v1872 = vunpack.c.l.b16 %v1797
    %v1873 = vunpack.c.h.b16 %v1797
    %v1874 = vunpack.c.l.b16 %v1798
    %v1875 = vunpack.c.l.b16 %v1799
    %v1876 = vunpack.c.h.b16 %v1799
    %v1877 = vunpack.c.l.b16 %v1800
    %v1878 = vunpack.c.l.b16 %v1801
    %v1879 = vunpack.c.h.b16 %v1801
    %v1880 = vunpack.c.l.b16 %v1802
    %v1881 = vunpack.c.l.b16 %v1803
    %v1882 = vunpack.c.h.b16 %v1803
    %v1883 = vunpack.c.l.b16 %v1804
    %v1884 = vunpack.c.l.b16 %v1805
    %v1885 = vunpack.c.h.b16 %v1805
    %v1886 = vunpack.c.l.b16 %v1806
    %v1887 = vpack.c.b16 %v1842, %v1839
    %v1888 = vpack.c.b16 %v1843, %v1840
    %v1889 = vpack.c.b16 %v1844, %v1841
    %v1890 = vpack.c.b16 %v1848, %v1845
    %v1891 = vpack.c.b16 %v1849, %v1846
    %v1892 = vpack.c.b16 %v1850, %v1847
    %v1893 = vpack.c.b16 %v1854, %v1851
    %v1894 = vpack.c.b16 %v1855, %v1852
    %v1895 = vpack.c.b16 %v1856, %v1853
    %v1896 = vpack.c.b16 %v1860, %v1857
    %v1897 = vpack.c.b16 %v1861, %v1858
    %v1898 = vpack.c.b16 %v1862, %v1859
    %v1899 = vpack.c.b16 %v1866, %v1863
    %v1900 = vpack.c.b16 %v1867, %v1864
    %v1901 = vpack.c.b16 %v1868, %v1865
    %v1902 = vpack.c.b16 %v1872, %v1869
    %v1903 = vpack.c.b16 %v1873, %v1870
    %v1904 = vpack.c.b16 %v1874, %v1871
    %v1905 = vpack.c.b16 %v1878, %v1875
    %v1906 = vpack.c.b16 %v1879, %v1876
    %v1907 = vpack.c.b16 %v1880, %v1877
    %v1908 = vpack.c.b16 %v1884, %v1881
    %v1909 = vpack.c.b16 %v1885, %v1882
    %v1910 = vpack.c.b16 %v1886, %v1883
    %1935 = vmatprep.subr.bf16.mxu0 %v1888
    %1936 = vmatpush1.bf16.msra.mxu0 %v1887
    %1937 = vmatprep.subr.bf16.mxu0 %v1891
    %1938 = vmatpush1.bf16.msra.mxu0 %v1890
    %1939 = vmatprep.subr.bf16.mxu0 %v1894
    %1940 = vmatpush1.bf16.msra.mxu0 %v1893
    %1941 = vmatprep.subr.bf16.mxu0 %v1897
    %1942 = vmatpush1.bf16.msra.mxu0 %v1896
    %1943 = vmatprep.subr.bf16.mxu0 %v1900
    %1944 = vmatpush1.bf16.msra.mxu0 %v1899
    %1945 = vmatprep.subr.bf16.mxu0 %v1903
    %1946 = vmatpush1.bf16.msra.mxu0 %v1902
    %1947 = vmatprep.subr.bf16.mxu0 %v1906
    %1948 = vmatpush1.bf16.msra.mxu0 %v1905
    %1949 = vmatprep.subr.bf16.mxu0 %v1909
    %1950 = vmatpush1.bf16.msra.mxu0 %v1908
    %1951 = vmatprep.subr.bf16.mxu0 0
    %1952 = vmatpush1.bf16.msra.mxu0 0
    %1953 = vmatprep.subr.bf16.mxu0 0
    %1954 = vmatpush1.bf16.msra.mxu0 0
    %1955 = vmatprep.subr.bf16.mxu0 0
    %1956 = vmatpush1.bf16.msra.mxu0 0
    %1957 = vmatprep.subr.bf16.mxu0 0
    %1958 = vmatpush1.bf16.msra.mxu0 0
    %1959 = vmatprep.subr.bf16.mxu0 0
    %1960 = vmatpush1.bf16.msra.mxu0 0
    %1961 = vmatprep.subr.bf16.mxu0 0
    %1962 = vmatpush1.bf16.msra.mxu0 0
    %1963 = vmatprep.subr.bf16.mxu0 0
    %1964 = vmatpush1.bf16.msra.mxu0 0
    %1965 = vmatprep.subr.bf16.mxu0 0
    %1966 = vmatpush1.bf16.msra.mxu0 0
    %1967 = vmatprep.mubr.bf16.mxu0 0
    %1968 = vmatmul.mubr.bf16.gmra.mrb[0].mxu0 %v1774
    %v1969 = vpop.f32.mrb[0].mxu0
    %v1970 = vadd.f32 0.0, %v1969
    %v1971 = vpop.f32.mrb[0].mxu0
    %v1972 = vadd.f32 0.0, %v1971
    %v1973 = vpop.f32.mrb[0].mxu0
    %v1974 = vpop.f32.mrb[0].mxu0
    %1975 = vdwg.mxu0
    %1976 = vmatprep.subr.bf16.mxu0 0
    %1977 = vmatpush1.bf16.msra.mxu0 %v1889
    %1978 = vmatprep.subr.bf16.mxu0 0
    %1979 = vmatpush1.bf16.msra.mxu0 %v1892
    %1980 = vmatprep.subr.bf16.mxu0 0
    %1981 = vmatpush1.bf16.msra.mxu0 %v1895
    %1982 = vmatprep.subr.bf16.mxu0 0
    %1983 = vmatpush1.bf16.msra.mxu0 %v1898
    %1984 = vmatprep.subr.bf16.mxu0 0
    %1985 = vmatpush1.bf16.msra.mxu0 %v1901
    %1986 = vmatprep.subr.bf16.mxu0 0
    %1987 = vmatpush1.bf16.msra.mxu0 %v1904
    %1988 = vmatprep.subr.bf16.mxu0 0
    %1989 = vmatpush1.bf16.msra.mxu0 %v1907
    %1990 = vmatprep.subr.bf16.mxu0 0
    %1991 = vmatpush1.bf16.msra.mxu0 %v1910
    %1992 = vmatprep.subr.bf16.mxu0 0
    %1993 = vmatpush1.bf16.msra.mxu0 0
    %1994 = vmatprep.subr.bf16.mxu0 0
    %1995 = vmatpush1.bf16.msra.mxu0 0
    %1996 = vmatprep.subr.bf16.mxu0 0
    %1997 = vmatpush1.bf16.msra.mxu0 0
    %1998 = vmatprep.subr.bf16.mxu0 0
    %1999 = vmatpush1.bf16.msra.mxu0 0
    %2000 = vmatprep.subr.bf16.mxu0 0
    %2001 = vmatpush1.bf16.msra.mxu0 0
    %2002 = vmatprep.subr.bf16.mxu0 0
    %2003 = vmatpush1.bf16.msra.mxu0 0
    %2004 = vmatprep.subr.bf16.mxu0 0
    %2005 = vmatpush1.bf16.msra.mxu0 0
    %2006 = vmatprep.subr.bf16.mxu0 0
    %2007 = vmatpush1.bf16.msra.mxu0 0
    %2008 = vmatprep.mubr.bf16.mxu0 0
    %2009 = vmatmul.mubr.bf16.gmra.mrb[0].mxu0 %v1774
    %v2010 = vpop.f32.mrb[0].mxu0
    %v2011 = vadd.f32 0.0, %v2010
    %v2012 = vpop.f32.mrb[0].mxu0
    %v2013 = vpop.f32.mrb[0].mxu0
    %v2014 = vpop.f32.mrb[0].mxu0
    %2015 = vdwg.mxu0
    %v2016 = vadd.f32 %v1771, %v1970
    %v2017 = vxor.u32 %v2016, 2147483648
    %v2018 = vmul.f32 %v2017, 1.442695
    %v2019 = vpow.pop %v2018
    %v2020 = vadd.f32 %v2019, 1.0
    %v2021 = vrcp.pop %v2020
    %v2022 = vmul.f32 1.0, %v2021
    %v2023 = vadd.f32 %v1772, %v1972
    %v2024 = vxor.u32 %v2023, 2147483648
    %v2025 = vmul.f32 %v2024, 1.442695
    %v2026 = vpow.pop %v2025
    %v2027 = vadd.f32 %v2026, 1.0
    %v2028 = vrcp.pop %v2027
    %v2029 = vmul.f32 1.0, %v2028
    %v2030 = vadd.f32 %v2011, %v424
    %v2031 = vmul.f32 %v2022, %v2030
    %v2032 = vadd.f32 %v1773, %v2031
    %v2033 = vtanh.pop %v2032
    %v2034 = vsub.f32 %v1767, %v2033
    %v2035 = vmul.f32 %v2029, %v2034
    %v2036 = vadd.f32 %v2033, %v2035
    %s2037 = scalar_lea.vmem [#allocation10], 40
    %2038 = vst [vmem:[%s2037] sm:$0xff] %v2036
    %s2039 = scalar_lea.vmem [#allocation3], 144
    %v2040 = vld [vmem:[%s2039] sm:$0xff]
    %v2041 = vld [vmem:[%s2039 + $0x8] sm:$0xff]
    %v2042 = vld [vmem:[%s2039 + $0x10] sm:$0xff]
    %v2043 = vpack.c.bf16 %v2036, %v2036
    %v2044 = vld [vmem:[#allocation9] sm:$0xff]
    %v2045 = vld [vmem:[#allocation9 + $0x8] sm:$0xf]
    %v2046 = vld [vmem:[#allocation9 + $0xc] sm:$0xff]
    %v2047 = vld [vmem:[#allocation9 + $0x14] sm:$0xf]
    %v2048 = vld [vmem:[#allocation9 + $0x18] sm:$0xff]
    %v2049 = vld [vmem:[#allocation9 + $0x20] sm:$0xf]
    %v2050 = vld [vmem:[#allocation9 + $0x24] sm:$0xff]
    %v2051 = vld [vmem:[#allocation9 + $0x2c] sm:$0xf]
    %v2052 = vld [vmem:[#allocation9 + $0x30] sm:$0xff]
    %v2053 = vld [vmem:[#allocation9 + $0x38] sm:$0xf]
    %v2054 = vld [vmem:[#allocation9 + $0x3c] sm:$0xff]
    %v2055 = vld [vmem:[#allocation9 + $0x44] sm:$0xf]
    %v2056 = vld [vmem:[#allocation9 + $0x48] sm:$0xff]
    %v2057 = vld [vmem:[#allocation9 + $0x50] sm:$0xf]
    %v2058 = vld [vmem:[#allocation9 + $0x54] sm:$0xff]
    %v2059 = vld [vmem:[#allocation9 + $0x5c] sm:$0xf]
    %v2060 = vld [vmem:[#allocation9 + $0x60] sm:$0xff]
    %v2061 = vld [vmem:[#allocation9 + $0x68] sm:$0xf]
    %v2062 = vld [vmem:[#allocation9 + $0x6c] sm:$0xff]
    %v2063 = vld [vmem:[#allocation9 + $0x74] sm:$0xf]
    %v2064 = vld [vmem:[#allocation9 + $0x78] sm:$0xff]
    %v2065 = vld [vmem:[#allocation9 + $0x80] sm:$0xf]
    %v2066 = vld [vmem:[#allocation9 + $0x84] sm:$0xff]
    %v2067 = vld [vmem:[#allocation9 + $0x8c] sm:$0xf]
    %v2068 = vld [vmem:[#allocation9 + $0x90] sm:$0xff]
    %v2069 = vld [vmem:[#allocation9 + $0x98] sm:$0xf]
    %v2070 = vld [vmem:[#allocation9 + $0x9c] sm:$0xff]
    %v2071 = vld [vmem:[#allocation9 + $0xa4] sm:$0xf]
    %v2072 = vld [vmem:[#allocation9 + $0xa8] sm:$0xff]
    %v2073 = vld [vmem:[#allocation9 + $0xb0] sm:$0xf]
    %v2074 = vld [vmem:[#allocation9 + $0xb4] sm:$0xff]
    %v2075 = vld [vmem:[#allocation9 + $0xbc] sm:$0xf]
    %v2108 = vunpack.c.l.b16 %v2044
    %v2109 = vunpack.c.h.b16 %v2044
    %v2110 = vunpack.c.l.b16 %v2045
    %v2111 = vunpack.c.l.b16 %v2046
    %v2112 = vunpack.c.h.b16 %v2046
    %v2113 = vunpack.c.l.b16 %v2047
    %v2114 = vunpack.c.l.b16 %v2048
    %v2115 = vunpack.c.h.b16 %v2048
    %v2116 = vunpack.c.l.b16 %v2049
    %v2117 = vunpack.c.l.b16 %v2050
    %v2118 = vunpack.c.h.b16 %v2050
    %v2119 = vunpack.c.l.b16 %v2051
    %v2120 = vunpack.c.l.b16 %v2052
    %v2121 = vunpack.c.h.b16 %v2052
    %v2122 = vunpack.c.l.b16 %v2053
    %v2123 = vunpack.c.l.b16 %v2054
    %v2124 = vunpack.c.h.b16 %v2054
    %v2125 = vunpack.c.l.b16 %v2055
    %v2126 = vunpack.c.l.b16 %v2056
    %v2127 = vunpack.c.h.b16 %v2056
    %v2128 = vunpack.c.l.b16 %v2057
    %v2129 = vunpack.c.l.b16 %v2058
    %v2130 = vunpack.c.h.b16 %v2058
    %v2131 = vunpack.c.l.b16 %v2059
    %v2132 = vunpack.c.l.b16 %v2060
    %v2133 = vunpack.c.h.b16 %v2060
    %v2134 = vunpack.c.l.b16 %v2061
    %v2135 = vunpack.c.l.b16 %v2062
    %v2136 = vunpack.c.h.b16 %v2062
    %v2137 = vunpack.c.l.b16 %v2063
    %v2138 = vunpack.c.l.b16 %v2064
    %v2139 = vunpack.c.h.b16 %v2064
    %v2140 = vunpack.c.l.b16 %v2065
    %v2141 = vunpack.c.l.b16 %v2066
    %v2142 = vunpack.c.h.b16 %v2066
    %v2143 = vunpack.c.l.b16 %v2067
    %v2144 = vunpack.c.l.b16 %v2068
    %v2145 = vunpack.c.h.b16 %v2068
    %v2146 = vunpack.c.l.b16 %v2069
    %v2147 = vunpack.c.l.b16 %v2070
    %v2148 = vunpack.c.h.b16 %v2070
    %v2149 = vunpack.c.l.b16 %v2071
    %v2150 = vunpack.c.l.b16 %v2072
    %v2151 = vunpack.c.h.b16 %v2072
    %v2152 = vunpack.c.l.b16 %v2073
    %v2153 = vunpack.c.l.b16 %v2074
    %v2154 = vunpack.c.h.b16 %v2074
    %v2155 = vunpack.c.l.b16 %v2075
    %v2156 = vpack.c.b16 %v2111, %v2108
    %v2157 = vpack.c.b16 %v2112, %v2109
    %v2158 = vpack.c.b16 %v2113, %v2110
    %v2159 = vpack.c.b16 %v2117, %v2114
    %v2160 = vpack.c.b16 %v2118, %v2115
    %v2161 = vpack.c.b16 %v2119, %v2116
    %v2162 = vpack.c.b16 %v2123, %v2120
    %v2163 = vpack.c.b16 %v2124, %v2121
    %v2164 = vpack.c.b16 %v2125, %v2122
    %v2165 = vpack.c.b16 %v2129, %v2126
    %v2166 = vpack.c.b16 %v2130, %v2127
    %v2167 = vpack.c.b16 %v2131, %v2128
    %v2168 = vpack.c.b16 %v2135, %v2132
    %v2169 = vpack.c.b16 %v2136, %v2133
    %v2170 = vpack.c.b16 %v2137, %v2134
    %v2171 = vpack.c.b16 %v2141, %v2138
    %v2172 = vpack.c.b16 %v2142, %v2139
    %v2173 = vpack.c.b16 %v2143, %v2140
    %v2174 = vpack.c.b16 %v2147, %v2144
    %v2175 = vpack.c.b16 %v2148, %v2145
    %v2176 = vpack.c.b16 %v2149, %v2146
    %v2177 = vpack.c.b16 %v2153, %v2150
    %v2178 = vpack.c.b16 %v2154, %v2151
    %v2179 = vpack.c.b16 %v2155, %v2152
    %2204 = vmatprep.subr.bf16.mxu0 %v2157
    %2205 = vmatpush1.bf16.msra.mxu0 %v2156
    %2206 = vmatprep.subr.bf16.mxu0 %v2160
    %2207 = vmatpush1.bf16.msra.mxu0 %v2159
    %2208 = vmatprep.subr.bf16.mxu0 %v2163
    %2209 = vmatpush1.bf16.msra.mxu0 %v2162
    %2210 = vmatprep.subr.bf16.mxu0 %v2166
    %2211 = vmatpush1.bf16.msra.mxu0 %v2165
    %2212 = vmatprep.subr.bf16.mxu0 %v2169
    %2213 = vmatpush1.bf16.msra.mxu0 %v2168
    %2214 = vmatprep.subr.bf16.mxu0 %v2172
    %2215 = vmatpush1.bf16.msra.mxu0 %v2171
    %2216 = vmatprep.subr.bf16.mxu0 %v2175
    %2217 = vmatpush1.bf16.msra.mxu0 %v2174
    %2218 = vmatprep.subr.bf16.mxu0 %v2178
    %2219 = vmatpush1.bf16.msra.mxu0 %v2177
    %2220 = vmatprep.subr.bf16.mxu0 0
    %2221 = vmatpush1.bf16.msra.mxu0 0
    %2222 = vmatprep.subr.bf16.mxu0 0
    %2223 = vmatpush1.bf16.msra.mxu0 0
    %2224 = vmatprep.subr.bf16.mxu0 0
    %2225 = vmatpush1.bf16.msra.mxu0 0
    %2226 = vmatprep.subr.bf16.mxu0 0
    %2227 = vmatpush1.bf16.msra.mxu0 0
    %2228 = vmatprep.subr.bf16.mxu0 0
    %2229 = vmatpush1.bf16.msra.mxu0 0
    %2230 = vmatprep.subr.bf16.mxu0 0
    %2231 = vmatpush1.bf16.msra.mxu0 0
    %2232 = vmatprep.subr.bf16.mxu0 0
    %2233 = vmatpush1.bf16.msra.mxu0 0
    %2234 = vmatprep.subr.bf16.mxu0 0
    %2235 = vmatpush1.bf16.msra.mxu0 0
    %2236 = vmatprep.mubr.bf16.mxu0 0
    %2237 = vmatmul.mubr.bf16.gmra.mrb[0].mxu0 %v2043
    %v2238 = vpop.f32.mrb[0].mxu0
    %v2239 = vadd.f32 0.0, %v2238
    %v2240 = vpop.f32.mrb[0].mxu0
    %v2241 = vadd.f32 0.0, %v2240
    %v2242 = vpop.f32.mrb[0].mxu0
    %v2243 = vpop.f32.mrb[0].mxu0
    %2244 = vdwg.mxu0
    %2245 = vmatprep.subr.bf16.mxu0 0
    %2246 = vmatpush1.bf16.msra.mxu0 %v2158
    %2247 = vmatprep.subr.bf16.mxu0 0
    %2248 = vmatpush1.bf16.msra.mxu0 %v2161
    %2249 = vmatprep.subr.bf16.mxu0 0
    %2250 = vmatpush1.bf16.msra.mxu0 %v2164
    %2251 = vmatprep.subr.bf16.mxu0 0
    %2252 = vmatpush1.bf16.msra.mxu0 %v2167
    %2253 = vmatprep.subr.bf16.mxu0 0
    %2254 = vmatpush1.bf16.msra.mxu0 %v2170
    %2255 = vmatprep.subr.bf16.mxu0 0
    %2256 = vmatpush1.bf16.msra.mxu0 %v2173
    %2257 = vmatprep.subr.bf16.mxu0 0
    %2258 = vmatpush1.bf16.msra.mxu0 %v2176
    %2259 = vmatprep.subr.bf16.mxu0 0
    %2260 = vmatpush1.bf16.msra.mxu0 %v2179
    %2261 = vmatprep.subr.bf16.mxu0 0
    %2262 = vmatpush1.bf16.msra.mxu0 0
    %2263 = vmatprep.subr.bf16.mxu0 0
    %2264 = vmatpush1.bf16.msra.mxu0 0
    %2265 = vmatprep.subr.bf16.mxu0 0
    %2266 = vmatpush1.bf16.msra.mxu0 0
    %2267 = vmatprep.subr.bf16.mxu0 0
    %2268 = vmatpush1.bf16.msra.mxu0 0
    %2269 = vmatprep.subr.bf16.mxu0 0
    %2270 = vmatpush1.bf16.msra.mxu0 0
    %2271 = vmatprep.subr.bf16.mxu0 0
    %2272 = vmatpush1.bf16.msra.mxu0 0
    %2273 = vmatprep.subr.bf16.mxu0 0
    %2274 = vmatpush1.bf16.msra.mxu0 0
    %2275 = vmatprep.subr.bf16.mxu0 0
    %2276 = vmatpush1.bf16.msra.mxu0 0
    %2277 = vmatprep.mubr.bf16.mxu0 0
    %2278 = vmatmul.mubr.bf16.gmra.mrb[0].mxu0 %v2043
    %v2279 = vpop.f32.mrb[0].mxu0
    %v2280 = vadd.f32 0.0, %v2279
    %v2281 = vpop.f32.mrb[0].mxu0
    %v2282 = vpop.f32.mrb[0].mxu0
    %v2283 = vpop.f32.mrb[0].mxu0
    %2284 = vdwg.mxu0
    %v2285 = vadd.f32 %v2040, %v2239
    %v2286 = vxor.u32 %v2285, 2147483648
    %v2287 = vmul.f32 %v2286, 1.442695
    %v2288 = vpow.pop %v2287
    %v2289 = vadd.f32 %v2288, 1.0
    %v2290 = vrcp.pop %v2289
    %v2291 = vmul.f32 1.0, %v2290
    %v2292 = vadd.f32 %v2041, %v2241
    %v2293 = vxor.u32 %v2292, 2147483648
    %v2294 = vmul.f32 %v2293, 1.442695
    %v2295 = vpow.pop %v2294
    %v2296 = vadd.f32 %v2295, 1.0
    %v2297 = vrcp.pop %v2296
    %v2298 = vmul.f32 1.0, %v2297
    %v2299 = vadd.f32 %v2280, %v424
    %v2300 = vmul.f32 %v2291, %v2299
    %v2301 = vadd.f32 %v2042, %v2300
    %v2302 = vtanh.pop %v2301
    %v2303 = vsub.f32 %v2036, %v2302
    %v2304 = vmul.f32 %v2298, %v2303
    %v2305 = vadd.f32 %v2302, %v2304
    %s2306 = scalar_lea.vmem [#allocation10], 48
    %2307 = vst [vmem:[%s2306] sm:$0xff] %v2305
    %s2308 = scalar_lea.vmem [#allocation3], 168
    %v2309 = vld [vmem:[%s2308] sm:$0xff]
    %v2310 = vld [vmem:[%s2308 + $0x8] sm:$0xff]
    %v2311 = vld [vmem:[%s2308 + $0x10] sm:$0xff]
    %v2312 = vpack.c.bf16 %v2305, %v2305
    %v2313 = vld [vmem:[#allocation9] sm:$0xff]
    %v2314 = vld [vmem:[#allocation9 + $0x8] sm:$0xf]
    %v2315 = vld [vmem:[#allocation9 + $0xc] sm:$0xff]
    %v2316 = vld [vmem:[#allocation9 + $0x14] sm:$0xf]
    %v2317 = vld [vmem:[#allocation9 + $0x18] sm:$0xff]
    %v2318 = vld [vmem:[#allocation9 + $0x20] sm:$0xf]
    %v2319 = vld [vmem:[#allocation9 + $0x24] sm:$0xff]
    %v2320 = vld [vmem:[#allocation9 + $0x2c] sm:$0xf]
    %v2321 = vld [vmem:[#allocation9 + $0x30] sm:$0xff]
    %v2322 = vld [vmem:[#allocation9 + $0x38] sm:$0xf]
    %v2323 = vld [vmem:[#allocation9 + $0x3c] sm:$0xff]
    %v2324 = vld [vmem:[#allocation9 + $0x44] sm:$0xf]
    %v2325 = vld [vmem:[#allocation9 + $0x48] sm:$0xff]
    %v2326 = vld [vmem:[#allocation9 + $0x50] sm:$0xf]
    %v2327 = vld [vmem:[#allocation9 + $0x54] sm:$0xff]
    %v2328 = vld [vmem:[#allocation9 + $0x5c] sm:$0xf]
    %v2329 = vld [vmem:[#allocation9 + $0x60] sm:$0xff]
    %v2330 = vld [vmem:[#allocation9 + $0x68] sm:$0xf]
    %v2331 = vld [vmem:[#allocation9 + $0x6c] sm:$0xff]
    %v2332 = vld [vmem:[#allocation9 + $0x74] sm:$0xf]
    %v2333 = vld [vmem:[#allocation9 + $0x78] sm:$0xff]
    %v2334 = vld [vmem:[#allocation9 + $0x80] sm:$0xf]
    %v2335 = vld [vmem:[#allocation9 + $0x84] sm:$0xff]
    %v2336 = vld [vmem:[#allocation9 + $0x8c] sm:$0xf]
    %v2337 = vld [vmem:[#allocation9 + $0x90] sm:$0xff]
    %v2338 = vld [vmem:[#allocation9 + $0x98] sm:$0xf]
    %v2339 = vld [vmem:[#allocation9 + $0x9c] sm:$0xff]
    %v2340 = vld [vmem:[#allocation9 + $0xa4] sm:$0xf]
    %v2341 = vld [vmem:[#allocation9 + $0xa8] sm:$0xff]
    %v2342 = vld [vmem:[#allocation9 + $0xb0] sm:$0xf]
    %v2343 = vld [vmem:[#allocation9 + $0xb4] sm:$0xff]
    %v2344 = vld [vmem:[#allocation9 + $0xbc] sm:$0xf]
    %v2377 = vunpack.c.l.b16 %v2313
    %v2378 = vunpack.c.h.b16 %v2313
    %v2379 = vunpack.c.l.b16 %v2314
    %v2380 = vunpack.c.l.b16 %v2315
    %v2381 = vunpack.c.h.b16 %v2315
    %v2382 = vunpack.c.l.b16 %v2316
    %v2383 = vunpack.c.l.b16 %v2317
    %v2384 = vunpack.c.h.b16 %v2317
    %v2385 = vunpack.c.l.b16 %v2318
    %v2386 = vunpack.c.l.b16 %v2319
    %v2387 = vunpack.c.h.b16 %v2319
    %v2388 = vunpack.c.l.b16 %v2320
    %v2389 = vunpack.c.l.b16 %v2321
    %v2390 = vunpack.c.h.b16 %v2321
    %v2391 = vunpack.c.l.b16 %v2322
    %v2392 = vunpack.c.l.b16 %v2323
    %v2393 = vunpack.c.h.b16 %v2323
    %v2394 = vunpack.c.l.b16 %v2324
    %v2395 = vunpack.c.l.b16 %v2325
    %v2396 = vunpack.c.h.b16 %v2325
    %v2397 = vunpack.c.l.b16 %v2326
    %v2398 = vunpack.c.l.b16 %v2327
    %v2399 = vunpack.c.h.b16 %v2327
    %v2400 = vunpack.c.l.b16 %v2328
    %v2401 = vunpack.c.l.b16 %v2329
    %v2402 = vunpack.c.h.b16 %v2329
    %v2403 = vunpack.c.l.b16 %v2330
    %v2404 = vunpack.c.l.b16 %v2331
    %v2405 = vunpack.c.h.b16 %v2331
    %v2406 = vunpack.c.l.b16 %v2332
    %v2407 = vunpack.c.l.b16 %v2333
    %v2408 = vunpack.c.h.b16 %v2333
    %v2409 = vunpack.c.l.b16 %v2334
    %v2410 = vunpack.c.l.b16 %v2335
    %v2411 = vunpack.c.h.b16 %v2335
    %v2412 = vunpack.c.l.b16 %v2336
    %v2413 = vunpack.c.l.b16 %v2337
    %v2414 = vunpack.c.h.b16 %v2337
    %v2415 = vunpack.c.l.b16 %v2338
    %v2416 = vunpack.c.l.b16 %v2339
    %v2417 = vunpack.c.h.b16 %v2339
    %v2418 = vunpack.c.l.b16 %v2340
    %v2419 = vunpack.c.l.b16 %v2341
    %v2420 = vunpack.c.h.b16 %v2341
    %v2421 = vunpack.c.l.b16 %v2342
    %v2422 = vunpack.c.l.b16 %v2343
    %v2423 = vunpack.c.h.b16 %v2343
    %v2424 = vunpack.c.l.b16 %v2344
    %v2425 = vpack.c.b16 %v2380, %v2377
    %v2426 = vpack.c.b16 %v2381, %v2378
    %v2427 = vpack.c.b16 %v2382, %v2379
    %v2428 = vpack.c.b16 %v2386, %v2383
    %v2429 = vpack.c.b16 %v2387, %v2384
    %v2430 = vpack.c.b16 %v2388, %v2385
    %v2431 = vpack.c.b16 %v2392, %v2389
    %v2432 = vpack.c.b16 %v2393, %v2390
    %v2433 = vpack.c.b16 %v2394, %v2391
    %v2434 = vpack.c.b16 %v2398, %v2395
    %v2435 = vpack.c.b16 %v2399, %v2396
    %v2436 = vpack.c.b16 %v2400, %v2397
    %v2437 = vpack.c.b16 %v2404, %v2401
    %v2438 = vpack.c.b16 %v2405, %v2402
    %v2439 = vpack.c.b16 %v2406, %v2403
    %v2440 = vpack.c.b16 %v2410, %v2407
    %v2441 = vpack.c.b16 %v2411, %v2408
    %v2442 = vpack.c.b16 %v2412, %v2409
    %v2443 = vpack.c.b16 %v2416, %v2413
    %v2444 = vpack.c.b16 %v2417, %v2414
    %v2445 = vpack.c.b16 %v2418, %v2415
    %v2446 = vpack.c.b16 %v2422, %v2419
    %v2447 = vpack.c.b16 %v2423, %v2420
    %v2448 = vpack.c.b16 %v2424, %v2421
    %2473 = vmatprep.subr.bf16.mxu0 %v2426
    %2474 = vmatpush1.bf16.msra.mxu0 %v2425
    %2475 = vmatprep.subr.bf16.mxu0 %v2429
    %2476 = vmatpush1.bf16.msra.mxu0 %v2428
    %2477 = vmatprep.subr.bf16.mxu0 %v2432
    %2478 = vmatpush1.bf16.msra.mxu0 %v2431
    %2479 = vmatprep.subr.bf16.mxu0 %v2435
    %2480 = vmatpush1.bf16.msra.mxu0 %v2434
    %2481 = vmatprep.subr.bf16.mxu0 %v2438
    %2482 = vmatpush1.bf16.msra.mxu0 %v2437
    %2483 = vmatprep.subr.bf16.mxu0 %v2441
    %2484 = vmatpush1.bf16.msra.mxu0 %v2440
    %2485 = vmatprep.subr.bf16.mxu0 %v2444
    %2486 = vmatpush1.bf16.msra.mxu0 %v2443
    %2487 = vmatprep.subr.bf16.mxu0 %v2447
    %2488 = vmatpush1.bf16.msra.mxu0 %v2446
    %2489 = vmatprep.subr.bf16.mxu0 0
    %2490 = vmatpush1.bf16.msra.mxu0 0
    %2491 = vmatprep.subr.bf16.mxu0 0
    %2492 = vmatpush1.bf16.msra.mxu0 0
    %2493 = vmatprep.subr.bf16.mxu0 0
    %2494 = vmatpush1.bf16.msra.mxu0 0
    %2495 = vmatprep.subr.bf16.mxu0 0
    %2496 = vmatpush1.bf16.msra.mxu0 0
    %2497 = vmatprep.subr.bf16.mxu0 0
    %2498 = vmatpush1.bf16.msra.mxu0 0
    %2499 = vmatprep.subr.bf16.mxu0 0
    %2500 = vmatpush1.bf16.msra.mxu0 0
    %2501 = vmatprep.subr.bf16.mxu0 0
    %2502 = vmatpush1.bf16.msra.mxu0 0
    %2503 = vmatprep.subr.bf16.mxu0 0
    %2504 = vmatpush1.bf16.msra.mxu0 0
    %2505 = vmatprep.mubr.bf16.mxu0 0
    %2506 = vmatmul.mubr.bf16.gmra.mrb[0].mxu0 %v2312
    %v2507 = vpop.f32.mrb[0].mxu0
    %v2508 = vadd.f32 0.0, %v2507
    %v2509 = vpop.f32.mrb[0].mxu0
    %v2510 = vadd.f32 0.0, %v2509
    %v2511 = vpop.f32.mrb[0].mxu0
    %v2512 = vpop.f32.mrb[0].mxu0
    %2513 = vdwg.mxu0
    %2514 = vmatprep.subr.bf16.mxu0 0
    %2515 = vmatpush1.bf16.msra.mxu0 %v2427
    %2516 = vmatprep.subr.bf16.mxu0 0
    %2517 = vmatpush1.bf16.msra.mxu0 %v2430
    %2518 = vmatprep.subr.bf16.mxu0 0
    %2519 = vmatpush1.bf16.msra.mxu0 %v2433
    %2520 = vmatprep.subr.bf16.mxu0 0
    %2521 = vmatpush1.bf16.msra.mxu0 %v2436
    %2522 = vmatprep.subr.bf16.mxu0 0
    %2523 = vmatpush1.bf16.msra.mxu0 %v2439
    %2524 = vmatprep.subr.bf16.mxu0 0
    %2525 = vmatpush1.bf16.msra.mxu0 %v2442
    %2526 = vmatprep.subr.bf16.mxu0 0
    %2527 = vmatpush1.bf16.msra.mxu0 %v2445
    %2528 = vmatprep.subr.bf16.mxu0 0
    %2529 = vmatpush1.bf16.msra.mxu0 %v2448
    %2530 = vmatprep.subr.bf16.mxu0 0
    %2531 = vmatpush1.bf16.msra.mxu0 0
    %2532 = vmatprep.subr.bf16.mxu0 0
    %2533 = vmatpush1.bf16.msra.mxu0 0
    %2534 = vmatprep.subr.bf16.mxu0 0
    %2535 = vmatpush1.bf16.msra.mxu0 0
    %2536 = vmatprep.subr.bf16.mxu0 0
    %2537 = vmatpush1.bf16.msra.mxu0 0
    %2538 = vmatprep.subr.bf16.mxu0 0
    %2539 = vmatpush1.bf16.msra.mxu0 0
    %2540 = vmatprep.subr.bf16.mxu0 0
    %2541 = vmatpush1.bf16.msra.mxu0 0
    %2542 = vmatprep.subr.bf16.mxu0 0
    %2543 = vmatpush1.bf16.msra.mxu0 0
    %2544 = vmatprep.subr.bf16.mxu0 0
    %2545 = vmatpush1.bf16.msra.mxu0 0
    %2546 = vmatprep.mubr.bf16.mxu0 0
    %2547 = vmatmul.mubr.bf16.gmra.mrb[0].mxu0 %v2312
    %v2548 = vpop.f32.mrb[0].mxu0
    %v2549 = vadd.f32 0.0, %v2548
    %v2550 = vpop.f32.mrb[0].mxu0
    %v2551 = vpop.f32.mrb[0].mxu0
    %v2552 = vpop.f32.mrb[0].mxu0
    %2553 = vdwg.mxu0
    %v2554 = vadd.f32 %v2309, %v2508
    %v2555 = vxor.u32 %v2554, 2147483648
    %v2556 = vmul.f32 %v2555, 1.442695
    %v2557 = vpow.pop %v2556
    %v2558 = vadd.f32 %v2557, 1.0
    %v2559 = vrcp.pop %v2558
    %v2560 = vmul.f32 1.0, %v2559
    %v2561 = vadd.f32 %v2310, %v2510
    %v2562 = vxor.u32 %v2561, 2147483648
    %v2563 = vmul.f32 %v2562, 1.442695
    %v2564 = vpow.pop %v2563
    %v2565 = vadd.f32 %v2564, 1.0
    %v2566 = vrcp.pop %v2565
    %v2567 = vmul.f32 1.0, %v2566
    %v2568 = vadd.f32 %v2549, %v424
    %v2569 = vmul.f32 %v2560, %v2568
    %v2570 = vadd.f32 %v2311, %v2569
    %v2571 = vtanh.pop %v2570
    %v2572 = vsub.f32 %v2305, %v2571
    %v2573 = vmul.f32 %v2567, %v2572
    %v2574 = vadd.f32 %v2571, %v2573
    %s2575 = scalar_lea.vmem [#allocation10], 56
    %2576 = vst [vmem:[%s2575] sm:$0xff] %v2574
    %2577 = vst [vmem:[#allocation2] sm:$0xff] %v2574
    // Predicated region
    $region38: #{tpu_custom_call.1} parent=1 // pred_check
      _
    $region39: #{tpu_custom_call.1} parent=1 // pred_check_branch
      %2579 = sbr.rel (0) target = $region41
    $region40: #{tpu_custom_call.1} parent=1 // pred_region
      %s2581 = ssub.s32 1024, 1024
      %2582 = vsyncadd [#allocation6], %s2581
      %s2583 = sshll.u32 [#allocation10], 4
      %s2584 = int_to_ptr.vmem [resolvable:$true] %s2583
      %2589 = dma.vmem_to_hbm [thread:$0]  %s2584, 1024, %s5, [#allocation6], 128, 128, 8
    $region41: #{tpu_custom_call.1} parent=1 // pred_fallthru
      _
    // Predicated region
    $region42: #{tpu_custom_call.1} parent=1 // pred_check
      _
    $region43: #{tpu_custom_call.1} parent=1 // pred_check_branch
      %2591 = sbr.rel (0) target = $region45
    $region44: #{tpu_custom_call.1} parent=1 // pred_region
      %2592 = dma.done [#allocation6], 1024
    $region45: #{tpu_custom_call.1} parent=1 // pred_fallthru
      _
    %2593 = vsyncpa [#allocation5], 1
    %2594 = vsyncpa [#allocation8], 1
    %2595 = vsyncpa [#allocation6], 1

// kernel: tpu_custom_call.1
$region0: #{tpu_custom_call.1}
  #allocation0 [shape = 'u32[]', space=smem, size = 0x4, offset = 0x4, fixed_abs, tag = 'smem constant byte address 0x4 - core index']
  #allocation1 [shape = 'u32[144,128]{1,0:T(1,128)}', space=vmem, size = 0x12000, scoped, tag = 'internal scratch']
  #allocation2 [shape = 'f32[8,128]{1,0:T(8,128)}', space=vmem, size = 0x1000, scoped, tag = 'scratch operand']
  #allocation3 [shape = 'f32[8,8,384]{2,1,0:T(8,128)}', space=vmem, size = 0x18000, scoped, tag = 'scratch operand']
  %s0 = inlined_call_operand.hbm [shape: f32[8,8,128], index: 0, kind: input, shape index: {}]
  %s1 = inlined_call_operand.hbm [shape: bf16[128,384], index: 1, kind: input, shape index: {}]
  %s2 = inlined_call_operand.hbm [shape: bf16[128,384], index: 2, kind: input, shape index: {}]
  %s3 = inlined_call_operand.vmem [shape: f32[1,384], index: 3, kind: input, shape index: {}]
  %s4 = inlined_call_operand.vmem [shape: f32[1,128], index: 4, kind: input, shape index: {}]
  %s5 = inlined_call_operand.hbm [shape: f32[8,8,128], index: 5, kind: output, shape index: {}]
  %s6 = sld [smem:[#allocation0]]
  $region46: #{tpu_custom_call.1} parent=0
    _
  %s8 = ssub.s32 1, %s6
  %s9 = scalar_select 0, %s8, %s6
  $region1: #{tpu_custom_call.1} parent=0
    #allocation4 [shape = 'u8[32768]{0}', space=vmem, size = 0x8000, scoped, tag = 'input window, operand 0, single buffered']
    #allocation5 [shape = 's32[1]{0}', space=sflag, size = 0x4, scoped, tag = 'scoped memory for tpu_custom_call.1']
    #allocation6 [shape = 's32[1]{0}', space=sflag, size = 0x4, scoped, tag = 'scoped memory for tpu_custom_call.1']
    #allocation7 [shape = 'u8[98304]{0}', space=vmem, size = 0x18000, scoped, tag = 'input window, operand 1, single buffered']
    #allocation8 [shape = 's32[1]{0}', space=sflag, size = 0x4, scoped, tag = 'scoped memory for tpu_custom_call.1']
    #allocation9 [shape = 'u8[98304]{0}', space=vmem, size = 0x18000, scoped, tag = 'input window, operand 2, single buffered']
    #allocation10 [shape = 'u8[32768]{0}', space=vmem, size = 0x8000, scoped, tag = 'output window, operand 0, single buffered']
    %10 = vsyncpa [#allocation5], 0
    %11 = vsyncpa [#allocation8], 0
    %12 = vsyncpa [#allocation6], 0
    // Predicated region
    $region2: #{tpu_custom_call.1} parent=1 // pred_check
      _
    $region3: #{tpu_custom_call.1} parent=1 // pred_check_branch
      %14 = sbr.rel (0) target = $region5
    $region4: #{tpu_custom_call.1} parent=1 // pred_region
      %s16 = ssub.s32 1024, 1024
      %17 = vsyncadd [#allocation5], %s16
      %s18 = sshll.u32 [#allocation4], 4
      %s19 = int_to_ptr.vmem [resolvable:$true] %s18
      %24 = dma.hbm_to_vmem [thread:$0]  %s0, 1024, %s19, [#allocation5], 128, 128, 8
    $region5: #{tpu_custom_call.1} parent=1 // pred_fallthru
      _
    // Predicated region
    $region6: #{tpu_custom_call.1} parent=1 // pred_check
      _
    $region7: #{tpu_custom_call.1} parent=1 // pred_check_branch
      %26 = sbr.rel (0) target = $region9
    $region8: #{tpu_custom_call.1} parent=1 // pred_region
      %s28 = ssub.s32 3072, 3072
      %29 = vsyncadd [#allocation8], %s28
      %s30 = sshll.u32 [#allocation7], 4
      %s31 = int_to_ptr.vmem [resolvable:$true] %s30
      %36 = dma.hbm_to_vmem [thread:$0]  %s1, 3072, %s31, [#allocation8], 192, 192, 12
    $region9: #{tpu_custom_call.1} parent=1 // pred_fallthru
      _
    // Predicated region
    $region10: #{tpu_custom_call.1} parent=1 // pred_check
      _
    $region11: #{tpu_custom_call.1} parent=1 // pred_check_branch
      %38 = sbr.rel (0) target = $region13
    $region12: #{tpu_custom_call.1} parent=1 // pred_region
      %s40 = ssub.s32 3072, 3072
      %41 = vsyncadd [#allocation8], %s40
      %s42 = sshll.u32 [#allocation9], 4
      %s43 = int_to_ptr.vmem [resolvable:$true] %s42
      %48 = dma.hbm_to_vmem [thread:$0]  %s2, 3072, %s43, [#allocation8], 192, 192, 12
    $region13: #{tpu_custom_call.1} parent=1 // pred_fallthru
      _
    // Predicated region
    $region14: #{tpu_custom_call.1} parent=1 // pred_check
      _
    $region15: #{tpu_custom_call.1} parent=1 // pred_check_branch
      %50 = sbr.rel (0) target = $region17
    $region16: #{tpu_custom_call.1} parent=1 // pred_region
      _
    $region17: #{tpu_custom_call.1} parent=1 // pred_fallthru
      _
    // Predicated region
    $region18: #{tpu_custom_call.1} parent=1 // pred_check
      _
    $region19: #{tpu_custom_call.1} parent=1 // pred_check_branch
      %52 = sbr.rel (0) target = $region21
    $region20: #{tpu_custom_call.1} parent=1 // pred_region
      _
    $region21: #{tpu_custom_call.1} parent=1 // pred_fallthru
      _
    // Predicated region
    $region22: #{tpu_custom_call.1} parent=1 // pred_check
      _
    $region23: #{tpu_custom_call.1} parent=1 // pred_check_branch
      %54 = sbr.rel (0) target = $region25
    $region24: #{tpu_custom_call.1} parent=1 // pred_region
      %55 = dma.done [#allocation5], 1024
    $region25: #{tpu_custom_call.1} parent=1 // pred_fallthru
      _
    // Predicated region
    $region26: #{tpu_custom_call.1} parent=1 // pred_check
      _
    $region27: #{tpu_custom_call.1} parent=1 // pred_check_branch
      %57 = sbr.rel (0) target = $region29
    $region28: #{tpu_custom_call.1} parent=1 // pred_region
      %58 = dma.done [#allocation8], 3072
    $region29: #{tpu_custom_call.1} parent=1 // pred_fallthru
      _
    // Predicated region
    $region30: #{tpu_custom_call.1} parent=1 // pred_check
      _
    $region31: #{tpu_custom_call.1} parent=1 // pred_check_branch
      %60 = sbr.rel (0) target = $region33
    $region32: #{tpu_custom_call.1} parent=1 // pred_region
      %61 = dma.done [#allocation8], 3072
    $region33: #{tpu_custom_call.1} parent=1 // pred_fallthru
      _
    %p63 = scmp.eq.s32.totalorder 0, 0
    // Predicated region
    $region34: #{tpu_custom_call.1} parent=1 // pred_check
      %p64 = pneg %p63
    $region35: #{tpu_custom_call.1} parent=1 // pred_check_branch
      %66 = sbr.rel (%p64) target = $region37
    $region36: #{tpu_custom_call.1} parent=1 // pred_region
      %67 = vst [vmem:[#allocation2] sm:$0xff] 0.0
    $region37: #{tpu_custom_call.1} parent=1 // pred_fallthru
      _
    %v68 = vld [vmem:[#allocation4] sm:$0xff]
    %v69 = vld [vmem:[#allocation4 + $0x8] sm:$0xff]
    %v70 = vld [vmem:[#allocation4 + $0x10] sm:$0xff]
    %v71 = vld [vmem:[#allocation4 + $0x18] sm:$0xff]
    %v72 = vld [vmem:[#allocation4 + $0x20] sm:$0xff]
    %v73 = vld [vmem:[#allocation4 + $0x28] sm:$0xff]
    %v74 = vld [vmem:[#allocation4 + $0x30] sm:$0xff]
    %v75 = vld [vmem:[#allocation4 + $0x38] sm:$0xff]
    %v76 = vpack.c.bf16 %v69, %v68
    %v77 = vpack.c.bf16 %v71, %v70
    %v78 = vpack.c.bf16 %v73, %v72
    %v79 = vpack.c.bf16 %v75, %v74
    %v80 = vld [vmem:[#allocation7] sm:$0xff]
    %v81 = vld [vmem:[#allocation7 + $0x8] sm:$0xf]
    %v82 = vld [vmem:[#allocation7 + $0xc] sm:$0xff]
    %v83 = vld [vmem:[#allocation7 + $0x14] sm:$0xf]
    %v84 = vld [vmem:[#allocation7 + $0x18] sm:$0xff]
    %v85 = vld [vmem:[#allocation7 + $0x20] sm:$0xf]
    %v86 = vld [vmem:[#allocation7 + $0x24] sm:$0xff]
    %v87 = vld [vmem:[#allocation7 + $0x2c] sm:$0xf]
    %v88 = vld [vmem:[#allocation7 + $0x30] sm:$0xff]
    %v89 = vld [vmem:[#allocation7 + $0x38] sm:$0xf]
    %v90 = vld [vmem:[#allocation7 + $0x3c] sm:$0xff]
    %v91 = vld [vmem:[#allocation7 + $0x44] sm:$0xf]
    %v92 = vld [vmem:[#allocation7 + $0x48] sm:$0xff]
    %v93 = vld [vmem:[#allocation7 + $0x50] sm:$0xf]
    %v94 = vld [vmem:[#allocation7 + $0x54] sm:$0xff]
    %v95 = vld [vmem:[#allocation7 + $0x5c] sm:$0xf]
    %v96 = vld [vmem:[#allocation7 + $0x60] sm:$0xff]
    %v97 = vld [vmem:[#allocation7 + $0x68] sm:$0xf]
    %v98 = vld [vmem:[#allocation7 + $0x6c] sm:$0xff]
    %v99 = vld [vmem:[#allocation7 + $0x74] sm:$0xf]
    %v100 = vld [vmem:[#allocation7 + $0x78] sm:$0xff]
    %v101 = vld [vmem:[#allocation7 + $0x80] sm:$0xf]
    %v102 = vld [vmem:[#allocation7 + $0x84] sm:$0xff]
    %v103 = vld [vmem:[#allocation7 + $0x8c] sm:$0xf]
    %v104 = vld [vmem:[#allocation7 + $0x90] sm:$0xff]
    %v105 = vld [vmem:[#allocation7 + $0x98] sm:$0xf]
    %v106 = vld [vmem:[#allocation7 + $0x9c] sm:$0xff]
    %v107 = vld [vmem:[#allocation7 + $0xa4] sm:$0xf]
    %v108 = vld [vmem:[#allocation7 + $0xa8] sm:$0xff]
    %v109 = vld [vmem:[#allocation7 + $0xb0] sm:$0xf]
    %v110 = vld [vmem:[#allocation7 + $0xb4] sm:$0xff]
    %v111 = vld [vmem:[#allocation7 + $0xbc] sm:$0xf]
    %v112 = vld [vmem:[%s3] sm:$0x7]
    %v114 = vlaneseq
    %v115 = vshrl.u32 %v114, 7
    %v116 = vsub.s32 0, %v115
    %v117 = vrot.slane %v112, %v116
    %v118 = vlaneseq
    %v119 = vshrl.u32 %v118, 7
    %v120 = vsub.s32 1, %v119
    %v121 = vrot.slane %v112, %v120
    %v122 = vlaneseq
    %v123 = vshrl.u32 %v122, 7
    %v124 = vsub.s32 2, %v123
    %v125 = vrot.slane %v112, %v124
    %v161 = vunpack.c.l.b16 %v80
    %v162 = vunpack.c.h.b16 %v80
    %v163 = vunpack.c.l.b16 %v81
    %v164 = vunpack.c.l.b16 %v82
    %v165 = vunpack.c.h.b16 %v82
    %v166 = vunpack.c.l.b16 %v83
    %v167 = vunpack.c.l.b16 %v84
    %v168 = vunpack.c.h.b16 %v84
    %v169 = vunpack.c.l.b16 %v85
    %v170 = vunpack.c.l.b16 %v86
    %v171 = vunpack.c.h.b16 %v86
    %v172 = vunpack.c.l.b16 %v87
    %v173 = vunpack.c.l.b16 %v88
    %v174 = vunpack.c.h.b16 %v88
    %v175 = vunpack.c.l.b16 %v89
    %v176 = vunpack.c.l.b16 %v90
    %v177 = vunpack.c.h.b16 %v90
    %v178 = vunpack.c.l.b16 %v91
    %v179 = vunpack.c.l.b16 %v92
    %v180 = vunpack.c.h.b16 %v92
    %v181 = vunpack.c.l.b16 %v93
    %v182 = vunpack.c.l.b16 %v94
    %v183 = vunpack.c.h.b16 %v94
    %v184 = vunpack.c.l.b16 %v95
    %v185 = vunpack.c.l.b16 %v96
    %v186 = vunpack.c.h.b16 %v96
    %v187 = vunpack.c.l.b16 %v97
    %v188 = vunpack.c.l.b16 %v98
    %v189 = vunpack.c.h.b16 %v98
    %v190 = vunpack.c.l.b16 %v99
    %v191 = vunpack.c.l.b16 %v100
    %v192 = vunpack.c.h.b16 %v100
    %v193 = vunpack.c.l.b16 %v101
    %v194 = vunpack.c.l.b16 %v102
    %v195 = vunpack.c.h.b16 %v102
    %v196 = vunpack.c.l.b16 %v103
    %v197 = vunpack.c.l.b16 %v104
    %v198 = vunpack.c.h.b16 %v104
    %v199 = vunpack.c.l.b16 %v105
    %v200 = vunpack.c.l.b16 %v106
    %v201 = vunpack.c.h.b16 %v106
    %v202 = vunpack.c.l.b16 %v107
    %v203 = vunpack.c.l.b16 %v108
    %v204 = vunpack.c.h.b16 %v108
    %v205 = vunpack.c.l.b16 %v109
    %v206 = vunpack.c.l.b16 %v110
    %v207 = vunpack.c.h.b16 %v110
    %v208 = vunpack.c.l.b16 %v111
    %v209 = vpack.c.b16 %v164, %v161
    %v210 = vpack.c.b16 %v165, %v162
    %v211 = vpack.c.b16 %v166, %v163
    %v212 = vpack.c.b16 %v170, %v167
    %v213 = vpack.c.b16 %v171, %v168
    %v214 = vpack.c.b16 %v172, %v169
    %v215 = vpack.c.b16 %v176, %v173
    %v216 = vpack.c.b16 %v177, %v174
    %v217 = vpack.c.b16 %v178, %v175
    %v218 = vpack.c.b16 %v182, %v179
    %v219 = vpack.c.b16 %v183, %v180
    %v220 = vpack.c.b16 %v184, %v181
    %v221 = vpack.c.b16 %v188, %v185
    %v222 = vpack.c.b16 %v189, %v186
    %v223 = vpack.c.b16 %v190, %v187
    %v224 = vpack.c.b16 %v194, %v191
    %v225 = vpack.c.b16 %v195, %v192
    %v226 = vpack.c.b16 %v196, %v193
    %v227 = vpack.c.b16 %v200, %v197
    %v228 = vpack.c.b16 %v201, %v198
    %v229 = vpack.c.b16 %v202, %v199
    %v230 = vpack.c.b16 %v206, %v203
    %v231 = vpack.c.b16 %v207, %v204
    %v232 = vpack.c.b16 %v208, %v205
    %257 = vmatprep.subr.bf16.mxu0 %v210
    %258 = vmatpush1.bf16.msra.mxu0 %v209
    %259 = vmatprep.subr.bf16.mxu0 %v213
    %260 = vmatpush1.bf16.msra.mxu0 %v212
    %261 = vmatprep.subr.bf16.mxu0 %v216
    %262 = vmatpush1.bf16.msra.mxu0 %v215
    %263 = vmatprep.subr.bf16.mxu0 %v219
    %264 = vmatpush1.bf16.msra.mxu0 %v218
    %265 = vmatprep.subr.bf16.mxu0 %v222
    %266 = vmatpush1.bf16.msra.mxu0 %v221
    %267 = vmatprep.subr.bf16.mxu0 %v225
    %268 = vmatpush1.bf16.msra.mxu0 %v224
    %269 = vmatprep.subr.bf16.mxu0 %v228
    %270 = vmatpush1.bf16.msra.mxu0 %v227
    %271 = vmatprep.subr.bf16.mxu0 %v231
    %272 = vmatpush1.bf16.msra.mxu0 %v230
    %273 = vmatprep.subr.bf16.mxu0 0
    %274 = vmatpush1.bf16.msra.mxu0 0
    %275 = vmatprep.subr.bf16.mxu0 0
    %276 = vmatpush1.bf16.msra.mxu0 0
    %277 = vmatprep.subr.bf16.mxu0 0
    %278 = vmatpush1.bf16.msra.mxu0 0
    %279 = vmatprep.subr.bf16.mxu0 0
    %280 = vmatpush1.bf16.msra.mxu0 0
    %281 = vmatprep.subr.bf16.mxu0 0
    %282 = vmatpush1.bf16.msra.mxu0 0
    %283 = vmatprep.subr.bf16.mxu0 0
    %284 = vmatpush1.bf16.msra.mxu0 0
    %285 = vmatprep.subr.bf16.mxu0 0
    %286 = vmatpush1.bf16.msra.mxu0 0
    %287 = vmatprep.subr.bf16.mxu0 0
    %288 = vmatpush1.bf16.msra.mxu0 0
    %289 = vmatprep.mubr.bf16.mxu0 0
    %290 = vmatmul.mubr.bf16.gmra.mrb[0].mxu0 %v76
    %v291 = vpop.f32.mrb[0].mxu0
    %v292 = vadd.f32 %v117, %v291
    %v293 = vpop.f32.mrb[0].mxu0
    %v294 = vadd.f32 %v121, %v293
    %v295 = vpop.f32.mrb[0].mxu0
    %v296 = vadd.f32 %v117, %v295
    %v297 = vpop.f32.mrb[0].mxu0
    %v298 = vadd.f32 %v121, %v297
    %299 = vmatprep.mubr.bf16.mxu0 0
    %300 = vmatmul.mubr.bf16.gmra.mrb[0].mxu0 %v77
    %v301 = vpop.f32.mrb[0].mxu0
    %v302 = vadd.f32 %v117, %v301
    %v303 = vpop.f32.mrb[0].mxu0
    %v304 = vadd.f32 %v121, %v303
    %v305 = vpop.f32.mrb[0].mxu0
    %v306 = vadd.f32 %v117, %v305
    %v307 = vpop.f32.mrb[0].mxu0
    %v308 = vadd.f32 %v121, %v307
    %309 = vmatprep.mubr.bf16.mxu0 0
    %310 = vmatmul.mubr.bf16.gmra.mrb[0].mxu0 %v78
    %v311 = vpop.f32.mrb[0].mxu0
    %v312 = vadd.f32 %v117, %v311
    %v313 = vpop.f32.mrb[0].mxu0
    %v314 = vadd.f32 %v121, %v313
    %v315 = vpop.f32.mrb[0].mxu0
    %v316 = vadd.f32 %v117, %v315
    %v317 = vpop.f32.mrb[0].mxu0
    %v318 = vadd.f32 %v121, %v317
    %319 = vmatprep.mubr.bf16.mxu0 0
    %320 = vmatmul.mubr.bf16.gmra.mrb[0].mxu0 %v79
    %v321 = vpop.f32.mrb[0].mxu0
    %v322 = vadd.f32 %v117, %v321
    %v323 = vpop.f32.mrb[0].mxu0
    %v324 = vadd.f32 %v121, %v323
    %v325 = vpop.f32.mrb[0].mxu0
    %v326 = vadd.f32 %v117, %v325
    %v327 = vpop.f32.mrb[0].mxu0
    %v328 = vadd.f32 %v121, %v327
    %329 = vdwg.mxu0
    %330 = vmatprep.subr.bf16.mxu0 0
    %331 = vmatpush1.bf16.msra.mxu0 %v211
    %332 = vmatprep.subr.bf16.mxu0 0
    %333 = vmatpush1.bf16.msra.mxu0 %v214
    %334 = vmatprep.subr.bf16.mxu0 0
    %335 = vmatpush1.bf16.msra.mxu0 %v217
    %336 = vmatprep.subr.bf16.mxu0 0
    %337 = vmatpush1.bf16.msra.mxu0 %v220
    %338 = vmatprep.subr.bf16.mxu0 0
    %339 = vmatpush1.bf16.msra.mxu0 %v223
    %340 = vmatprep.subr.bf16.mxu0 0
    %341 = vmatpush1.bf16.msra.mxu0 %v226
    %342 = vmatprep.subr.bf16.mxu0 0
    %343 = vmatpush1.bf16.msra.mxu0 %v229
    %344 = vmatprep.subr.bf16.mxu0 0
    %345 = vmatpush1.bf16.msra.mxu0 %v232
    %346 = vmatprep.subr.bf16.mxu0 0
    %347 = vmatpush1.bf16.msra.mxu0 0
    %348 = vmatprep.subr.bf16.mxu0 0
    %349 = vmatpush1.bf16.msra.mxu0 0
    %350 = vmatprep.subr.bf16.mxu0 0
    %351 = vmatpush1.bf16.msra.mxu0 0
    %352 = vmatprep.subr.bf16.mxu0 0
    %353 = vmatpush1.bf16.msra.mxu0 0
    %354 = vmatprep.subr.bf16.mxu0 0
    %355 = vmatpush1.bf16.msra.mxu0 0
    %356 = vmatprep.subr.bf16.mxu0 0
    %357 = vmatpush1.bf16.msra.mxu0 0
    %358 = vmatprep.subr.bf16.mxu0 0
    %359 = vmatpush1.bf16.msra.mxu0 0
    %360 = vmatprep.subr.bf16.mxu0 0
    %361 = vmatpush1.bf16.msra.mxu0 0
    %362 = vmatprep.mubr.bf16.mxu0 0
    %363 = vmatmul.mubr.bf16.gmra.mrb[0].mxu0 %v76
    %v364 = vpop.f32.mrb[0].mxu0
    %v365 = vadd.f32 %v125, %v364
    %v366 = vpop.f32.mrb[0].mxu0
    %v367 = vpop.f32.mrb[0].mxu0
    %v368 = vadd.f32 %v125, %v367
    %v369 = vpop.f32.mrb[0].mxu0
    %370 = vmatprep.mubr.bf16.mxu0 0
    %371 = vmatmul.mubr.bf16.gmra.mrb[0].mxu0 %v77
    %v372 = vpop.f32.mrb[0].mxu0
    %v373 = vadd.f32 %v125, %v372
    %v374 = vpop.f32.mrb[0].mxu0
    %v375 = vpop.f32.mrb[0].mxu0
    %v376 = vadd.f32 %v125, %v375
    %v377 = vpop.f32.mrb[0].mxu0
    %378 = vmatprep.mubr.bf16.mxu0 0
    %379 = vmatmul.mubr.bf16.gmra.mrb[0].mxu0 %v78
    %v380 = vpop.f32.mrb[0].mxu0
    %v381 = vadd.f32 %v125, %v380
    %v382 = vpop.f32.mrb[0].mxu0
    %v383 = vpop.f32.mrb[0].mxu0
    %v384 = vadd.f32 %v125, %v383
    %v385 = vpop.f32.mrb[0].mxu0
    %386 = vmatprep.mubr.bf16.mxu0 0
    %387 = vmatmul.mubr.bf16.gmra.mrb[0].mxu0 %v79
    %v388 = vpop.f32.mrb[0].mxu0
    %v389 = vadd.f32 %v125, %v388
    %v390 = vpop.f32.mrb[0].mxu0
    %v391 = vpop.f32.mrb[0].mxu0
    %v392 = vadd.f32 %v125, %v391
    %v393 = vpop.f32.mrb[0].mxu0
    %394 = vdwg.mxu0
    %395 = vst [vmem:[#allocation3] sm:$0xff] %v292
    %396 = vst [vmem:[#allocation3 + $0x8] sm:$0xff] %v294
    %397 = vst [vmem:[#allocation3 + $0x10] sm:$0xff] %v365
    %398 = vst [vmem:[#allocation3 + $0x18] sm:$0xff] %v296
    %399 = vst [vmem:[#allocation3 + $0x20] sm:$0xff] %v298
    %400 = vst [vmem:[#allocation3 + $0x28] sm:$0xff] %v368
    %401 = vst [vmem:[#allocation3 + $0x30] sm:$0xff] %v302
    %402 = vst [vmem:[#allocation3 + $0x38] sm:$0xff] %v304
    %403 = vst [vmem:[#allocation3 + $0x40] sm:$0xff] %v373
    %404 = vst [vmem:[#allocation3 + $0x48] sm:$0xff] %v306
    %405 = vst [vmem:[#allocation3 + $0x50] sm:$0xff] %v308
    %406 = vst [vmem:[#allocation3 + $0x58] sm:$0xff] %v376
    %407 = vst [vmem:[#allocation3 + $0x60] sm:$0xff] %v312
    %408 = vst [vmem:[#allocation3 + $0x68] sm:$0xff] %v314
    %409 = vst [vmem:[#allocation3 + $0x70] sm:$0xff] %v381
    %410 = vst [vmem:[#allocation3 + $0x78] sm:$0xff] %v316
    %411 = vst [vmem:[#allocation3 + $0x80] sm:$0xff] %v318
    %412 = vst [vmem:[#allocation3 + $0x88] sm:$0xff] %v384
    %413 = vst [vmem:[#allocation3 + $0x90] sm:$0xff] %v322
    %414 = vst [vmem:[#allocation3 + $0x98] sm:$0xff] %v324
    %415 = vst [vmem:[#allocation3 + $0xa0] sm:$0xff] %v389
    %416 = vst [vmem:[#allocation3 + $0xa8] sm:$0xff] %v326
    %417 = vst [vmem:[#allocation3 + $0xb0] sm:$0xff] %v328
    %418 = vst [vmem:[#allocation3 + $0xb8] sm:$0xff] %v392
    %v419 = vld [vmem:[%s4] sm:$0x1]
    %v421 = vlaneseq
    %v422 = vshrl.u32 %v421, 7
    %v423 = vsub.s32 0, %v422
    %v424 = vrot.slane %v419, %v423
    %v426 = vld [vmem:[#allocation2] sm:$0xff]
    %v427 = vld [vmem:[#allocation3] sm:$0xff]
    %v428 = vld [vmem:[#allocation3 + $0x8] sm:$0xff]
    %v429 = vld [vmem:[#allocation3 + $0x10] sm:$0xff]
    %v430 = vpack.c.bf16 %v426, %v426
    %v431 = vld [vmem:[#allocation9] sm:$0xff]
    %v432 = vld [vmem:[#allocation9 + $0x8] sm:$0xf]
    %v433 = vld [vmem:[#allocation9 + $0xc] sm:$0xff]
    %v434 = vld [vmem:[#allocation9 + $0x14] sm:$0xf]
    %v435 = vld [vmem:[#allocation9 + $0x18] sm:$0xff]
    %v436 = vld [vmem:[#allocation9 + $0x20] sm:$0xf]
    %v437 = vld [vmem:[#allocation9 + $0x24] sm:$0xff]
    %v438 = vld [vmem:[#allocation9 + $0x2c] sm:$0xf]
    %v439 = vld [vmem:[#allocation9 + $0x30] sm:$0xff]
    %v440 = vld [vmem:[#allocation9 + $0x38] sm:$0xf]
    %v441 = vld [vmem:[#allocation9 + $0x3c] sm:$0xff]
    %v442 = vld [vmem:[#allocation9 + $0x44] sm:$0xf]
    %v443 = vld [vmem:[#allocation9 + $0x48] sm:$0xff]
    %v444 = vld [vmem:[#allocation9 + $0x50] sm:$0xf]
    %v445 = vld [vmem:[#allocation9 + $0x54] sm:$0xff]
    %v446 = vld [vmem:[#allocation9 + $0x5c] sm:$0xf]
    %v447 = vld [vmem:[#allocation9 + $0x60] sm:$0xff]
    %v448 = vld [vmem:[#allocation9 + $0x68] sm:$0xf]
    %v449 = vld [vmem:[#allocation9 + $0x6c] sm:$0xff]
    %v450 = vld [vmem:[#allocation9 + $0x74] sm:$0xf]
    %v451 = vld [vmem:[#allocation9 + $0x78] sm:$0xff]
    %v452 = vld [vmem:[#allocation9 + $0x80] sm:$0xf]
    %v453 = vld [vmem:[#allocation9 + $0x84] sm:$0xff]
    %v454 = vld [vmem:[#allocation9 + $0x8c] sm:$0xf]
    %v455 = vld [vmem:[#allocation9 + $0x90] sm:$0xff]
    %v456 = vld [vmem:[#allocation9 + $0x98] sm:$0xf]
    %v457 = vld [vmem:[#allocation9 + $0x9c] sm:$0xff]
    %v458 = vld [vmem:[#allocation9 + $0xa4] sm:$0xf]
    %v459 = vld [vmem:[#allocation9 + $0xa8] sm:$0xff]
    %v460 = vld [vmem:[#allocation9 + $0xb0] sm:$0xf]
    %v461 = vld [vmem:[#allocation9 + $0xb4] sm:$0xff]
    %v462 = vld [vmem:[#allocation9 + $0xbc] sm:$0xf]
    %v495 = vunpack.c.l.b16 %v431
    %v496 = vunpack.c.h.b16 %v431
    %v497 = vunpack.c.l.b16 %v432
    %v498 = vunpack.c.l.b16 %v433
    %v499 = vunpack.c.h.b16 %v433
    %v500 = vunpack.c.l.b16 %v434
    %v501 = vunpack.c.l.b16 %v435
    %v502 = vunpack.c.h.b16 %v435
    %v503 = vunpack.c.l.b16 %v436
    %v504 = vunpack.c.l.b16 %v437
    %v505 = vunpack.c.h.b16 %v437
    %v506 = vunpack.c.l.b16 %v438
    %v507 = vunpack.c.l.b16 %v439
    %v508 = vunpack.c.h.b16 %v439
    %v509 = vunpack.c.l.b16 %v440
    %v510 = vunpack.c.l.b16 %v441
    %v511 = vunpack.c.h.b16 %v441
    %v512 = vunpack.c.l.b16 %v442
    %v513 = vunpack.c.l.b16 %v443
    %v514 = vunpack.c.h.b16 %v443
    %v515 = vunpack.c.l.b16 %v444
    %v516 = vunpack.c.l.b16 %v445
    %v517 = vunpack.c.h.b16 %v445
    %v518 = vunpack.c.l.b16 %v446
    %v519 = vunpack.c.l.b16 %v447
    %v520 = vunpack.c.h.b16 %v447
    %v521 = vunpack.c.l.b16 %v448
    %v522 = vunpack.c.l.b16 %v449
    %v523 = vunpack.c.h.b16 %v449
    %v524 = vunpack.c.l.b16 %v450
    %v525 = vunpack.c.l.b16 %v451
    %v526 = vunpack.c.h.b16 %v451
    %v527 = vunpack.c.l.b16 %v452
    %v528 = vunpack.c.l.b16 %v453
    %v529 = vunpack.c.h.b16 %v453
    %v530 = vunpack.c.l.b16 %v454
    %v531 = vunpack.c.l.b16 %v455
    %v532 = vunpack.c.h.b16 %v455
    %v533 = vunpack.c.l.b16 %v456
    %v534 = vunpack.c.l.b16 %v457
    %v535 = vunpack.c.h.b16 %v457
    %v536 = vunpack.c.l.b16 %v458
    %v537 = vunpack.c.l.b16 %v459
    %v538 = vunpack.c.h.b16 %v459
    %v539 = vunpack.c.l.b16 %v460
    %v540 = vunpack.c.l.b16 %v461
    %v541 = vunpack.c.h.b16 %v461
    %v542 = vunpack.c.l.b16 %v462
    %v543 = vpack.c.b16 %v498, %v495
    %v544 = vpack.c.b16 %v499, %v496
    %v545 = vpack.c.b16 %v500, %v497
    %v546 = vpack.c.b16 %v504, %v501
    %v547 = vpack.c.b16 %v505, %v502
    %v548 = vpack.c.b16 %v506, %v503
    %v549 = vpack.c.b16 %v510, %v507
    %v550 = vpack.c.b16 %v511, %v508
    %v551 = vpack.c.b16 %v512, %v509
    %v552 = vpack.c.b16 %v516, %v513
    %v553 = vpack.c.b16 %v517, %v514
    %v554 = vpack.c.b16 %v518, %v515
    %v555 = vpack.c.b16 %v522, %v519
    %v556 = vpack.c.b16 %v523, %v520
    %v557 = vpack.c.b16 %v524, %v521
    %v558 = vpack.c.b16 %v528, %v525
    %v559 = vpack.c.b16 %v529, %v526
    %v560 = vpack.c.b16 %v530, %v527
    %v561 = vpack.c.b16 %v534, %v531
    %v562 = vpack.c.b16 %v535, %v532
    %v563 = vpack.c.b16 %v536, %v533
    %v564 = vpack.c.b16 %v540, %v537
    %v565 = vpack.c.b16 %v541, %v538
    %v566 = vpack.c.b16 %v542, %v539
    %591 = vmatprep.subr.bf16.mxu0 %v544
    %592 = vmatpush1.bf16.msra.mxu0 %v543
    %593 = vmatprep.subr.bf16.mxu0 %v547
    %594 = vmatpush1.bf16.msra.mxu0 %v546
    %595 = vmatprep.subr.bf16.mxu0 %v550
    %596 = vmatpush1.bf16.msra.mxu0 %v549
    %597 = vmatprep.subr.bf16.mxu0 %v553
    %598 = vmatpush1.bf16.msra.mxu0 %v552
    %599 = vmatprep.subr.bf16.mxu0 %v556
    %600 = vmatpush1.bf16.msra.mxu0 %v555
    %601 = vmatprep.subr.bf16.mxu0 %v559
    %602 = vmatpush1.bf16.msra.mxu0 %v558
    %603 = vmatprep.subr.bf16.mxu0 %v562
    %604 = vmatpush1.bf16.msra.mxu0 %v561
    %605 = vmatprep.subr.bf16.mxu0 %v565
    %606 = vmatpush1.bf16.msra.mxu0 %v564
    %607 = vmatprep.subr.bf16.mxu0 0
    %608 = vmatpush1.bf16.msra.mxu0 0
    %609 = vmatprep.subr.bf16.mxu0 0
    %610 = vmatpush1.bf16.msra.mxu0 0
    %611 = vmatprep.subr.bf16.mxu0 0
    %612 = vmatpush1.bf16.msra.mxu0 0
    %613 = vmatprep.subr.bf16.mxu0 0
    %614 = vmatpush1.bf16.msra.mxu0 0
    %615 = vmatprep.subr.bf16.mxu0 0
    %616 = vmatpush1.bf16.msra.mxu0 0
    %617 = vmatprep.subr.bf16.mxu0 0
    %618 = vmatpush1.bf16.msra.mxu0 0
    %619 = vmatprep.subr.bf16.mxu0 0
    %620 = vmatpush1.bf16.msra.mxu0 0
    %621 = vmatprep.subr.bf16.mxu0 0
    %622 = vmatpush1.bf16.msra.mxu0 0
    %623 = vmatprep.mubr.bf16.mxu0 0
    %624 = vmatmul.mubr.bf16.gmra.mrb[0].mxu0 %v430
    %v625 = vpop.f32.mrb[0].mxu0
    %v626 = vadd.f32 0.0, %v625
    %v627 = vpop.f32.mrb[0].mxu0
    %v628 = vadd.f32 0.0, %v627
    %v629 = vpop.f32.mrb[0].mxu0
    %v630 = vpop.f32.mrb[0].mxu0
    %631 = vdwg.mxu0
    %632 = vmatprep.subr.bf16.mxu0 0
    %633 = vmatpush1.bf16.msra.mxu0 %v545
    %634 = vmatprep.subr.bf16.mxu0 0
    %635 = vmatpush1.bf16.msra.mxu0 %v548
    %636 = vmatprep.subr.bf16.mxu0 0
    %637 = vmatpush1.bf16.msra.mxu0 %v551
    %638 = vmatprep.subr.bf16.mxu0 0
    %639 = vmatpush1.bf16.msra.mxu0 %v554
    %640 = vmatprep.subr.bf16.mxu0 0
    %641 = vmatpush1.bf16.msra.mxu0 %v557
    %642 = vmatprep.subr.bf16.mxu0 0
    %643 = vmatpush1.bf16.msra.mxu0 %v560
    %644 = vmatprep.subr.bf16.mxu0 0
    %645 = vmatpush1.bf16.msra.mxu0 %v563
    %646 = vmatprep.subr.bf16.mxu0 0
    %647 = vmatpush1.bf16.msra.mxu0 %v566
    %648 = vmatprep.subr.bf16.mxu0 0
    %649 = vmatpush1.bf16.msra.mxu0 0
    %650 = vmatprep.subr.bf16.mxu0 0
    %651 = vmatpush1.bf16.msra.mxu0 0
    %652 = vmatprep.subr.bf16.mxu0 0
    %653 = vmatpush1.bf16.msra.mxu0 0
    %654 = vmatprep.subr.bf16.mxu0 0
    %655 = vmatpush1.bf16.msra.mxu0 0
    %656 = vmatprep.subr.bf16.mxu0 0
    %657 = vmatpush1.bf16.msra.mxu0 0
    %658 = vmatprep.subr.bf16.mxu0 0
    %659 = vmatpush1.bf16.msra.mxu0 0
    %660 = vmatprep.subr.bf16.mxu0 0
    %661 = vmatpush1.bf16.msra.mxu0 0
    %662 = vmatprep.subr.bf16.mxu0 0
    %663 = vmatpush1.bf16.msra.mxu0 0
    %664 = vmatprep.mubr.bf16.mxu0 0
    %665 = vmatmul.mubr.bf16.gmra.mrb[0].mxu0 %v430
    %v666 = vpop.f32.mrb[0].mxu0
    %v667 = vadd.f32 0.0, %v666
    %v668 = vpop.f32.mrb[0].mxu0
    %v669 = vpop.f32.mrb[0].mxu0
    %v670 = vpop.f32.mrb[0].mxu0
    %671 = vdwg.mxu0
    %v672 = vadd.f32 %v427, %v626
    %v673 = vxor.u32 %v672, 2147483648
    %v674 = vmul.f32 %v673, 1.442695
    %v675 = vpow.pop %v674
    %v676 = vadd.f32 %v675, 1.0
    %v677 = vrcp.pop %v676
    %v678 = vmul.f32 1.0, %v677
    %v679 = vadd.f32 %v428, %v628
    %v680 = vxor.u32 %v679, 2147483648
    %v681 = vmul.f32 %v680, 1.442695
    %v682 = vpow.pop %v681
    %v683 = vadd.f32 %v682, 1.0
    %v684 = vrcp.pop %v683
    %v685 = vmul.f32 1.0, %v684
    %v686 = vadd.f32 %v667, %v424
    %v687 = vmul.f32 %v678, %v686
    %v688 = vadd.f32 %v429, %v687
    %v689 = vtanh.pop %v688
    %v690 = vsub.f32 %v426, %v689
    %v691 = vmul.f32 %v685, %v690
    %v692 = vadd.f32 %v689, %v691
    %693 = vst [vmem:[#allocation10] sm:$0xff] %v692
    %s694 = scalar_lea.vmem [#allocation3], 24
    %v695 = vld [vmem:[%s694] sm:$0xff]
    %v696 = vld [vmem:[%s694 + $0x8] sm:$0xff]
    %v697 = vld [vmem:[%s694 + $0x10] sm:$0xff]
    %v698 = vpack.c.bf16 %v692, %v692
    %v699 = vld [vmem:[#allocation9] sm:$0xff]
    %v700 = vld [vmem:[#allocation9 + $0x8] sm:$0xf]
    %v701 = vld [vmem:[#allocation9 + $0xc] sm:$0xff]
    %v702 = vld [vmem:[#allocation9 + $0x14] sm:$0xf]
    %v703 = vld [vmem:[#allocation9 + $0x18] sm:$0xff]
    %v704 = vld [vmem:[#allocation9 + $0x20] sm:$0xf]
    %v705 = vld [vmem:[#allocation9 + $0x24] sm:$0xff]
    %v706 = vld [vmem:[#allocation9 + $0x2c] sm:$0xf]
    %v707 = vld [vmem:[#allocation9 + $0x30] sm:$0xff]
    %v708 = vld [vmem:[#allocation9 + $0x38] sm:$0xf]
    %v709 = vld [vmem:[#allocation9 + $0x3c] sm:$0xff]
    %v710 = vld [vmem:[#allocation9 + $0x44] sm:$0xf]
    %v711 = vld [vmem:[#allocation9 + $0x48] sm:$0xff]
    %v712 = vld [vmem:[#allocation9 + $0x50] sm:$0xf]
    %v713 = vld [vmem:[#allocation9 + $0x54] sm:$0xff]
    %v714 = vld [vmem:[#allocation9 + $0x5c] sm:$0xf]
    %v715 = vld [vmem:[#allocation9 + $0x60] sm:$0xff]
    %v716 = vld [vmem:[#allocation9 + $0x68] sm:$0xf]
    %v717 = vld [vmem:[#allocation9 + $0x6c] sm:$0xff]
    %v718 = vld [vmem:[#allocation9 + $0x74] sm:$0xf]
    %v719 = vld [vmem:[#allocation9 + $0x78] sm:$0xff]
    %v720 = vld [vmem:[#allocation9 + $0x80] sm:$0xf]
    %v721 = vld [vmem:[#allocation9 + $0x84] sm:$0xff]
    %v722 = vld [vmem:[#allocation9 + $0x8c] sm:$0xf]
    %v723 = vld [vmem:[#allocation9 + $0x90] sm:$0xff]
    %v724 = vld [vmem:[#allocation9 + $0x98] sm:$0xf]
    %v725 = vld [vmem:[#allocation9 + $0x9c] sm:$0xff]
    %v726 = vld [vmem:[#allocation9 + $0xa4] sm:$0xf]
    %v727 = vld [vmem:[#allocation9 + $0xa8] sm:$0xff]
    %v728 = vld [vmem:[#allocation9 + $0xb0] sm:$0xf]
    %v729 = vld [vmem:[#allocation9 + $0xb4] sm:$0xff]
    %v730 = vld [vmem:[#allocation9 + $0xbc] sm:$0xf]
    %v763 = vunpack.c.l.b16 %v699
    %v764 = vunpack.c.h.b16 %v699
    %v765 = vunpack.c.l.b16 %v700
    %v766 = vunpack.c.l.b16 %v701
    %v767 = vunpack.c.h.b16 %v701
    %v768 = vunpack.c.l.b16 %v702
    %v769 = vunpack.c.l.b16 %v703
    %v770 = vunpack.c.h.b16 %v703
    %v771 = vunpack.c.l.b16 %v704
    %v772 = vunpack.c.l.b16 %v705
    %v773 = vunpack.c.h.b16 %v705
    %v774 = vunpack.c.l.b16 %v706
    %v775 = vunpack.c.l.b16 %v707
    %v776 = vunpack.c.h.b16 %v707
    %v777 = vunpack.c.l.b16 %v708
    %v778 = vunpack.c.l.b16 %v709
    %v779 = vunpack.c.h.b16 %v709
    %v780 = vunpack.c.l.b16 %v710
    %v781 = vunpack.c.l.b16 %v711
    %v782 = vunpack.c.h.b16 %v711
    %v783 = vunpack.c.l.b16 %v712
    %v784 = vunpack.c.l.b16 %v713
    %v785 = vunpack.c.h.b16 %v713
    %v786 = vunpack.c.l.b16 %v714
    %v787 = vunpack.c.l.b16 %v715
    %v788 = vunpack.c.h.b16 %v715
    %v789 = vunpack.c.l.b16 %v716
    %v790 = vunpack.c.l.b16 %v717
    %v791 = vunpack.c.h.b16 %v717
    %v792 = vunpack.c.l.b16 %v718
    %v793 = vunpack.c.l.b16 %v719
    %v794 = vunpack.c.h.b16 %v719
    %v795 = vunpack.c.l.b16 %v720
    %v796 = vunpack.c.l.b16 %v721
    %v797 = vunpack.c.h.b16 %v721
    %v798 = vunpack.c.l.b16 %v722
    %v799 = vunpack.c.l.b16 %v723
    %v800 = vunpack.c.h.b16 %v723
    %v801 = vunpack.c.l.b16 %v724
    %v802 = vunpack.c.l.b16 %v725
    %v803 = vunpack.c.h.b16 %v725
    %v804 = vunpack.c.l.b16 %v726
    %v805 = vunpack.c.l.b16 %v727
    %v806 = vunpack.c.h.b16 %v727
    %v807 = vunpack.c.l.b16 %v728
    %v808 = vunpack.c.l.b16 %v729
    %v809 = vunpack.c.h.b16 %v729
    %v810 = vunpack.c.l.b16 %v730
    %v811 = vpack.c.b16 %v766, %v763
    %v812 = vpack.c.b16 %v767, %v764
    %v813 = vpack.c.b16 %v768, %v765
    %v814 = vpack.c.b16 %v772, %v769
    %v815 = vpack.c.b16 %v773, %v770
    %v816 = vpack.c.b16 %v774, %v771
    %v817 = vpack.c.b16 %v778, %v775
    %v818 = vpack.c.b16 %v779, %v776
    %v819 = vpack.c.b16 %v780, %v777
    %v820 = vpack.c.b16 %v784, %v781
    %v821 = vpack.c.b16 %v785, %v782
    %v822 = vpack.c.b16 %v786, %v783
    %v823 = vpack.c.b16 %v790, %v787
    %v824 = vpack.c.b16 %v791, %v788
    %v825 = vpack.c.b16 %v792, %v789
    %v826 = vpack.c.b16 %v796, %v793
    %v827 = vpack.c.b16 %v797, %v794
    %v828 = vpack.c.b16 %v798, %v795
    %v829 = vpack.c.b16 %v802, %v799
    %v830 = vpack.c.b16 %v803, %v800
    %v831 = vpack.c.b16 %v804, %v801
    %v832 = vpack.c.b16 %v808, %v805
    %v833 = vpack.c.b16 %v809, %v806
    %v834 = vpack.c.b16 %v810, %v807
    %859 = vmatprep.subr.bf16.mxu0 %v812
    %860 = vmatpush1.bf16.msra.mxu0 %v811
    %861 = vmatprep.subr.bf16.mxu0 %v815
    %862 = vmatpush1.bf16.msra.mxu0 %v814
    %863 = vmatprep.subr.bf16.mxu0 %v818
    %864 = vmatpush1.bf16.msra.mxu0 %v817
    %865 = vmatprep.subr.bf16.mxu0 %v821
    %866 = vmatpush1.bf16.msra.mxu0 %v820
    %867 = vmatprep.subr.bf16.mxu0 %v824
    %868 = vmatpush1.bf16.msra.mxu0 %v823
    %869 = vmatprep.subr.bf16.mxu0 %v827
    %870 = vmatpush1.bf16.msra.mxu0 %v826
    %871 = vmatprep.subr.bf16.mxu0 %v830
    %872 = vmatpush1.bf16.msra.mxu0 %v829
    %873 = vmatprep.subr.bf16.mxu0 %v833
    %874 = vmatpush1.bf16.msra.mxu0 %v832
    %875 = vmatprep.subr.bf16.mxu0 0
    %876 = vmatpush1.bf16.msra.mxu0 0
    %877 = vmatprep.subr.bf16.mxu0 0
    %878 = vmatpush1.bf16.msra.mxu0 0
    %879 = vmatprep.subr.bf16.mxu0 0
    %880 = vmatpush1.bf16.msra.mxu0 0
    %881 = vmatprep.subr.bf16.mxu0 0
    %882 = vmatpush1.bf16.msra.mxu0 0
    %883 = vmatprep.subr.bf16.mxu0 0
    %884 = vmatpush1.bf16.msra.mxu0 0
    %885 = vmatprep.subr.bf16.mxu0 0
    %886 = vmatpush1.bf16.msra.mxu0 0
    %887 = vmatprep.subr.bf16.mxu0 0
    %888 = vmatpush1.bf16.msra.mxu0 0
    %889 = vmatprep.subr.bf16.mxu0 0
    %890 = vmatpush1.bf16.msra.mxu0 0
    %891 = vmatprep.mubr.bf16.mxu0 0
    %892 = vmatmul.mubr.bf16.gmra.mrb[0].mxu0 %v698
    %v893 = vpop.f32.mrb[0].mxu0
    %v894 = vadd.f32 0.0, %v893
    %v895 = vpop.f32.mrb[0].mxu0
    %v896 = vadd.f32 0.0, %v895
    %v897 = vpop.f32.mrb[0].mxu0
    %v898 = vpop.f32.mrb[0].mxu0
    %899 = vdwg.mxu0
    %900 = vmatprep.subr.bf16.mxu0 0
    %901 = vmatpush1.bf16.msra.mxu0 %v813
    %902 = vmatprep.subr.bf16.mxu0 0
    %903 = vmatpush1.bf16.msra.mxu0 %v816
    %904 = vmatprep.subr.bf16.mxu0 0
    %905 = vmatpush1.bf16.msra.mxu0 %v819
    %906 = vmatprep.subr.bf16.mxu0 0
    %907 = vmatpush1.bf16.msra.mxu0 %v822
    %908 = vmatprep.subr.bf16.mxu0 0
    %909 = vmatpush1.bf16.msra.mxu0 %v825
    %910 = vmatprep.subr.bf16.mxu0 0
    %911 = vmatpush1.bf16.msra.mxu0 %v828
    %912 = vmatprep.subr.bf16.mxu0 0
    %913 = vmatpush1.bf16.msra.mxu0 %v831
    %914 = vmatprep.subr.bf16.mxu0 0
    %915 = vmatpush1.bf16.msra.mxu0 %v834
    %916 = vmatprep.subr.bf16.mxu0 0
    %917 = vmatpush1.bf16.msra.mxu0 0
    %918 = vmatprep.subr.bf16.mxu0 0
    %919 = vmatpush1.bf16.msra.mxu0 0
    %920 = vmatprep.subr.bf16.mxu0 0
    %921 = vmatpush1.bf16.msra.mxu0 0
    %922 = vmatprep.subr.bf16.mxu0 0
    %923 = vmatpush1.bf16.msra.mxu0 0
    %924 = vmatprep.subr.bf16.mxu0 0
    %925 = vmatpush1.bf16.msra.mxu0 0
    %926 = vmatprep.subr.bf16.mxu0 0
    %927 = vmatpush1.bf16.msra.mxu0 0
    %928 = vmatprep.subr.bf16.mxu0 0
    %929 = vmatpush1.bf16.msra.mxu0 0
    %930 = vmatprep.subr.bf16.mxu0 0
    %931 = vmatpush1.bf16.msra.mxu0 0
    %932 = vmatprep.mubr.bf16.mxu0 0
    %933 = vmatmul.mubr.bf16.gmra.mrb[0].mxu0 %v698
    %v934 = vpop.f32.mrb[0].mxu0
    %v935 = vadd.f32 0.0, %v934
    %v936 = vpop.f32.mrb[0].mxu0
    %v937 = vpop.f32.mrb[0].mxu0
    %v938 = vpop.f32.mrb[0].mxu0
    %939 = vdwg.mxu0
    %v940 = vadd.f32 %v695, %v894
    %v941 = vxor.u32 %v940, 2147483648
    %v942 = vmul.f32 %v941, 1.442695
    %v943 = vpow.pop %v942
    %v944 = vadd.f32 %v943, 1.0
    %v945 = vrcp.pop %v944
    %v946 = vmul.f32 1.0, %v945
    %v947 = vadd.f32 %v696, %v896
    %v948 = vxor.u32 %v947, 2147483648
    %v949 = vmul.f32 %v948, 1.442695
    %v950 = vpow.pop %v949
    %v951 = vadd.f32 %v950, 1.0
    %v952 = vrcp.pop %v951
    %v953 = vmul.f32 1.0, %v952
    %v954 = vadd.f32 %v935, %v424
    %v955 = vmul.f32 %v946, %v954
    %v956 = vadd.f32 %v697, %v955
    %v957 = vtanh.pop %v956
    %v958 = vsub.f32 %v692, %v957
    %v959 = vmul.f32 %v953, %v958
    %v960 = vadd.f32 %v957, %v959
    %s961 = scalar_lea.vmem [#allocation10], 8
    %962 = vst [vmem:[%s961] sm:$0xff] %v960
    %s963 = scalar_lea.vmem [#allocation3], 48
    %v964 = vld [vmem:[%s963] sm:$0xff]
    %v965 = vld [vmem:[%s963 + $0x8] sm:$0xff]
    %v966 = vld [vmem:[%s963 + $0x10] sm:$0xff]
    %v967 = vpack.c.bf16 %v960, %v960
    %v968 = vld [vmem:[#allocation9] sm:$0xff]
    %v969 = vld [vmem:[#allocation9 + $0x8] sm:$0xf]
    %v970 = vld [vmem:[#allocation9 + $0xc] sm:$0xff]
    %v971 = vld [vmem:[#allocation9 + $0x14] sm:$0xf]
    %v972 = vld [vmem:[#allocation9 + $0x18] sm:$0xff]
    %v973 = vld [vmem:[#allocation9 + $0x20] sm:$0xf]
    %v974 = vld [vmem:[#allocation9 + $0x24] sm:$0xff]
    %v975 = vld [vmem:[#allocation9 + $0x2c] sm:$0xf]
    %v976 = vld [vmem:[#allocation9 + $0x30] sm:$0xff]
    %v977 = vld [vmem:[#allocation9 + $0x38] sm:$0xf]
    %v978 = vld [vmem:[#allocation9 + $0x3c] sm:$0xff]
    %v979 = vld [vmem:[#allocation9 + $0x44] sm:$0xf]
    %v980 = vld [vmem:[#allocation9 + $0x48] sm:$0xff]
    %v981 = vld [vmem:[#allocation9 + $0x50] sm:$0xf]
    %v982 = vld [vmem:[#allocation9 + $0x54] sm:$0xff]
    %v983 = vld [vmem:[#allocation9 + $0x5c] sm:$0xf]
    %v984 = vld [vmem:[#allocation9 + $0x60] sm:$0xff]
    %v985 = vld [vmem:[#allocation9 + $0x68] sm:$0xf]
    %v986 = vld [vmem:[#allocation9 + $0x6c] sm:$0xff]
    %v987 = vld [vmem:[#allocation9 + $0x74] sm:$0xf]
    %v988 = vld [vmem:[#allocation9 + $0x78] sm:$0xff]
    %v989 = vld [vmem:[#allocation9 + $0x80] sm:$0xf]
    %v990 = vld [vmem:[#allocation9 + $0x84] sm:$0xff]
    %v991 = vld [vmem:[#allocation9 + $0x8c] sm:$0xf]
    %v992 = vld [vmem:[#allocation9 + $0x90] sm:$0xff]
    %v993 = vld [vmem:[#allocation9 + $0x98] sm:$0xf]
    %v994 = vld [vmem:[#allocation9 + $0x9c] sm:$0xff]
    %v995 = vld [vmem:[#allocation9 + $0xa4] sm:$0xf]
    %v996 = vld [vmem:[#allocation9 + $0xa8] sm:$0xff]
    %v997 = vld [vmem:[#allocation9 + $0xb0] sm:$0xf]
    %v998 = vld [vmem:[#allocation9 + $0xb4] sm:$0xff]
    %v999 = vld [vmem:[#allocation9 + $0xbc] sm:$0xf]
    %v1032 = vunpack.c.l.b16 %v968
    %v1033 = vunpack.c.h.b16 %v968
    %v1034 = vunpack.c.l.b16 %v969
    %v1035 = vunpack.c.l.b16 %v970
    %v1036 = vunpack.c.h.b16 %v970
    %v1037 = vunpack.c.l.b16 %v971
    %v1038 = vunpack.c.l.b16 %v972
    %v1039 = vunpack.c.h.b16 %v972
    %v1040 = vunpack.c.l.b16 %v973
    %v1041 = vunpack.c.l.b16 %v974
    %v1042 = vunpack.c.h.b16 %v974
    %v1043 = vunpack.c.l.b16 %v975
    %v1044 = vunpack.c.l.b16 %v976
    %v1045 = vunpack.c.h.b16 %v976
    %v1046 = vunpack.c.l.b16 %v977
    %v1047 = vunpack.c.l.b16 %v978
    %v1048 = vunpack.c.h.b16 %v978
    %v1049 = vunpack.c.l.b16 %v979
    %v1050 = vunpack.c.l.b16 %v980
    %v1051 = vunpack.c.h.b16 %v980
    %v1052 = vunpack.c.l.b16 %v981
    %v1053 = vunpack.c.l.b16 %v982
    %v1054 = vunpack.c.h.b16 %v982
    %v1055 = vunpack.c.l.b16 %v983
    %v1056 = vunpack.c.l.b16 %v984
    %v1057 = vunpack.c.h.b16 %v984
    %v1058 = vunpack.c.l.b16 %v985
    %v1059 = vunpack.c.l.b16 %v986
    %v1060 = vunpack.c.h.b16 %v986
    %v1061 = vunpack.c.l.b16 %v987
    %v1062 = vunpack.c.l.b16 %v988
    %v1063 = vunpack.c.h.b16 %v988
    %v1064 = vunpack.c.l.b16 %v989
    %v1065 = vunpack.c.l.b16 %v990
    %v1066 = vunpack.c.h.b16 %v990
    %v1067 = vunpack.c.l.b16 %v991
    %v1068 = vunpack.c.l.b16 %v992
    %v1069 = vunpack.c.h.b16 %v992
    %v1070 = vunpack.c.l.b16 %v993
    %v1071 = vunpack.c.l.b16 %v994
    %v1072 = vunpack.c.h.b16 %v994
    %v1073 = vunpack.c.l.b16 %v995
    %v1074 = vunpack.c.l.b16 %v996
    %v1075 = vunpack.c.h.b16 %v996
    %v1076 = vunpack.c.l.b16 %v997
    %v1077 = vunpack.c.l.b16 %v998
    %v1078 = vunpack.c.h.b16 %v998
    %v1079 = vunpack.c.l.b16 %v999
    %v1080 = vpack.c.b16 %v1035, %v1032
    %v1081 = vpack.c.b16 %v1036, %v1033
    %v1082 = vpack.c.b16 %v1037, %v1034
    %v1083 = vpack.c.b16 %v1041, %v1038
    %v1084 = vpack.c.b16 %v1042, %v1039
    %v1085 = vpack.c.b16 %v1043, %v1040
    %v1086 = vpack.c.b16 %v1047, %v1044
    %v1087 = vpack.c.b16 %v1048, %v1045
    %v1088 = vpack.c.b16 %v1049, %v1046
    %v1089 = vpack.c.b16 %v1053, %v1050
    %v1090 = vpack.c.b16 %v1054, %v1051
    %v1091 = vpack.c.b16 %v1055, %v1052
    %v1092 = vpack.c.b16 %v1059, %v1056
    %v1093 = vpack.c.b16 %v1060, %v1057
    %v1094 = vpack.c.b16 %v1061, %v1058
    %v1095 = vpack.c.b16 %v1065, %v1062
    %v1096 = vpack.c.b16 %v1066, %v1063
    %v1097 = vpack.c.b16 %v1067, %v1064
    %v1098 = vpack.c.b16 %v1071, %v1068
    %v1099 = vpack.c.b16 %v1072, %v1069
    %v1100 = vpack.c.b16 %v1073, %v1070
    %v1101 = vpack.c.b16 %v1077, %v1074
    %v1102 = vpack.c.b16 %v1078, %v1075
    %v1103 = vpack.c.b16 %v1079, %v1076
    %1128 = vmatprep.subr.bf16.mxu0 %v1081
    %1129 = vmatpush1.bf16.msra.mxu0 %v1080
    %1130 = vmatprep.subr.bf16.mxu0 %v1084
    %1131 = vmatpush1.bf16.msra.mxu0 %v1083
    %1132 = vmatprep.subr.bf16.mxu0 %v1087
    %1133 = vmatpush1.bf16.msra.mxu0 %v1086
    %1134 = vmatprep.subr.bf16.mxu0 %v1090
    %1135 = vmatpush1.bf16.msra.mxu0 %v1089
    %1136 = vmatprep.subr.bf16.mxu0 %v1093
    %1137 = vmatpush1.bf16.msra.mxu0 %v1092
    %1138 = vmatprep.subr.bf16.mxu0 %v1096
    %1139 = vmatpush1.bf16.msra.mxu0 %v1095
    %1140 = vmatprep.subr.bf16.mxu0 %v1099
    %1141 = vmatpush1.bf16.msra.mxu0 %v1098
    %1142 = vmatprep.subr.bf16.mxu0 %v1102
    %1143 = vmatpush1.bf16.msra.mxu0 %v1101
    %1144 = vmatprep.subr.bf16.mxu0 0
    %1145 = vmatpush1.bf16.msra.mxu0 0
    %1146 = vmatprep.subr.bf16.mxu0 0
    %1147 = vmatpush1.bf16.msra.mxu0 0
    %1148 = vmatprep.subr.bf16.mxu0 0
    %1149 = vmatpush1.bf16.msra.mxu0 0
    %1150 = vmatprep.subr.bf16.mxu0 0
    %1151 = vmatpush1.bf16.msra.mxu0 0
    %1152 = vmatprep.subr.bf16.mxu0 0
    %1153 = vmatpush1.bf16.msra.mxu0 0
    %1154 = vmatprep.subr.bf16.mxu0 0
    %1155 = vmatpush1.bf16.msra.mxu0 0
    %1156 = vmatprep.subr.bf16.mxu0 0
    %1157 = vmatpush1.bf16.msra.mxu0 0
    %1158 = vmatprep.subr.bf16.mxu0 0
    %1159 = vmatpush1.bf16.msra.mxu0 0
    %1160 = vmatprep.mubr.bf16.mxu0 0
    %1161 = vmatmul.mubr.bf16.gmra.mrb[0].mxu0 %v967
    %v1162 = vpop.f32.mrb[0].mxu0
    %v1163 = vadd.f32 0.0, %v1162
    %v1164 = vpop.f32.mrb[0].mxu0
    %v1165 = vadd.f32 0.0, %v1164
    %v1166 = vpop.f32.mrb[0].mxu0
    %v1167 = vpop.f32.mrb[0].mxu0
    %1168 = vdwg.mxu0
    %1169 = vmatprep.subr.bf16.mxu0 0
    %1170 = vmatpush1.bf16.msra.mxu0 %v1082
    %1171 = vmatprep.subr.bf16.mxu0 0
    %1172 = vmatpush1.bf16.msra.mxu0 %v1085
    %1173 = vmatprep.subr.bf16.mxu0 0
    %1174 = vmatpush1.bf16.msra.mxu0 %v1088
    %1175 = vmatprep.subr.bf16.mxu0 0
    %1176 = vmatpush1.bf16.msra.mxu0 %v1091
    %1177 = vmatprep.subr.bf16.mxu0 0
    %1178 = vmatpush1.bf16.msra.mxu0 %v1094
    %1179 = vmatprep.subr.bf16.mxu0 0
    %1180 = vmatpush1.bf16.msra.mxu0 %v1097
    %1181 = vmatprep.subr.bf16.mxu0 0
    %1182 = vmatpush1.bf16.msra.mxu0 %v1100
    %1183 = vmatprep.subr.bf16.mxu0 0
    %1184 = vmatpush1.bf16.msra.mxu0 %v1103
    %1185 = vmatprep.subr.bf16.mxu0 0
    %1186 = vmatpush1.bf16.msra.mxu0 0
    %1187 = vmatprep.subr.bf16.mxu0 0
    %1188 = vmatpush1.bf16.msra.mxu0 0
    %1189 = vmatprep.subr.bf16.mxu0 0
    %1190 = vmatpush1.bf16.msra.mxu0 0
    %1191 = vmatprep.subr.bf16.mxu0 0
    %1192 = vmatpush1.bf16.msra.mxu0 0
    %1193 = vmatprep.subr.bf16.mxu0 0
    %1194 = vmatpush1.bf16.msra.mxu0 0
    %1195 = vmatprep.subr.bf16.mxu0 0
    %1196 = vmatpush1.bf16.msra.mxu0 0
    %1197 = vmatprep.subr.bf16.mxu0 0
    %1198 = vmatpush1.bf16.msra.mxu0 0
    %1199 = vmatprep.subr.bf16.mxu0 0
    %1200 = vmatpush1.bf16.msra.mxu0 0
    %1201 = vmatprep.mubr.bf16.mxu0 0
    %1202 = vmatmul.mubr.bf16.gmra.mrb[0].mxu0 %v967
    %v1203 = vpop.f32.mrb[0].mxu0
    %v1204 = vadd.f32 0.0, %v1203
    %v1205 = vpop.f32.mrb[0].mxu0
    %v1206 = vpop.f32.mrb[0].mxu0
    %v1207 = vpop.f32.mrb[0].mxu0
    %1208 = vdwg.mxu0
    %v1209 = vadd.f32 %v964, %v1163
    %v1210 = vxor.u32 %v1209, 2147483648
    %v1211 = vmul.f32 %v1210, 1.442695
    %v1212 = vpow.pop %v1211
    %v1213 = vadd.f32 %v1212, 1.0
    %v1214 = vrcp.pop %v1213
    %v1215 = vmul.f32 1.0, %v1214
    %v1216 = vadd.f32 %v965, %v1165
    %v1217 = vxor.u32 %v1216, 2147483648
    %v1218 = vmul.f32 %v1217, 1.442695
    %v1219 = vpow.pop %v1218
    %v1220 = vadd.f32 %v1219, 1.0
    %v1221 = vrcp.pop %v1220
    %v1222 = vmul.f32 1.0, %v1221
    %v1223 = vadd.f32 %v1204, %v424
    %v1224 = vmul.f32 %v1215, %v1223
    %v1225 = vadd.f32 %v966, %v1224
    %v1226 = vtanh.pop %v1225
    %v1227 = vsub.f32 %v960, %v1226
    %v1228 = vmul.f32 %v1222, %v1227
    %v1229 = vadd.f32 %v1226, %v1228
    %s1230 = scalar_lea.vmem [#allocation10], 16
    %1231 = vst [vmem:[%s1230] sm:$0xff] %v1229
    %s1232 = scalar_lea.vmem [#allocation3], 72
    %v1233 = vld [vmem:[%s1232] sm:$0xff]
    %v1234 = vld [vmem:[%s1232 + $0x8] sm:$0xff]
    %v1235 = vld [vmem:[%s1232 + $0x10] sm:$0xff]
    %v1236 = vpack.c.bf16 %v1229, %v1229
    %v1237 = vld [vmem:[#allocation9] sm:$0xff]
    %v1238 = vld [vmem:[#allocation9 + $0x8] sm:$0xf]
    %v1239 = vld [vmem:[#allocation9 + $0xc] sm:$0xff]
    %v1240 = vld [vmem:[#allocation9 + $0x14] sm:$0xf]
    %v1241 = vld [vmem:[#allocation9 + $0x18] sm:$0xff]
    %v1242 = vld [vmem:[#allocation9 + $0x20] sm:$0xf]
    %v1243 = vld [vmem:[#allocation9 + $0x24] sm:$0xff]
    %v1244 = vld [vmem:[#allocation9 + $0x2c] sm:$0xf]
    %v1245 = vld [vmem:[#allocation9 + $0x30] sm:$0xff]
    %v1246 = vld [vmem:[#allocation9 + $0x38] sm:$0xf]
    %v1247 = vld [vmem:[#allocation9 + $0x3c] sm:$0xff]
    %v1248 = vld [vmem:[#allocation9 + $0x44] sm:$0xf]
    %v1249 = vld [vmem:[#allocation9 + $0x48] sm:$0xff]
    %v1250 = vld [vmem:[#allocation9 + $0x50] sm:$0xf]
    %v1251 = vld [vmem:[#allocation9 + $0x54] sm:$0xff]
    %v1252 = vld [vmem:[#allocation9 + $0x5c] sm:$0xf]
    %v1253 = vld [vmem:[#allocation9 + $0x60] sm:$0xff]
    %v1254 = vld [vmem:[#allocation9 + $0x68] sm:$0xf]
    %v1255 = vld [vmem:[#allocation9 + $0x6c] sm:$0xff]
    %v1256 = vld [vmem:[#allocation9 + $0x74] sm:$0xf]
    %v1257 = vld [vmem:[#allocation9 + $0x78] sm:$0xff]
    %v1258 = vld [vmem:[#allocation9 + $0x80] sm:$0xf]
    %v1259 = vld [vmem:[#allocation9 + $0x84] sm:$0xff]
    %v1260 = vld [vmem:[#allocation9 + $0x8c] sm:$0xf]
    %v1261 = vld [vmem:[#allocation9 + $0x90] sm:$0xff]
    %v1262 = vld [vmem:[#allocation9 + $0x98] sm:$0xf]
    %v1263 = vld [vmem:[#allocation9 + $0x9c] sm:$0xff]
    %v1264 = vld [vmem:[#allocation9 + $0xa4] sm:$0xf]
    %v1265 = vld [vmem:[#allocation9 + $0xa8] sm:$0xff]
    %v1266 = vld [vmem:[#allocation9 + $0xb0] sm:$0xf]
    %v1267 = vld [vmem:[#allocation9 + $0xb4] sm:$0xff]
    %v1268 = vld [vmem:[#allocation9 + $0xbc] sm:$0xf]
    %v1301 = vunpack.c.l.b16 %v1237
    %v1302 = vunpack.c.h.b16 %v1237
    %v1303 = vunpack.c.l.b16 %v1238
    %v1304 = vunpack.c.l.b16 %v1239
    %v1305 = vunpack.c.h.b16 %v1239
    %v1306 = vunpack.c.l.b16 %v1240
    %v1307 = vunpack.c.l.b16 %v1241
    %v1308 = vunpack.c.h.b16 %v1241
    %v1309 = vunpack.c.l.b16 %v1242
    %v1310 = vunpack.c.l.b16 %v1243
    %v1311 = vunpack.c.h.b16 %v1243
    %v1312 = vunpack.c.l.b16 %v1244
    %v1313 = vunpack.c.l.b16 %v1245
    %v1314 = vunpack.c.h.b16 %v1245
    %v1315 = vunpack.c.l.b16 %v1246
    %v1316 = vunpack.c.l.b16 %v1247
    %v1317 = vunpack.c.h.b16 %v1247
    %v1318 = vunpack.c.l.b16 %v1248
    %v1319 = vunpack.c.l.b16 %v1249
    %v1320 = vunpack.c.h.b16 %v1249
    %v1321 = vunpack.c.l.b16 %v1250
    %v1322 = vunpack.c.l.b16 %v1251
    %v1323 = vunpack.c.h.b16 %v1251
    %v1324 = vunpack.c.l.b16 %v1252
    %v1325 = vunpack.c.l.b16 %v1253
    %v1326 = vunpack.c.h.b16 %v1253
    %v1327 = vunpack.c.l.b16 %v1254
    %v1328 = vunpack.c.l.b16 %v1255
    %v1329 = vunpack.c.h.b16 %v1255
    %v1330 = vunpack.c.l.b16 %v1256
    %v1331 = vunpack.c.l.b16 %v1257
    %v1332 = vunpack.c.h.b16 %v1257
    %v1333 = vunpack.c.l.b16 %v1258
    %v1334 = vunpack.c.l.b16 %v1259
    %v1335 = vunpack.c.h.b16 %v1259
    %v1336 = vunpack.c.l.b16 %v1260
    %v1337 = vunpack.c.l.b16 %v1261
    %v1338 = vunpack.c.h.b16 %v1261
    %v1339 = vunpack.c.l.b16 %v1262
    %v1340 = vunpack.c.l.b16 %v1263
    %v1341 = vunpack.c.h.b16 %v1263
    %v1342 = vunpack.c.l.b16 %v1264
    %v1343 = vunpack.c.l.b16 %v1265
    %v1344 = vunpack.c.h.b16 %v1265
    %v1345 = vunpack.c.l.b16 %v1266
    %v1346 = vunpack.c.l.b16 %v1267
    %v1347 = vunpack.c.h.b16 %v1267
    %v1348 = vunpack.c.l.b16 %v1268
    %v1349 = vpack.c.b16 %v1304, %v1301
    %v1350 = vpack.c.b16 %v1305, %v1302
    %v1351 = vpack.c.b16 %v1306, %v1303
    %v1352 = vpack.c.b16 %v1310, %v1307
    %v1353 = vpack.c.b16 %v1311, %v1308
    %v1354 = vpack.c.b16 %v1312, %v1309
    %v1355 = vpack.c.b16 %v1316, %v1313
    %v1356 = vpack.c.b16 %v1317, %v1314
    %v1357 = vpack.c.b16 %v1318, %v1315
    %v1358 = vpack.c.b16 %v1322, %v1319
    %v1359 = vpack.c.b16 %v1323, %v1320
    %v1360 = vpack.c.b16 %v1324, %v1321
    %v1361 = vpack.c.b16 %v1328, %v1325
    %v1362 = vpack.c.b16 %v1329, %v1326
    %v1363 = vpack.c.b16 %v1330, %v1327
    %v1364 = vpack.c.b16 %v1334, %v1331
    %v1365 = vpack.c.b16 %v1335, %v1332
    %v1366 = vpack.c.b16 %v1336, %v1333
    %v1367 = vpack.c.b16 %v1340, %v1337
    %v1368 = vpack.c.b16 %v1341, %v1338
    %v1369 = vpack.c.b16 %v1342, %v1339
    %v1370 = vpack.c.b16 %v1346, %v1343
    %v1371 = vpack.c.b16 %v1347, %v1344
    %v1372 = vpack.c.b16 %v1348, %v1345
    %1397 = vmatprep.subr.bf16.mxu0 %v1350
    %1398 = vmatpush1.bf16.msra.mxu0 %v1349
    %1399 = vmatprep.subr.bf16.mxu0 %v1353
    %1400 = vmatpush1.bf16.msra.mxu0 %v1352
    %1401 = vmatprep.subr.bf16.mxu0 %v1356
    %1402 = vmatpush1.bf16.msra.mxu0 %v1355
    %1403 = vmatprep.subr.bf16.mxu0 %v1359
    %1404 = vmatpush1.bf16.msra.mxu0 %v1358
    %1405 = vmatprep.subr.bf16.mxu0 %v1362
    %1406 = vmatpush1.bf16.msra.mxu0 %v1361
    %1407 = vmatprep.subr.bf16.mxu0 %v1365
    %1408 = vmatpush1.bf16.msra.mxu0 %v1364
    %1409 = vmatprep.subr.bf16.mxu0 %v1368
    %1410 = vmatpush1.bf16.msra.mxu0 %v1367
    %1411 = vmatprep.subr.bf16.mxu0 %v1371
    %1412 = vmatpush1.bf16.msra.mxu0 %v1370
    %1413 = vmatprep.subr.bf16.mxu0 0
    %1414 = vmatpush1.bf16.msra.mxu0 0
    %1415 = vmatprep.subr.bf16.mxu0 0
    %1416 = vmatpush1.bf16.msra.mxu0 0
    %1417 = vmatprep.subr.bf16.mxu0 0
    %1418 = vmatpush1.bf16.msra.mxu0 0
    %1419 = vmatprep.subr.bf16.mxu0 0
    %1420 = vmatpush1.bf16.msra.mxu0 0
    %1421 = vmatprep.subr.bf16.mxu0 0
    %1422 = vmatpush1.bf16.msra.mxu0 0
    %1423 = vmatprep.subr.bf16.mxu0 0
    %1424 = vmatpush1.bf16.msra.mxu0 0
    %1425 = vmatprep.subr.bf16.mxu0 0
    %1426 = vmatpush1.bf16.msra.mxu0 0
    %1427 = vmatprep.subr.bf16.mxu0 0
    %1428 = vmatpush1.bf16.msra.mxu0 0
    %1429 = vmatprep.mubr.bf16.mxu0 0
    %1430 = vmatmul.mubr.bf16.gmra.mrb[0].mxu0 %v1236
    %v1431 = vpop.f32.mrb[0].mxu0
    %v1432 = vadd.f32 0.0, %v1431
    %v1433 = vpop.f32.mrb[0].mxu0
    %v1434 = vadd.f32 0.0, %v1433
    %v1435 = vpop.f32.mrb[0].mxu0
    %v1436 = vpop.f32.mrb[0].mxu0
    %1437 = vdwg.mxu0
    %1438 = vmatprep.subr.bf16.mxu0 0
    %1439 = vmatpush1.bf16.msra.mxu0 %v1351
    %1440 = vmatprep.subr.bf16.mxu0 0
    %1441 = vmatpush1.bf16.msra.mxu0 %v1354
    %1442 = vmatprep.subr.bf16.mxu0 0
    %1443 = vmatpush1.bf16.msra.mxu0 %v1357
    %1444 = vmatprep.subr.bf16.mxu0 0
    %1445 = vmatpush1.bf16.msra.mxu0 %v1360
    %1446 = vmatprep.subr.bf16.mxu0 0
    %1447 = vmatpush1.bf16.msra.mxu0 %v1363
    %1448 = vmatprep.subr.bf16.mxu0 0
    %1449 = vmatpush1.bf16.msra.mxu0 %v1366
    %1450 = vmatprep.subr.bf16.mxu0 0
    %1451 = vmatpush1.bf16.msra.mxu0 %v1369
    %1452 = vmatprep.subr.bf16.mxu0 0
    %1453 = vmatpush1.bf16.msra.mxu0 %v1372
    %1454 = vmatprep.subr.bf16.mxu0 0
    %1455 = vmatpush1.bf16.msra.mxu0 0
    %1456 = vmatprep.subr.bf16.mxu0 0
    %1457 = vmatpush1.bf16.msra.mxu0 0
    %1458 = vmatprep.subr.bf16.mxu0 0
    %1459 = vmatpush1.bf16.msra.mxu0 0
    %1460 = vmatprep.subr.bf16.mxu0 0
    %1461 = vmatpush1.bf16.msra.mxu0 0
    %1462 = vmatprep.subr.bf16.mxu0 0
    %1463 = vmatpush1.bf16.msra.mxu0 0
    %1464 = vmatprep.subr.bf16.mxu0 0
    %1465 = vmatpush1.bf16.msra.mxu0 0
    %1466 = vmatprep.subr.bf16.mxu0 0
    %1467 = vmatpush1.bf16.msra.mxu0 0
    %1468 = vmatprep.subr.bf16.mxu0 0
    %1469 = vmatpush1.bf16.msra.mxu0 0
    %1470 = vmatprep.mubr.bf16.mxu0 0
    %1471 = vmatmul.mubr.bf16.gmra.mrb[0].mxu0 %v1236
    %v1472 = vpop.f32.mrb[0].mxu0
    %v1473 = vadd.f32 0.0, %v1472
    %v1474 = vpop.f32.mrb[0].mxu0
    %v1475 = vpop.f32.mrb[0].mxu0
    %v1476 = vpop.f32.mrb[0].mxu0
    %1477 = vdwg.mxu0
    %v1478 = vadd.f32 %v1233, %v1432
    %v1479 = vxor.u32 %v1478, 2147483648
    %v1480 = vmul.f32 %v1479, 1.442695
    %v1481 = vpow.pop %v1480
    %v1482 = vadd.f32 %v1481, 1.0
    %v1483 = vrcp.pop %v1482
    %v1484 = vmul.f32 1.0, %v1483
    %v1485 = vadd.f32 %v1234, %v1434
    %v1486 = vxor.u32 %v1485, 2147483648
    %v1487 = vmul.f32 %v1486, 1.442695
    %v1488 = vpow.pop %v1487
    %v1489 = vadd.f32 %v1488, 1.0
    %v1490 = vrcp.pop %v1489
    %v1491 = vmul.f32 1.0, %v1490
    %v1492 = vadd.f32 %v1473, %v424
    %v1493 = vmul.f32 %v1484, %v1492
    %v1494 = vadd.f32 %v1235, %v1493
    %v1495 = vtanh.pop %v1494
    %v1496 = vsub.f32 %v1229, %v1495
    %v1497 = vmul.f32 %v1491, %v1496
    %v1498 = vadd.f32 %v1495, %v1497
    %s1499 = scalar_lea.vmem [#allocation10], 24
    %1500 = vst [vmem:[%s1499] sm:$0xff] %v1498
    %s1501 = scalar_lea.vmem [#allocation3], 96
    %v1502 = vld [vmem:[%s1501] sm:$0xff]
    %v1503 = vld [vmem:[%s1501 + $0x8] sm:$0xff]
    %v1504 = vld [vmem:[%s1501 + $0x10] sm:$0xff]
    %v1505 = vpack.c.bf16 %v1498, %v1498
    %v1506 = vld [vmem:[#allocation9] sm:$0xff]
    %v1507 = vld [vmem:[#allocation9 + $0x8] sm:$0xf]
    %v1508 = vld [vmem:[#allocation9 + $0xc] sm:$0xff]
    %v1509 = vld [vmem:[#allocation9 + $0x14] sm:$0xf]
    %v1510 = vld [vmem:[#allocation9 + $0x18] sm:$0xff]
    %v1511 = vld [vmem:[#allocation9 + $0x20] sm:$0xf]
    %v1512 = vld [vmem:[#allocation9 + $0x24] sm:$0xff]
    %v1513 = vld [vmem:[#allocation9 + $0x2c] sm:$0xf]
    %v1514 = vld [vmem:[#allocation9 + $0x30] sm:$0xff]
    %v1515 = vld [vmem:[#allocation9 + $0x38] sm:$0xf]
    %v1516 = vld [vmem:[#allocation9 + $0x3c] sm:$0xff]
    %v1517 = vld [vmem:[#allocation9 + $0x44] sm:$0xf]
    %v1518 = vld [vmem:[#allocation9 + $0x48] sm:$0xff]
    %v1519 = vld [vmem:[#allocation9 + $0x50] sm:$0xf]
    %v1520 = vld [vmem:[#allocation9 + $0x54] sm:$0xff]
    %v1521 = vld [vmem:[#allocation9 + $0x5c] sm:$0xf]
    %v1522 = vld [vmem:[#allocation9 + $0x60] sm:$0xff]
    %v1523 = vld [vmem:[#allocation9 + $0x68] sm:$0xf]
    %v1524 = vld [vmem:[#allocation9 + $0x6c] sm:$0xff]
    %v1525 = vld [vmem:[#allocation9 + $0x74] sm:$0xf]
    %v1526 = vld [vmem:[#allocation9 + $0x78] sm:$0xff]
    %v1527 = vld [vmem:[#allocation9 + $0x80] sm:$0xf]
    %v1528 = vld [vmem:[#allocation9 + $0x84] sm:$0xff]
    %v1529 = vld [vmem:[#allocation9 + $0x8c] sm:$0xf]
    %v1530 = vld [vmem:[#allocation9 + $0x90] sm:$0xff]
    %v1531 = vld [vmem:[#allocation9 + $0x98] sm:$0xf]
    %v1532 = vld [vmem:[#allocation9 + $0x9c] sm:$0xff]
    %v1533 = vld [vmem:[#allocation9 + $0xa4] sm:$0xf]
    %v1534 = vld [vmem:[#allocation9 + $0xa8] sm:$0xff]
    %v1535 = vld [vmem:[#allocation9 + $0xb0] sm:$0xf]
    %v1536 = vld [vmem:[#allocation9 + $0xb4] sm:$0xff]
    %v1537 = vld [vmem:[#allocation9 + $0xbc] sm:$0xf]
    %v1570 = vunpack.c.l.b16 %v1506
    %v1571 = vunpack.c.h.b16 %v1506
    %v1572 = vunpack.c.l.b16 %v1507
    %v1573 = vunpack.c.l.b16 %v1508
    %v1574 = vunpack.c.h.b16 %v1508
    %v1575 = vunpack.c.l.b16 %v1509
    %v1576 = vunpack.c.l.b16 %v1510
    %v1577 = vunpack.c.h.b16 %v1510
    %v1578 = vunpack.c.l.b16 %v1511
    %v1579 = vunpack.c.l.b16 %v1512
    %v1580 = vunpack.c.h.b16 %v1512
    %v1581 = vunpack.c.l.b16 %v1513
    %v1582 = vunpack.c.l.b16 %v1514
    %v1583 = vunpack.c.h.b16 %v1514
    %v1584 = vunpack.c.l.b16 %v1515
    %v1585 = vunpack.c.l.b16 %v1516
    %v1586 = vunpack.c.h.b16 %v1516
    %v1587 = vunpack.c.l.b16 %v1517
    %v1588 = vunpack.c.l.b16 %v1518
    %v1589 = vunpack.c.h.b16 %v1518
    %v1590 = vunpack.c.l.b16 %v1519
    %v1591 = vunpack.c.l.b16 %v1520
    %v1592 = vunpack.c.h.b16 %v1520
    %v1593 = vunpack.c.l.b16 %v1521
    %v1594 = vunpack.c.l.b16 %v1522
    %v1595 = vunpack.c.h.b16 %v1522
    %v1596 = vunpack.c.l.b16 %v1523
    %v1597 = vunpack.c.l.b16 %v1524
    %v1598 = vunpack.c.h.b16 %v1524
    %v1599 = vunpack.c.l.b16 %v1525
    %v1600 = vunpack.c.l.b16 %v1526
    %v1601 = vunpack.c.h.b16 %v1526
    %v1602 = vunpack.c.l.b16 %v1527
    %v1603 = vunpack.c.l.b16 %v1528
    %v1604 = vunpack.c.h.b16 %v1528
    %v1605 = vunpack.c.l.b16 %v1529
    %v1606 = vunpack.c.l.b16 %v1530
    %v1607 = vunpack.c.h.b16 %v1530
    %v1608 = vunpack.c.l.b16 %v1531
    %v1609 = vunpack.c.l.b16 %v1532
    %v1610 = vunpack.c.h.b16 %v1532
    %v1611 = vunpack.c.l.b16 %v1533
    %v1612 = vunpack.c.l.b16 %v1534
    %v1613 = vunpack.c.h.b16 %v1534
    %v1614 = vunpack.c.l.b16 %v1535
    %v1615 = vunpack.c.l.b16 %v1536
    %v1616 = vunpack.c.h.b16 %v1536
    %v1617 = vunpack.c.l.b16 %v1537
    %v1618 = vpack.c.b16 %v1573, %v1570
    %v1619 = vpack.c.b16 %v1574, %v1571
    %v1620 = vpack.c.b16 %v1575, %v1572
    %v1621 = vpack.c.b16 %v1579, %v1576
    %v1622 = vpack.c.b16 %v1580, %v1577
    %v1623 = vpack.c.b16 %v1581, %v1578
    %v1624 = vpack.c.b16 %v1585, %v1582
    %v1625 = vpack.c.b16 %v1586, %v1583
    %v1626 = vpack.c.b16 %v1587, %v1584
    %v1627 = vpack.c.b16 %v1591, %v1588
    %v1628 = vpack.c.b16 %v1592, %v1589
    %v1629 = vpack.c.b16 %v1593, %v1590
    %v1630 = vpack.c.b16 %v1597, %v1594
    %v1631 = vpack.c.b16 %v1598, %v1595
    %v1632 = vpack.c.b16 %v1599, %v1596
    %v1633 = vpack.c.b16 %v1603, %v1600
    %v1634 = vpack.c.b16 %v1604, %v1601
    %v1635 = vpack.c.b16 %v1605, %v1602
    %v1636 = vpack.c.b16 %v1609, %v1606
    %v1637 = vpack.c.b16 %v1610, %v1607
    %v1638 = vpack.c.b16 %v1611, %v1608
    %v1639 = vpack.c.b16 %v1615, %v1612
    %v1640 = vpack.c.b16 %v1616, %v1613
    %v1641 = vpack.c.b16 %v1617, %v1614
    %1666 = vmatprep.subr.bf16.mxu0 %v1619
    %1667 = vmatpush1.bf16.msra.mxu0 %v1618
    %1668 = vmatprep.subr.bf16.mxu0 %v1622
    %1669 = vmatpush1.bf16.msra.mxu0 %v1621
    %1670 = vmatprep.subr.bf16.mxu0 %v1625
    %1671 = vmatpush1.bf16.msra.mxu0 %v1624
    %1672 = vmatprep.subr.bf16.mxu0 %v1628
    %1673 = vmatpush1.bf16.msra.mxu0 %v1627
    %1674 = vmatprep.subr.bf16.mxu0 %v1631
    %1675 = vmatpush1.bf16.msra.mxu0 %v1630
    %1676 = vmatprep.subr.bf16.mxu0 %v1634
    %1677 = vmatpush1.bf16.msra.mxu0 %v1633
    %1678 = vmatprep.subr.bf16.mxu0 %v1637
    %1679 = vmatpush1.bf16.msra.mxu0 %v1636
    %1680 = vmatprep.subr.bf16.mxu0 %v1640
    %1681 = vmatpush1.bf16.msra.mxu0 %v1639
    %1682 = vmatprep.subr.bf16.mxu0 0
    %1683 = vmatpush1.bf16.msra.mxu0 0
    %1684 = vmatprep.subr.bf16.mxu0 0
    %1685 = vmatpush1.bf16.msra.mxu0 0
    %1686 = vmatprep.subr.bf16.mxu0 0
    %1687 = vmatpush1.bf16.msra.mxu0 0
    %1688 = vmatprep.subr.bf16.mxu0 0
    %1689 = vmatpush1.bf16.msra.mxu0 0
    %1690 = vmatprep.subr.bf16.mxu0 0
    %1691 = vmatpush1.bf16.msra.mxu0 0
    %1692 = vmatprep.subr.bf16.mxu0 0
    %1693 = vmatpush1.bf16.msra.mxu0 0
    %1694 = vmatprep.subr.bf16.mxu0 0
    %1695 = vmatpush1.bf16.msra.mxu0 0
    %1696 = vmatprep.subr.bf16.mxu0 0
    %1697 = vmatpush1.bf16.msra.mxu0 0
    %1698 = vmatprep.mubr.bf16.mxu0 0
    %1699 = vmatmul.mubr.bf16.gmra.mrb[0].mxu0 %v1505
    %v1700 = vpop.f32.mrb[0].mxu0
    %v1701 = vadd.f32 0.0, %v1700
    %v1702 = vpop.f32.mrb[0].mxu0
    %v1703 = vadd.f32 0.0, %v1702
    %v1704 = vpop.f32.mrb[0].mxu0
    %v1705 = vpop.f32.mrb[0].mxu0
    %1706 = vdwg.mxu0
    %1707 = vmatprep.subr.bf16.mxu0 0
    %1708 = vmatpush1.bf16.msra.mxu0 %v1620
    %1709 = vmatprep.subr.bf16.mxu0 0
    %1710 = vmatpush1.bf16.msra.mxu0 %v1623
    %1711 = vmatprep.subr.bf16.mxu0 0
    %1712 = vmatpush1.bf16.msra.mxu0 %v1626
    %1713 = vmatprep.subr.bf16.mxu0 0
    %1714 = vmatpush1.bf16.msra.mxu0 %v1629
    %1715 = vmatprep.subr.bf16.mxu0 0
    %1716 = vmatpush1.bf16.msra.mxu0 %v1632
    %1717 = vmatprep.subr.bf16.mxu0 0
    %1718 = vmatpush1.bf16.msra.mxu0 %v1635
    %1719 = vmatprep.subr.bf16.mxu0 0
    %1720 = vmatpush1.bf16.msra.mxu0 %v1638
    %1721 = vmatprep.subr.bf16.mxu0 0
    %1722 = vmatpush1.bf16.msra.mxu0 %v1641
    %1723 = vmatprep.subr.bf16.mxu0 0
    %1724 = vmatpush1.bf16.msra.mxu0 0
    %1725 = vmatprep.subr.bf16.mxu0 0
    %1726 = vmatpush1.bf16.msra.mxu0 0
    %1727 = vmatprep.subr.bf16.mxu0 0
    %1728 = vmatpush1.bf16.msra.mxu0 0
    %1729 = vmatprep.subr.bf16.mxu0 0
    %1730 = vmatpush1.bf16.msra.mxu0 0
    %1731 = vmatprep.subr.bf16.mxu0 0
    %1732 = vmatpush1.bf16.msra.mxu0 0
    %1733 = vmatprep.subr.bf16.mxu0 0
    %1734 = vmatpush1.bf16.msra.mxu0 0
    %1735 = vmatprep.subr.bf16.mxu0 0
    %1736 = vmatpush1.bf16.msra.mxu0 0
    %1737 = vmatprep.subr.bf16.mxu0 0
    %1738 = vmatpush1.bf16.msra.mxu0 0
    %1739 = vmatprep.mubr.bf16.mxu0 0
    %1740 = vmatmul.mubr.bf16.gmra.mrb[0].mxu0 %v1505
    %v1741 = vpop.f32.mrb[0].mxu0
    %v1742 = vadd.f32 0.0, %v1741
    %v1743 = vpop.f32.mrb[0].mxu0
    %v1744 = vpop.f32.mrb[0].mxu0
    %v1745 = vpop.f32.mrb[0].mxu0
    %1746 = vdwg.mxu0
    %v1747 = vadd.f32 %v1502, %v1701
    %v1748 = vxor.u32 %v1747, 2147483648
    %v1749 = vmul.f32 %v1748, 1.442695
    %v1750 = vpow.pop %v1749
    %v1751 = vadd.f32 %v1750, 1.0
    %v1752 = vrcp.pop %v1751
    %v1753 = vmul.f32 1.0, %v1752
    %v1754 = vadd.f32 %v1503, %v1703
    %v1755 = vxor.u32 %v1754, 2147483648
    %v1756 = vmul.f32 %v1755, 1.442695
    %v1757 = vpow.pop %v1756
    %v1758 = vadd.f32 %v1757, 1.0
    %v1759 = vrcp.pop %v1758
    %v1760 = vmul.f32 1.0, %v1759
    %v1761 = vadd.f32 %v1742, %v424
    %v1762 = vmul.f32 %v1753, %v1761
    %v1763 = vadd.f32 %v1504, %v1762
    %v1764 = vtanh.pop %v1763
    %v1765 = vsub.f32 %v1498, %v1764
    %v1766 = vmul.f32 %v1760, %v1765
    %v1767 = vadd.f32 %v1764, %v1766
    %s1768 = scalar_lea.vmem [#allocation10], 32
    %1769 = vst [vmem:[%s1768] sm:$0xff] %v1767
    %s1770 = scalar_lea.vmem [#allocation3], 120
    %v1771 = vld [vmem:[%s1770] sm:$0xff]
    %v1772 = vld [vmem:[%s1770 + $0x8] sm:$0xff]
    %v1773 = vld [vmem:[%s1770 + $0x10] sm:$0xff]
    %v1774 = vpack.c.bf16 %v1767, %v1767
    %v1775 = vld [vmem:[#allocation9] sm:$0xff]
    %v1776 = vld [vmem:[#allocation9 + $0x8] sm:$0xf]
    %v1777 = vld [vmem:[#allocation9 + $0xc] sm:$0xff]
    %v1778 = vld [vmem:[#allocation9 + $0x14] sm:$0xf]
    %v1779 = vld [vmem:[#allocation9 + $0x18] sm:$0xff]
    %v1780 = vld [vmem:[#allocation9 + $0x20] sm:$0xf]
    %v1781 = vld [vmem:[#allocation9 + $0x24] sm:$0xff]
    %v1782 = vld [vmem:[#allocation9 + $0x2c] sm:$0xf]
    %v1783 = vld [vmem:[#allocation9 + $0x30] sm:$0xff]
    %v1784 = vld [vmem:[#allocation9 + $0x38] sm:$0xf]
    %v1785 = vld [vmem:[#allocation9 + $0x3c] sm:$0xff]
    %v1786 = vld [vmem:[#allocation9 + $0x44] sm:$0xf]
    %v1787 = vld [vmem:[#allocation9 + $0x48] sm:$0xff]
    %v1788 = vld [vmem:[#allocation9 + $0x50] sm:$0xf]
    %v1789 = vld [vmem:[#allocation9 + $0x54] sm:$0xff]
    %v1790 = vld [vmem:[#allocation9 + $0x5c] sm:$0xf]
    %v1791 = vld [vmem:[#allocation9 + $0x60] sm:$0xff]
    %v1792 = vld [vmem:[#allocation9 + $0x68] sm:$0xf]
    %v1793 = vld [vmem:[#allocation9 + $0x6c] sm:$0xff]
    %v1794 = vld [vmem:[#allocation9 + $0x74] sm:$0xf]
    %v1795 = vld [vmem:[#allocation9 + $0x78] sm:$0xff]
    %v1796 = vld [vmem:[#allocation9 + $0x80] sm:$0xf]
    %v1797 = vld [vmem:[#allocation9 + $0x84] sm:$0xff]
    %v1798 = vld [vmem:[#allocation9 + $0x8c] sm:$0xf]
    %v1799 = vld [vmem:[#allocation9 + $0x90] sm:$0xff]
    %v1800 = vld [vmem:[#allocation9 + $0x98] sm:$0xf]
    %v1801 = vld [vmem:[#allocation9 + $0x9c] sm:$0xff]
    %v1802 = vld [vmem:[#allocation9 + $0xa4] sm:$0xf]
    %v1803 = vld [vmem:[#allocation9 + $0xa8] sm:$0xff]
    %v1804 = vld [vmem:[#allocation9 + $0xb0] sm:$0xf]
    %v1805 = vld [vmem:[#allocation9 + $0xb4] sm:$0xff]
    %v1806 = vld [vmem:[#allocation9 + $0xbc] sm:$0xf]
    %v1839 = vunpack.c.l.b16 %v1775
    %v1840 = vunpack.c.h.b16 %v1775
    %v1841 = vunpack.c.l.b16 %v1776
    %v1842 = vunpack.c.l.b16 %v1777
    %v1843 = vunpack.c.h.b16 %v1777
    %v1844 = vunpack.c.l.b16 %v1778
    %v1845 = vunpack.c.l.b16 %v1779
    %v1846 = vunpack.c.h.b16 %v1779
    %v1847 = vunpack.c.l.b16 %v1780
    %v1848 = vunpack.c.l.b16 %v1781
    %v1849 = vunpack.c.h.b16 %v1781
    %v1850 = vunpack.c.l.b16 %v1782
    %v1851 = vunpack.c.l.b16 %v1783
    %v1852 = vunpack.c.h.b16 %v1783
    %v1853 = vunpack.c.l.b16 %v1784
    %v1854 = vunpack.c.l.b16 %v1785
    %v1855 = vunpack.c.h.b16 %v1785
    %v1856 = vunpack.c.l.b16 %v1786
    %v1857 = vunpack.c.l.b16 %v1787
    %v1858 = vunpack.c.h.b16 %v1787
    %v1859 = vunpack.c.l.b16 %v1788
    %v1860 = vunpack.c.l.b16 %v1789
    %v1861 = vunpack.c.h.b16 %v1789
    %v1862 = vunpack.c.l.b16 %v1790
    %v1863 = vunpack.c.l.b16 %v1791
    %v1864 = vunpack.c.h.b16 %v1791
    %v1865 = vunpack.c.l.b16 %v1792
    %v1866 = vunpack.c.l.b16 %v1793
    %v1867 = vunpack.c.h.b16 %v1793
    %v1868 = vunpack.c.l.b16 %v1794
    %v1869 = vunpack.c.l.b16 %v1795
    %v1870 = vunpack.c.h.b16 %v1795
    %v1871 = vunpack.c.l.b16 %v1796
    %v1872 = vunpack.c.l.b16 %v1797
    %v1873 = vunpack.c.h.b16 %v1797
    %v1874 = vunpack.c.l.b16 %v1798
    %v1875 = vunpack.c.l.b16 %v1799
    %v1876 = vunpack.c.h.b16 %v1799
    %v1877 = vunpack.c.l.b16 %v1800
    %v1878 = vunpack.c.l.b16 %v1801
    %v1879 = vunpack.c.h.b16 %v1801
    %v1880 = vunpack.c.l.b16 %v1802
    %v1881 = vunpack.c.l.b16 %v1803
    %v1882 = vunpack.c.h.b16 %v1803
    %v1883 = vunpack.c.l.b16 %v1804
    %v1884 = vunpack.c.l.b16 %v1805
    %v1885 = vunpack.c.h.b16 %v1805
    %v1886 = vunpack.c.l.b16 %v1806
    %v1887 = vpack.c.b16 %v1842, %v1839
    %v1888 = vpack.c.b16 %v1843, %v1840
    %v1889 = vpack.c.b16 %v1844, %v1841
    %v1890 = vpack.c.b16 %v1848, %v1845
    %v1891 = vpack.c.b16 %v1849, %v1846
    %v1892 = vpack.c.b16 %v1850, %v1847
    %v1893 = vpack.c.b16 %v1854, %v1851
    %v1894 = vpack.c.b16 %v1855, %v1852
    %v1895 = vpack.c.b16 %v1856, %v1853
    %v1896 = vpack.c.b16 %v1860, %v1857
    %v1897 = vpack.c.b16 %v1861, %v1858
    %v1898 = vpack.c.b16 %v1862, %v1859
    %v1899 = vpack.c.b16 %v1866, %v1863
    %v1900 = vpack.c.b16 %v1867, %v1864
    %v1901 = vpack.c.b16 %v1868, %v1865
    %v1902 = vpack.c.b16 %v1872, %v1869
    %v1903 = vpack.c.b16 %v1873, %v1870
    %v1904 = vpack.c.b16 %v1874, %v1871
    %v1905 = vpack.c.b16 %v1878, %v1875
    %v1906 = vpack.c.b16 %v1879, %v1876
    %v1907 = vpack.c.b16 %v1880, %v1877
    %v1908 = vpack.c.b16 %v1884, %v1881
    %v1909 = vpack.c.b16 %v1885, %v1882
    %v1910 = vpack.c.b16 %v1886, %v1883
    %1935 = vmatprep.subr.bf16.mxu0 %v1888
    %1936 = vmatpush1.bf16.msra.mxu0 %v1887
    %1937 = vmatprep.subr.bf16.mxu0 %v1891
    %1938 = vmatpush1.bf16.msra.mxu0 %v1890
    %1939 = vmatprep.subr.bf16.mxu0 %v1894
    %1940 = vmatpush1.bf16.msra.mxu0 %v1893
    %1941 = vmatprep.subr.bf16.mxu0 %v1897
    %1942 = vmatpush1.bf16.msra.mxu0 %v1896
    %1943 = vmatprep.subr.bf16.mxu0 %v1900
    %1944 = vmatpush1.bf16.msra.mxu0 %v1899
    %1945 = vmatprep.subr.bf16.mxu0 %v1903
    %1946 = vmatpush1.bf16.msra.mxu0 %v1902
    %1947 = vmatprep.subr.bf16.mxu0 %v1906
    %1948 = vmatpush1.bf16.msra.mxu0 %v1905
    %1949 = vmatprep.subr.bf16.mxu0 %v1909
    %1950 = vmatpush1.bf16.msra.mxu0 %v1908
    %1951 = vmatprep.subr.bf16.mxu0 0
    %1952 = vmatpush1.bf16.msra.mxu0 0
    %1953 = vmatprep.subr.bf16.mxu0 0
    %1954 = vmatpush1.bf16.msra.mxu0 0
    %1955 = vmatprep.subr.bf16.mxu0 0
    %1956 = vmatpush1.bf16.msra.mxu0 0
    %1957 = vmatprep.subr.bf16.mxu0 0
    %1958 = vmatpush1.bf16.msra.mxu0 0
    %1959 = vmatprep.subr.bf16.mxu0 0
    %1960 = vmatpush1.bf16.msra.mxu0 0
    %1961 = vmatprep.subr.bf16.mxu0 0
    %1962 = vmatpush1.bf16.msra.mxu0 0
    %1963 = vmatprep.subr.bf16.mxu0 0
    %1964 = vmatpush1.bf16.msra.mxu0 0
    %1965 = vmatprep.subr.bf16.mxu0 0
    %1966 = vmatpush1.bf16.msra.mxu0 0
    %1967 = vmatprep.mubr.bf16.mxu0 0
    %1968 = vmatmul.mubr.bf16.gmra.mrb[0].mxu0 %v1774
    %v1969 = vpop.f32.mrb[0].mxu0
    %v1970 = vadd.f32 0.0, %v1969
    %v1971 = vpop.f32.mrb[0].mxu0
    %v1972 = vadd.f32 0.0, %v1971
    %v1973 = vpop.f32.mrb[0].mxu0
    %v1974 = vpop.f32.mrb[0].mxu0
    %1975 = vdwg.mxu0
    %1976 = vmatprep.subr.bf16.mxu0 0
    %1977 = vmatpush1.bf16.msra.mxu0 %v1889
    %1978 = vmatprep.subr.bf16.mxu0 0
    %1979 = vmatpush1.bf16.msra.mxu0 %v1892
    %1980 = vmatprep.subr.bf16.mxu0 0
    %1981 = vmatpush1.bf16.msra.mxu0 %v1895
    %1982 = vmatprep.subr.bf16.mxu0 0
    %1983 = vmatpush1.bf16.msra.mxu0 %v1898
    %1984 = vmatprep.subr.bf16.mxu0 0
    %1985 = vmatpush1.bf16.msra.mxu0 %v1901
    %1986 = vmatprep.subr.bf16.mxu0 0
    %1987 = vmatpush1.bf16.msra.mxu0 %v1904
    %1988 = vmatprep.subr.bf16.mxu0 0
    %1989 = vmatpush1.bf16.msra.mxu0 %v1907
    %1990 = vmatprep.subr.bf16.mxu0 0
    %1991 = vmatpush1.bf16.msra.mxu0 %v1910
    %1992 = vmatprep.subr.bf16.mxu0 0
    %1993 = vmatpush1.bf16.msra.mxu0 0
    %1994 = vmatprep.subr.bf16.mxu0 0
    %1995 = vmatpush1.bf16.msra.mxu0 0
    %1996 = vmatprep.subr.bf16.mxu0 0
    %1997 = vmatpush1.bf16.msra.mxu0 0
    %1998 = vmatprep.subr.bf16.mxu0 0
    %1999 = vmatpush1.bf16.msra.mxu0 0
    %2000 = vmatprep.subr.bf16.mxu0 0
    %2001 = vmatpush1.bf16.msra.mxu0 0
    %2002 = vmatprep.subr.bf16.mxu0 0
    %2003 = vmatpush1.bf16.msra.mxu0 0
    %2004 = vmatprep.subr.bf16.mxu0 0
    %2005 = vmatpush1.bf16.msra.mxu0 0
    %2006 = vmatprep.subr.bf16.mxu0 0
    %2007 = vmatpush1.bf16.msra.mxu0 0
    %2008 = vmatprep.mubr.bf16.mxu0 0
    %2009 = vmatmul.mubr.bf16.gmra.mrb[0].mxu0 %v1774
    %v2010 = vpop.f32.mrb[0].mxu0
    %v2011 = vadd.f32 0.0, %v2010
    %v2012 = vpop.f32.mrb[0].mxu0
    %v2013 = vpop.f32.mrb[0].mxu0
    %v2014 = vpop.f32.mrb[0].mxu0
    %2015 = vdwg.mxu0
    %v2016 = vadd.f32 %v1771, %v1970
    %v2017 = vxor.u32 %v2016, 2147483648
    %v2018 = vmul.f32 %v2017, 1.442695
    %v2019 = vpow.pop %v2018
    %v2020 = vadd.f32 %v2019, 1.0
    %v2021 = vrcp.pop %v2020
    %v2022 = vmul.f32 1.0, %v2021
    %v2023 = vadd.f32 %v1772, %v1972
    %v2024 = vxor.u32 %v2023, 2147483648
    %v2025 = vmul.f32 %v2024, 1.442695
    %v2026 = vpow.pop %v2025
    %v2027 = vadd.f32 %v2026, 1.0
    %v2028 = vrcp.pop %v2027
    %v2029 = vmul.f32 1.0, %v2028
    %v2030 = vadd.f32 %v2011, %v424
    %v2031 = vmul.f32 %v2022, %v2030
    %v2032 = vadd.f32 %v1773, %v2031
    %v2033 = vtanh.pop %v2032
    %v2034 = vsub.f32 %v1767, %v2033
    %v2035 = vmul.f32 %v2029, %v2034
    %v2036 = vadd.f32 %v2033, %v2035
    %s2037 = scalar_lea.vmem [#allocation10], 40
    %2038 = vst [vmem:[%s2037] sm:$0xff] %v2036
    %s2039 = scalar_lea.vmem [#allocation3], 144
    %v2040 = vld [vmem:[%s2039] sm:$0xff]
    %v2041 = vld [vmem:[%s2039 + $0x8] sm:$0xff]
    %v2042 = vld [vmem:[%s2039 + $0x10] sm:$0xff]
    %v2043 = vpack.c.bf16 %v2036, %v2036
    %v2044 = vld [vmem:[#allocation9] sm:$0xff]
    %v2045 = vld [vmem:[#allocation9 + $0x8] sm:$0xf]
    %v2046 = vld [vmem:[#allocation9 + $0xc] sm:$0xff]
    %v2047 = vld [vmem:[#allocation9 + $0x14] sm:$0xf]
    %v2048 = vld [vmem:[#allocation9 + $0x18] sm:$0xff]
    %v2049 = vld [vmem:[#allocation9 + $0x20] sm:$0xf]
    %v2050 = vld [vmem:[#allocation9 + $0x24] sm:$0xff]
    %v2051 = vld [vmem:[#allocation9 + $0x2c] sm:$0xf]
    %v2052 = vld [vmem:[#allocation9 + $0x30] sm:$0xff]
    %v2053 = vld [vmem:[#allocation9 + $0x38] sm:$0xf]
    %v2054 = vld [vmem:[#allocation9 + $0x3c] sm:$0xff]
    %v2055 = vld [vmem:[#allocation9 + $0x44] sm:$0xf]
    %v2056 = vld [vmem:[#allocation9 + $0x48] sm:$0xff]
    %v2057 = vld [vmem:[#allocation9 + $0x50] sm:$0xf]
    %v2058 = vld [vmem:[#allocation9 + $0x54] sm:$0xff]
    %v2059 = vld [vmem:[#allocation9 + $0x5c] sm:$0xf]
    %v2060 = vld [vmem:[#allocation9 + $0x60] sm:$0xff]
    %v2061 = vld [vmem:[#allocation9 + $0x68] sm:$0xf]
    %v2062 = vld [vmem:[#allocation9 + $0x6c] sm:$0xff]
    %v2063 = vld [vmem:[#allocation9 + $0x74] sm:$0xf]
    %v2064 = vld [vmem:[#allocation9 + $0x78] sm:$0xff]
    %v2065 = vld [vmem:[#allocation9 + $0x80] sm:$0xf]
    %v2066 = vld [vmem:[#allocation9 + $0x84] sm:$0xff]
    %v2067 = vld [vmem:[#allocation9 + $0x8c] sm:$0xf]
    %v2068 = vld [vmem:[#allocation9 + $0x90] sm:$0xff]
    %v2069 = vld [vmem:[#allocation9 + $0x98] sm:$0xf]
    %v2070 = vld [vmem:[#allocation9 + $0x9c] sm:$0xff]
    %v2071 = vld [vmem:[#allocation9 + $0xa4] sm:$0xf]
    %v2072 = vld [vmem:[#allocation9 + $0xa8] sm:$0xff]
    %v2073 = vld [vmem:[#allocation9 + $0xb0] sm:$0xf]
    %v2074 = vld [vmem:[#allocation9 + $0xb4] sm:$0xff]
    %v2075 = vld [vmem:[#allocation9 + $0xbc] sm:$0xf]
    %v2108 = vunpack.c.l.b16 %v2044
    %v2109 = vunpack.c.h.b16 %v2044
    %v2110 = vunpack.c.l.b16 %v2045
    %v2111 = vunpack.c.l.b16 %v2046
    %v2112 = vunpack.c.h.b16 %v2046
    %v2113 = vunpack.c.l.b16 %v2047
    %v2114 = vunpack.c.l.b16 %v2048
    %v2115 = vunpack.c.h.b16 %v2048
    %v2116 = vunpack.c.l.b16 %v2049
    %v2117 = vunpack.c.l.b16 %v2050
    %v2118 = vunpack.c.h.b16 %v2050
    %v2119 = vunpack.c.l.b16 %v2051
    %v2120 = vunpack.c.l.b16 %v2052
    %v2121 = vunpack.c.h.b16 %v2052
    %v2122 = vunpack.c.l.b16 %v2053
    %v2123 = vunpack.c.l.b16 %v2054
    %v2124 = vunpack.c.h.b16 %v2054
    %v2125 = vunpack.c.l.b16 %v2055
    %v2126 = vunpack.c.l.b16 %v2056
    %v2127 = vunpack.c.h.b16 %v2056
    %v2128 = vunpack.c.l.b16 %v2057
    %v2129 = vunpack.c.l.b16 %v2058
    %v2130 = vunpack.c.h.b16 %v2058
    %v2131 = vunpack.c.l.b16 %v2059
    %v2132 = vunpack.c.l.b16 %v2060
    %v2133 = vunpack.c.h.b16 %v2060
    %v2134 = vunpack.c.l.b16 %v2061
    %v2135 = vunpack.c.l.b16 %v2062
    %v2136 = vunpack.c.h.b16 %v2062
    %v2137 = vunpack.c.l.b16 %v2063
    %v2138 = vunpack.c.l.b16 %v2064
    %v2139 = vunpack.c.h.b16 %v2064
    %v2140 = vunpack.c.l.b16 %v2065
    %v2141 = vunpack.c.l.b16 %v2066
    %v2142 = vunpack.c.h.b16 %v2066
    %v2143 = vunpack.c.l.b16 %v2067
    %v2144 = vunpack.c.l.b16 %v2068
    %v2145 = vunpack.c.h.b16 %v2068
    %v2146 = vunpack.c.l.b16 %v2069
    %v2147 = vunpack.c.l.b16 %v2070
    %v2148 = vunpack.c.h.b16 %v2070
    %v2149 = vunpack.c.l.b16 %v2071
    %v2150 = vunpack.c.l.b16 %v2072
    %v2151 = vunpack.c.h.b16 %v2072
    %v2152 = vunpack.c.l.b16 %v2073
    %v2153 = vunpack.c.l.b16 %v2074
    %v2154 = vunpack.c.h.b16 %v2074
    %v2155 = vunpack.c.l.b16 %v2075
    %v2156 = vpack.c.b16 %v2111, %v2108
    %v2157 = vpack.c.b16 %v2112, %v2109
    %v2158 = vpack.c.b16 %v2113, %v2110
    %v2159 = vpack.c.b16 %v2117, %v2114
    %v2160 = vpack.c.b16 %v2118, %v2115
    %v2161 = vpack.c.b16 %v2119, %v2116
    %v2162 = vpack.c.b16 %v2123, %v2120
    %v2163 = vpack.c.b16 %v2124, %v2121
    %v2164 = vpack.c.b16 %v2125, %v2122
    %v2165 = vpack.c.b16 %v2129, %v2126
    %v2166 = vpack.c.b16 %v2130, %v2127
    %v2167 = vpack.c.b16 %v2131, %v2128
    %v2168 = vpack.c.b16 %v2135, %v2132
    %v2169 = vpack.c.b16 %v2136, %v2133
    %v2170 = vpack.c.b16 %v2137, %v2134
    %v2171 = vpack.c.b16 %v2141, %v2138
    %v2172 = vpack.c.b16 %v2142, %v2139
    %v2173 = vpack.c.b16 %v2143, %v2140
    %v2174 = vpack.c.b16 %v2147, %v2144
    %v2175 = vpack.c.b16 %v2148, %v2145
    %v2176 = vpack.c.b16 %v2149, %v2146
    %v2177 = vpack.c.b16 %v2153, %v2150
    %v2178 = vpack.c.b16 %v2154, %v2151
    %v2179 = vpack.c.b16 %v2155, %v2152
    %2204 = vmatprep.subr.bf16.mxu0 %v2157
    %2205 = vmatpush1.bf16.msra.mxu0 %v2156
    %2206 = vmatprep.subr.bf16.mxu0 %v2160
    %2207 = vmatpush1.bf16.msra.mxu0 %v2159
    %2208 = vmatprep.subr.bf16.mxu0 %v2163
    %2209 = vmatpush1.bf16.msra.mxu0 %v2162
    %2210 = vmatprep.subr.bf16.mxu0 %v2166
    %2211 = vmatpush1.bf16.msra.mxu0 %v2165
    %2212 = vmatprep.subr.bf16.mxu0 %v2169
    %2213 = vmatpush1.bf16.msra.mxu0 %v2168
    %2214 = vmatprep.subr.bf16.mxu0 %v2172
    %2215 = vmatpush1.bf16.msra.mxu0 %v2171
    %2216 = vmatprep.subr.bf16.mxu0 %v2175
    %2217 = vmatpush1.bf16.msra.mxu0 %v2174
    %2218 = vmatprep.subr.bf16.mxu0 %v2178
    %2219 = vmatpush1.bf16.msra.mxu0 %v2177
    %2220 = vmatprep.subr.bf16.mxu0 0
    %2221 = vmatpush1.bf16.msra.mxu0 0
    %2222 = vmatprep.subr.bf16.mxu0 0
    %2223 = vmatpush1.bf16.msra.mxu0 0
    %2224 = vmatprep.subr.bf16.mxu0 0
    %2225 = vmatpush1.bf16.msra.mxu0 0
    %2226 = vmatprep.subr.bf16.mxu0 0
    %2227 = vmatpush1.bf16.msra.mxu0 0
    %2228 = vmatprep.subr.bf16.mxu0 0
    %2229 = vmatpush1.bf16.msra.mxu0 0
    %2230 = vmatprep.subr.bf16.mxu0 0
    %2231 = vmatpush1.bf16.msra.mxu0 0
    %2232 = vmatprep.subr.bf16.mxu0 0
    %2233 = vmatpush1.bf16.msra.mxu0 0
    %2234 = vmatprep.subr.bf16.mxu0 0
    %2235 = vmatpush1.bf16.msra.mxu0 0
    %2236 = vmatprep.mubr.bf16.mxu0 0
    %2237 = vmatmul.mubr.bf16.gmra.mrb[0].mxu0 %v2043
    %v2238 = vpop.f32.mrb[0].mxu0
    %v2239 = vadd.f32 0.0, %v2238
    %v2240 = vpop.f32.mrb[0].mxu0
    %v2241 = vadd.f32 0.0, %v2240
    %v2242 = vpop.f32.mrb[0].mxu0
    %v2243 = vpop.f32.mrb[0].mxu0
    %2244 = vdwg.mxu0
    %2245 = vmatprep.subr.bf16.mxu0 0
    %2246 = vmatpush1.bf16.msra.mxu0 %v2158
    %2247 = vmatprep.subr.bf16.mxu0 0
    %2248 = vmatpush1.bf16.msra.mxu0 %v2161
    %2249 = vmatprep.subr.bf16.mxu0 0
    %2250 = vmatpush1.bf16.msra.mxu0 %v2164
    %2251 = vmatprep.subr.bf16.mxu0 0
    %2252 = vmatpush1.bf16.msra.mxu0 %v2167
    %2253 = vmatprep.subr.bf16.mxu0 0
    %2254 = vmatpush1.bf16.msra.mxu0 %v2170
    %2255 = vmatprep.subr.bf16.mxu0 0
    %2256 = vmatpush1.bf16.msra.mxu0 %v2173
    %2257 = vmatprep.subr.bf16.mxu0 0
    %2258 = vmatpush1.bf16.msra.mxu0 %v2176
    %2259 = vmatprep.subr.bf16.mxu0 0
    %2260 = vmatpush1.bf16.msra.mxu0 %v2179
    %2261 = vmatprep.subr.bf16.mxu0 0
    %2262 = vmatpush1.bf16.msra.mxu0 0
    %2263 = vmatprep.subr.bf16.mxu0 0
    %2264 = vmatpush1.bf16.msra.mxu0 0
    %2265 = vmatprep.subr.bf16.mxu0 0
    %2266 = vmatpush1.bf16.msra.mxu0 0
    %2267 = vmatprep.subr.bf16.mxu0 0
    %2268 = vmatpush1.bf16.msra.mxu0 0
    %2269 = vmatprep.subr.bf16.mxu0 0
    %2270 = vmatpush1.bf16.msra.mxu0 0
    %2271 = vmatprep.subr.bf16.mxu0 0
    %2272 = vmatpush1.bf16.msra.mxu0 0
    %2273 = vmatprep.subr.bf16.mxu0 0
    %2274 = vmatpush1.bf16.msra.mxu0 0
    %2275 = vmatprep.subr.bf16.mxu0 0
    %2276 = vmatpush1.bf16.msra.mxu0 0
    %2277 = vmatprep.mubr.bf16.mxu0 0
    %2278 = vmatmul.mubr.bf16.gmra.mrb[0].mxu0 %v2043
    %v2279 = vpop.f32.mrb[0].mxu0
    %v2280 = vadd.f32 0.0, %v2279
    %v2281 = vpop.f32.mrb[0].mxu0
    %v2282 = vpop.f32.mrb[0].mxu0
    %v2283 = vpop.f32.mrb[0].mxu0
    %2284 = vdwg.mxu0
    %v2285 = vadd.f32 %v2040, %v2239
    %v2286 = vxor.u32 %v2285, 2147483648
    %v2287 = vmul.f32 %v2286, 1.442695
    %v2288 = vpow.pop %v2287
    %v2289 = vadd.f32 %v2288, 1.0
    %v2290 = vrcp.pop %v2289
    %v2291 = vmul.f32 1.0, %v2290
    %v2292 = vadd.f32 %v2041, %v2241
    %v2293 = vxor.u32 %v2292, 2147483648
    %v2294 = vmul.f32 %v2293, 1.442695
    %v2295 = vpow.pop %v2294
    %v2296 = vadd.f32 %v2295, 1.0
    %v2297 = vrcp.pop %v2296
    %v2298 = vmul.f32 1.0, %v2297
    %v2299 = vadd.f32 %v2280, %v424
    %v2300 = vmul.f32 %v2291, %v2299
    %v2301 = vadd.f32 %v2042, %v2300
    %v2302 = vtanh.pop %v2301
    %v2303 = vsub.f32 %v2036, %v2302
    %v2304 = vmul.f32 %v2298, %v2303
    %v2305 = vadd.f32 %v2302, %v2304
    %s2306 = scalar_lea.vmem [#allocation10], 48
    %2307 = vst [vmem:[%s2306] sm:$0xff] %v2305
    %s2308 = scalar_lea.vmem [#allocation3], 168
    %v2309 = vld [vmem:[%s2308] sm:$0xff]
    %v2310 = vld [vmem:[%s2308 + $0x8] sm:$0xff]
    %v2311 = vld [vmem:[%s2308 + $0x10] sm:$0xff]
    %v2312 = vpack.c.bf16 %v2305, %v2305
    %v2313 = vld [vmem:[#allocation9] sm:$0xff]
    %v2314 = vld [vmem:[#allocation9 + $0x8] sm:$0xf]
    %v2315 = vld [vmem:[#allocation9 + $0xc] sm:$0xff]
    %v2316 = vld [vmem:[#allocation9 + $0x14] sm:$0xf]
    %v2317 = vld [vmem:[#allocation9 + $0x18] sm:$0xff]
    %v2318 = vld [vmem:[#allocation9 + $0x20] sm:$0xf]
    %v2319 = vld [vmem:[#allocation9 + $0x24] sm:$0xff]
    %v2320 = vld [vmem:[#allocation9 + $0x2c] sm:$0xf]
    %v2321 = vld [vmem:[#allocation9 + $0x30] sm:$0xff]
    %v2322 = vld [vmem:[#allocation9 + $0x38] sm:$0xf]
    %v2323 = vld [vmem:[#allocation9 + $0x3c] sm:$0xff]
    %v2324 = vld [vmem:[#allocation9 + $0x44] sm:$0xf]
    %v2325 = vld [vmem:[#allocation9 + $0x48] sm:$0xff]
    %v2326 = vld [vmem:[#allocation9 + $0x50] sm:$0xf]
    %v2327 = vld [vmem:[#allocation9 + $0x54] sm:$0xff]
    %v2328 = vld [vmem:[#allocation9 + $0x5c] sm:$0xf]
    %v2329 = vld [vmem:[#allocation9 + $0x60] sm:$0xff]
    %v2330 = vld [vmem:[#allocation9 + $0x68] sm:$0xf]
    %v2331 = vld [vmem:[#allocation9 + $0x6c] sm:$0xff]
    %v2332 = vld [vmem:[#allocation9 + $0x74] sm:$0xf]
    %v2333 = vld [vmem:[#allocation9 + $0x78] sm:$0xff]
    %v2334 = vld [vmem:[#allocation9 + $0x80] sm:$0xf]
    %v2335 = vld [vmem:[#allocation9 + $0x84] sm:$0xff]
    %v2336 = vld [vmem:[#allocation9 + $0x8c] sm:$0xf]
    %v2337 = vld [vmem:[#allocation9 + $0x90] sm:$0xff]
    %v2338 = vld [vmem:[#allocation9 + $0x98] sm:$0xf]
    %v2339 = vld [vmem:[#allocation9 + $0x9c] sm:$0xff]
    %v2340 = vld [vmem:[#allocation9 + $0xa4] sm:$0xf]
    %v2341 = vld [vmem:[#allocation9 + $0xa8] sm:$0xff]
    %v2342 = vld [vmem:[#allocation9 + $0xb0] sm:$0xf]
    %v2343 = vld [vmem:[#allocation9 + $0xb4] sm:$0xff]
    %v2344 = vld [vmem:[#allocation9 + $0xbc] sm:$0xf]
    %v2377 = vunpack.c.l.b16 %v2313
    %v2378 = vunpack.c.h.b16 %v2313
    %v2379 = vunpack.c.l.b16 %v2314
    %v2380 = vunpack.c.l.b16 %v2315
    %v2381 = vunpack.c.h.b16 %v2315
    %v2382 = vunpack.c.l.b16 %v2316
    %v2383 = vunpack.c.l.b16 %v2317
    %v2384 = vunpack.c.h.b16 %v2317
    %v2385 = vunpack.c.l.b16 %v2318
    %v2386 = vunpack.c.l.b16 %v2319
    %v2387 = vunpack.c.h.b16 %v2319
    %v2388 = vunpack.c.l.b16 %v2320
    %v2389 = vunpack.c.l.b16 %v2321
    %v2390 = vunpack.c.h.b16 %v2321
    %v2391 = vunpack.c.l.b16 %v2322
    %v2392 = vunpack.c.l.b16 %v2323
    %v2393 = vunpack.c.h.b16 %v2323
    %v2394 = vunpack.c.l.b16 %v2324
    %v2395 = vunpack.c.l.b16 %v2325
    %v2396 = vunpack.c.h.b16 %v2325
    %v2397 = vunpack.c.l.b16 %v2326
    %v2398 = vunpack.c.l.b16 %v2327
    %v2399 = vunpack.c.h.b16 %v2327
    %v2400 = vunpack.c.l.b16 %v2328
    %v2401 = vunpack.c.l.b16 %v2329
    %v2402 = vunpack.c.h.b16 %v2329
    %v2403 = vunpack.c.l.b16 %v2330
    %v2404 = vunpack.c.l.b16 %v2331
    %v2405 = vunpack.c.h.b16 %v2331
    %v2406 = vunpack.c.l.b16 %v2332
    %v2407 = vunpack.c.l.b16 %v2333
    %v2408 = vunpack.c.h.b16 %v2333
    %v2409 = vunpack.c.l.b16 %v2334
    %v2410 = vunpack.c.l.b16 %v2335
    %v2411 = vunpack.c.h.b16 %v2335
    %v2412 = vunpack.c.l.b16 %v2336
    %v2413 = vunpack.c.l.b16 %v2337
    %v2414 = vunpack.c.h.b16 %v2337
    %v2415 = vunpack.c.l.b16 %v2338
    %v2416 = vunpack.c.l.b16 %v2339
    %v2417 = vunpack.c.h.b16 %v2339
    %v2418 = vunpack.c.l.b16 %v2340
    %v2419 = vunpack.c.l.b16 %v2341
    %v2420 = vunpack.c.h.b16 %v2341
    %v2421 = vunpack.c.l.b16 %v2342
    %v2422 = vunpack.c.l.b16 %v2343
    %v2423 = vunpack.c.h.b16 %v2343
    %v2424 = vunpack.c.l.b16 %v2344
    %v2425 = vpack.c.b16 %v2380, %v2377
    %v2426 = vpack.c.b16 %v2381, %v2378
    %v2427 = vpack.c.b16 %v2382, %v2379
    %v2428 = vpack.c.b16 %v2386, %v2383
    %v2429 = vpack.c.b16 %v2387, %v2384
    %v2430 = vpack.c.b16 %v2388, %v2385
    %v2431 = vpack.c.b16 %v2392, %v2389
    %v2432 = vpack.c.b16 %v2393, %v2390
    %v2433 = vpack.c.b16 %v2394, %v2391
    %v2434 = vpack.c.b16 %v2398, %v2395
    %v2435 = vpack.c.b16 %v2399, %v2396
    %v2436 = vpack.c.b16 %v2400, %v2397
    %v2437 = vpack.c.b16 %v2404, %v2401
    %v2438 = vpack.c.b16 %v2405, %v2402
    %v2439 = vpack.c.b16 %v2406, %v2403
    %v2440 = vpack.c.b16 %v2410, %v2407
    %v2441 = vpack.c.b16 %v2411, %v2408
    %v2442 = vpack.c.b16 %v2412, %v2409
    %v2443 = vpack.c.b16 %v2416, %v2413
    %v2444 = vpack.c.b16 %v2417, %v2414
    %v2445 = vpack.c.b16 %v2418, %v2415
    %v2446 = vpack.c.b16 %v2422, %v2419
    %v2447 = vpack.c.b16 %v2423, %v2420
    %v2448 = vpack.c.b16 %v2424, %v2421
    %2473 = vmatprep.subr.bf16.mxu0 %v2426
    %2474 = vmatpush1.bf16.msra.mxu0 %v2425
    %2475 = vmatprep.subr.bf16.mxu0 %v2429
    %2476 = vmatpush1.bf16.msra.mxu0 %v2428
    %2477 = vmatprep.subr.bf16.mxu0 %v2432
    %2478 = vmatpush1.bf16.msra.mxu0 %v2431
    %2479 = vmatprep.subr.bf16.mxu0 %v2435
    %2480 = vmatpush1.bf16.msra.mxu0 %v2434
    %2481 = vmatprep.subr.bf16.mxu0 %v2438
    %2482 = vmatpush1.bf16.msra.mxu0 %v2437
    %2483 = vmatprep.subr.bf16.mxu0 %v2441
    %2484 = vmatpush1.bf16.msra.mxu0 %v2440
    %2485 = vmatprep.subr.bf16.mxu0 %v2444
    %2486 = vmatpush1.bf16.msra.mxu0 %v2443
    %2487 = vmatprep.subr.bf16.mxu0 %v2447
    %2488 = vmatpush1.bf16.msra.mxu0 %v2446
    %2489 = vmatprep.subr.bf16.mxu0 0
    %2490 = vmatpush1.bf16.msra.mxu0 0
    %2491 = vmatprep.subr.bf16.mxu0 0
    %2492 = vmatpush1.bf16.msra.mxu0 0
    %2493 = vmatprep.subr.bf16.mxu0 0
    %2494 = vmatpush1.bf16.msra.mxu0 0
    %2495 = vmatprep.subr.bf16.mxu0 0
    %2496 = vmatpush1.bf16.msra.mxu0 0
    %2497 = vmatprep.subr.bf16.mxu0 0
    %2498 = vmatpush1.bf16.msra.mxu0 0
    %2499 = vmatprep.subr.bf16.mxu0 0
    %2500 = vmatpush1.bf16.msra.mxu0 0
    %2501 = vmatprep.subr.bf16.mxu0 0
    %2502 = vmatpush1.bf16.msra.mxu0 0
    %2503 = vmatprep.subr.bf16.mxu0 0
    %2504 = vmatpush1.bf16.msra.mxu0 0
    %2505 = vmatprep.mubr.bf16.mxu0 0
    %2506 = vmatmul.mubr.bf16.gmra.mrb[0].mxu0 %v2312
    %v2507 = vpop.f32.mrb[0].mxu0
    %v2508 = vadd.f32 0.0, %v2507
    %v2509 = vpop.f32.mrb[0].mxu0
    %v2510 = vadd.f32 0.0, %v2509
    %v2511 = vpop.f32.mrb[0].mxu0
    %v2512 = vpop.f32.mrb[0].mxu0
    %2513 = vdwg.mxu0
    %2514 = vmatprep.subr.bf16.mxu0 0
    %2515 = vmatpush1.bf16.msra.mxu0 %v2427
    %2516 = vmatprep.subr.bf16.mxu0 0
    %2517 = vmatpush1.bf16.msra.mxu0 %v2430
    %2518 = vmatprep.subr.bf16.mxu0 0
    %2519 = vmatpush1.bf16.msra.mxu0 %v2433
    %2520 = vmatprep.subr.bf16.mxu0 0
    %2521 = vmatpush1.bf16.msra.mxu0 %v2436
    %2522 = vmatprep.subr.bf16.mxu0 0
    %2523 = vmatpush1.bf16.msra.mxu0 %v2439
    %2524 = vmatprep.subr.bf16.mxu0 0
    %2525 = vmatpush1.bf16.msra.mxu0 %v2442
    %2526 = vmatprep.subr.bf16.mxu0 0
    %2527 = vmatpush1.bf16.msra.mxu0 %v2445
    %2528 = vmatprep.subr.bf16.mxu0 0
    %2529 = vmatpush1.bf16.msra.mxu0 %v2448
    %2530 = vmatprep.subr.bf16.mxu0 0
    %2531 = vmatpush1.bf16.msra.mxu0 0
    %2532 = vmatprep.subr.bf16.mxu0 0
    %2533 = vmatpush1.bf16.msra.mxu0 0
    %2534 = vmatprep.subr.bf16.mxu0 0
    %2535 = vmatpush1.bf16.msra.mxu0 0
    %2536 = vmatprep.subr.bf16.mxu0 0
    %2537 = vmatpush1.bf16.msra.mxu0 0
    %2538 = vmatprep.subr.bf16.mxu0 0
    %2539 = vmatpush1.bf16.msra.mxu0 0
    %2540 = vmatprep.subr.bf16.mxu0 0
    %2541 = vmatpush1.bf16.msra.mxu0 0
    %2542 = vmatprep.subr.bf16.mxu0 0
    %2543 = vmatpush1.bf16.msra.mxu0 0
    %2544 = vmatprep.subr.bf16.mxu0 0
    %2545 = vmatpush1.bf16.msra.mxu0 0
    %2546 = vmatprep.mubr.bf16.mxu0 0
    %2547 = vmatmul.mubr.bf16.gmra.mrb[0].mxu0 %v2312
    %v2548 = vpop.f32.mrb[0].mxu0
    %v2549 = vadd.f32 0.0, %v2548
    %v2550 = vpop.f32.mrb[0].mxu0
    %v2551 = vpop.f32.mrb[0].mxu0
    %v2552 = vpop.f32.mrb[0].mxu0
    %2553 = vdwg.mxu0
    %v2554 = vadd.f32 %v2309, %v2508
    %v2555 = vxor.u32 %v2554, 2147483648
    %v2556 = vmul.f32 %v2555, 1.442695
    %v2557 = vpow.pop %v2556
    %v2558 = vadd.f32 %v2557, 1.0
    %v2559 = vrcp.pop %v2558
    %v2560 = vmul.f32 1.0, %v2559
    %v2561 = vadd.f32 %v2310, %v2510
    %v2562 = vxor.u32 %v2561, 2147483648
    %v2563 = vmul.f32 %v2562, 1.442695
    %v2564 = vpow.pop %v2563
    %v2565 = vadd.f32 %v2564, 1.0
    %v2566 = vrcp.pop %v2565
    %v2567 = vmul.f32 1.0, %v2566
    %v2568 = vadd.f32 %v2549, %v424
    %v2569 = vmul.f32 %v2560, %v2568
    %v2570 = vadd.f32 %v2311, %v2569
    %v2571 = vtanh.pop %v2570
    %v2572 = vsub.f32 %v2305, %v2571
    %v2573 = vmul.f32 %v2567, %v2572
    %v2574 = vadd.f32 %v2571, %v2573
    %s2575 = scalar_lea.vmem [#allocation10], 56
    %2576 = vst [vmem:[%s2575] sm:$0xff] %v2574
    %2577 = vst [vmem:[#allocation2] sm:$0xff] %v2574
    // Predicated region
    $region38: #{tpu_custom_call.1} parent=1 // pred_check
      _
    $region39: #{tpu_custom_call.1} parent=1 // pred_check_branch
      %2579 = sbr.rel (0) target = $region41
    $region40: #{tpu_custom_call.1} parent=1 // pred_region
      %s2581 = ssub.s32 1024, 1024
      %2582 = vsyncadd [#allocation6], %s2581
      %s2583 = sshll.u32 [#allocation10], 4
      %s2584 = int_to_ptr.vmem [resolvable:$true] %s2583
      %2589 = dma.vmem_to_hbm [thread:$0]  %s2584, 1024, %s5, [#allocation6], 128, 128, 8
    $region41: #{tpu_custom_call.1} parent=1 // pred_fallthru
      _
    // Predicated region
    $region42: #{tpu_custom_call.1} parent=1 // pred_check
      _
    $region43: #{tpu_custom_call.1} parent=1 // pred_check_branch
      %2591 = sbr.rel (0) target = $region45
    $region44: #{tpu_custom_call.1} parent=1 // pred_region
      %2592 = dma.done [#allocation6], 1024
    $region45: #{tpu_custom_call.1} parent=1 // pred_fallthru
      _
    %2593 = vsyncpa [#allocation5], 1
    %2594 = vsyncpa [#allocation8], 1
    %2595 = vsyncpa [#allocation6], 1

</llo_original>
